<compile_context>
chip_gen: v7x
topology: tpu7x:2x2x1
jax: 0.10.0
libtpu: 0.0.40
codegen_flags: <defaults>
</compile_context>

<pallas_src>
import math
import functools

import jax
import jax.numpy as jnp
from jax.experimental import pallas as pl
from jax.experimental.pallas import tpu as pltpu


# ----------------------------- helpers --------------------------------------

def _cparams(parallel=True):
    sem = ("parallel",) if parallel else ("arbitrary",)
    return pltpu.CompilerParams(dimension_semantics=sem,
                                vmem_limit_bytes=32 * 1024 * 1024)


def _shift_rows_zero(x, off):
    """x shifted along axis 0 by `off` rows with zero fill (value-level, static)."""
    L = x.shape[0]
    if off == 0:
        return x
    z = jnp.zeros((abs(off),) + x.shape[1:], x.dtype)
    if off < 0:
        return jnp.concatenate([z, x[:L + off]], axis=0)
    return jnp.concatenate([x[off:], z], axis=0)


def _shift_rows_wrap(x, off):
    """x shifted along axis 0 by `off` rows with circular wrap (value-level, static)."""
    L = x.shape[0]
    o = off % L
    if o == 0:
        return x
    return jnp.concatenate([x[o:], x[:o]], axis=0)


def _im2col(xb, taps, circular):
    """Build (L, taps*C) im2col tile in VMEM for a 'same' conv (pad = (taps-1)//2)."""
    pad = (taps - 1) // 2
    shift = _shift_rows_wrap if circular else _shift_rows_zero
    cols = [shift(xb, j - pad) for j in range(taps)]
    return jnp.concatenate(cols, axis=-1)


# ----------------------------- Pallas kernels -------------------------------

def _embed_kernel(x_ref, w_ref, pe_ref, o_ref, *, taps):
    """DataEmbedding: circular Conv1d token embedding (no bias) + positional embedding."""
    xb = x_ref[0].astype(jnp.bfloat16)                       # cast once: (L, Cin)
    cols = _im2col(xb, taps, circular=True)                  # (L, taps*Cin)
    o_ref[0] = pe_ref[...] + jnp.dot(cols, w_ref[...],
                                     preferred_element_type=jnp.float32)


def _encoder_layer_kernel(x_ref, wqkv_ref, bqkv_ref, wo_ref, w1_ref, b1_ref,
                          w2_ref, vec_ref, o_ref, *, taps, num_heads, scale):
    """One full encoder layer, fused:
       QKV conv projection (one im2col matmul, Cout=3D) -> multi-head full attention ->
       out-projection (+residual, LayerNorm) -> FFN (+residual, LayerNorm)."""
    x = x_ref[0]                                             # (L, D) f32
    L, D = x.shape
    dh = D // num_heads

    # --- fused Q/K/V Conv1d projection: ONE matmul with K = taps*D ---------
    cols = _im2col(x.astype(jnp.bfloat16), taps, circular=False)   # (L, taps*D)
    qkv = jnp.dot(cols, wqkv_ref[...],
                  preferred_element_type=jnp.float32) + bqkv_ref[...]   # (L, 3D) f32
    qkvb = qkv.astype(jnp.bfloat16)                          # cast once for the MXU

    # --- multi-head full attention (heads sliced in-kernel, lane-dense qkv) -
    heads = []
    for h in range(num_heads):
        qh = qkvb[:, h * dh:(h + 1) * dh]
        kh = qkvb[:, D + h * dh:D + (h + 1) * dh]
        vh = qkvb[:, 2 * D + h * dh:2 * D + (h + 1) * dh]
        s = jnp.dot(qh, kh.T, preferred_element_type=jnp.float32) * scale
        m = jnp.max(s, axis=-1, keepdims=True)
        p = jnp.exp(s - m)
        p = p * pl.reciprocal(jnp.sum(p, axis=-1, keepdims=True), approx=True)
        heads.append(jnp.dot(p.astype(jnp.bfloat16), vh,
                             preferred_element_type=jnp.float32))
    attn = jnp.concatenate(heads, axis=-1)                   # (L, D) = concat_h(o_h)

    # --- out-projection (single K=D matmul) + residual + LayerNorm ----------
    vec = vec_ref[...]                                       # (6, D): bo,g1,b1,b2,g2,b2
    y = x + vec[0:1] + jnp.dot(attn.astype(jnp.bfloat16), wo_ref[...],
                               preferred_element_type=jnp.float32)
    mu = jnp.mean(y, axis=-1, keepdims=True)
    var = jnp.mean(jnp.square(y - mu), axis=-1, keepdims=True)
    y = (y - mu) * jax.lax.rsqrt(var + 1e-5) * vec[1:2] + vec[2:3]

    # --- FFN (linear-relu-linear) + residual + LayerNorm ---------------------
    hid = jnp.dot(y.astype(jnp.bfloat16), w1_ref[...],
                  preferred_element_type=jnp.float32) + b1_ref[...]
    hid = jnp.maximum(hid, 0.0)
    z = y + vec[3:4] + jnp.dot(hid.astype(jnp.bfloat16), w2_ref[...],
                               preferred_element_type=jnp.float32)
    mu = jnp.mean(z, axis=-1, keepdims=True)
    var = jnp.mean(jnp.square(z - mu), axis=-1, keepdims=True)
    o_ref[0] = (z - mu) * jax.lax.rsqrt(var + 1e-5) * vec[4:5] + vec[5:6]


def _cnn_stack_kernel(x_ref, wc1_ref, wc2_ref, bn_ref, bias_ref, o_ref, *, taps):
    """CNN1 + BN(win,eval) + ReLU + MaxPool(2,2) + CNN2 + BN + ReLU + MaxPool(2,2), fused.
       Conv Cout axes are pre-permuted to [even | odd] so each pair-max pool is a max of
       two contiguous halves (no strided lane access)."""
    x = x_ref[0]                                             # (W, D) f32
    Wn, D = x.shape
    h1 = D // 2
    h2 = D // 4
    bn = bn_ref[...]                                         # (W, 2): scale, shift
    bn_s = bn[:, 0:1]
    bn_t = bn[:, 1:2]
    bias = bias_ref[...]                                     # (2, D) packed conv biases

    c1 = jnp.dot(_im2col(x.astype(jnp.bfloat16), taps, circular=False), wc1_ref[...],
                 preferred_element_type=jnp.float32) + bias[0:1, :]
    c1 = jnp.maximum(c1 * bn_s + bn_t, 0.0)
    p1 = jnp.maximum(c1[:, :h1], c1[:, h1:])                 # MaxPool1d(2,2) over features

    c2 = jnp.dot(_im2col(p1.astype(jnp.bfloat16), taps, circular=False), wc2_ref[...],
                 preferred_element_type=jnp.float32) + bias[1:2, :h1]
    c2 = jnp.maximum(c2 * bn_s + bn_t, 0.0)
    o_ref[0] = jnp.maximum(c2[:, :h2], c2[:, h2:])           # (W, D/4)


def _head_kernel(x_ref, w1_ref, b1_ref, w2_ref, b2_ref, o_ref):
    """flatten -> linear1 -> (dropout = id in eval) -> linear2, whole batch at once."""
    h = jnp.dot(x_ref[...].astype(jnp.bfloat16), w1_ref[...],
                preferred_element_type=jnp.float32) + b1_ref[...]
    o_ref[...] = jnp.dot(h.astype(jnp.bfloat16), w2_ref[...],
                         preferred_element_type=jnp.float32) + b2_ref[...]


# ----------------------------- wrappers (pallas_call) ------------------------

def embed(x, w, pe):
    B, L, Cin = x.shape
    kc, D = w.shape
    taps = kc // Cin
    return pl.pallas_call(
        functools.partial(_embed_kernel, taps=taps),
        out_shape=jax.ShapeDtypeStruct((B, L, D), jnp.float32),
        grid=(B,),
        in_specs=[pl.BlockSpec((1, L, Cin), lambda i: (i, 0, 0)),
                  pl.BlockSpec((kc, D), lambda i: (0, 0)),
                  pl.BlockSpec((L, D), lambda i: (0, 0))],
        out_specs=pl.BlockSpec((1, L, D), lambda i: (i, 0, 0)),
        compiler_params=_cparams(),
    )(x, w, pe)


def encoder_layer(x, p, num_heads, kernel_size):
    B, L, D = x.shape
    dff = p['w1'].shape[1]
    dh = D // num_heads
    scale = 1.0 / math.sqrt(dh)
    kern = functools.partial(_encoder_layer_kernel, taps=kernel_size,
                             num_heads=num_heads, scale=scale)
    cost = pl.CostEstimate(
        flops=B * (2 * L * kernel_size * D * 3 * D + 4 * num_heads * L * L * dh
                   + 2 * L * D * D + 4 * L * D * dff),
        transcendentals=B * num_heads * L * L,
        bytes_accessed=2 * B * L * D * 4
                       + 2 * (kernel_size * D * 3 * D + D * D + 2 * D * dff))
    return pl.pallas_call(
        kern,
        out_shape=jax.ShapeDtypeStruct((B, L, D), jnp.float32),
        grid=(B,),
        in_specs=[pl.BlockSpec((1, L, D), lambda i: (i, 0, 0)),
                  pl.BlockSpec((kernel_size * D, 3 * D), lambda i: (0, 0)),
                  pl.BlockSpec((1, 3 * D), lambda i: (0, 0)),
                  pl.BlockSpec((D, D), lambda i: (0, 0)),
                  pl.BlockSpec((D, dff), lambda i: (0, 0)),
                  pl.BlockSpec((1, dff), lambda i: (0, 0)),
                  pl.BlockSpec((dff, D), lambda i: (0, 0)),
                  pl.BlockSpec((6, D), lambda i: (0, 0))],
        out_specs=pl.BlockSpec((1, L, D), lambda i: (i, 0, 0)),
        compiler_params=_cparams(),
        cost_estimate=cost,
    )(x, p['w_qkv'], p['b_qkv'], p['wo'], p['w1'], p['b1'], p['w2'], p['vec'])


def cnn_stack(x, wc1, wc2, bn, bias):
    B, W, D = x.shape
    taps = wc1.shape[0] // D
    return pl.pallas_call(
        functools.partial(_cnn_stack_kernel, taps=taps),
        out_shape=jax.ShapeDtypeStruct((B, W, D // 4), jnp.float32),
        grid=(B,),
        in_specs=[pl.BlockSpec((1, W, D), lambda i: (i, 0, 0)),
                  pl.BlockSpec((taps * D, D), lambda i: (0, 0)),
                  pl.BlockSpec((taps * (D // 2), D // 2), lambda i: (0, 0)),
                  pl.BlockSpec((W, 2), lambda i: (0, 0)),
                  pl.BlockSpec((2, D), lambda i: (0, 0))],
        out_specs=pl.BlockSpec((1, W, D // 4), lambda i: (i, 0, 0)),
        compiler_params=_cparams(),
    )(x, wc1, wc2, bn, bias)


def classifier_head(x2d, w1, b1, w2, b2):
    B, K = x2d.shape
    nh = w1.shape[1]
    nc = w2.shape[1]
    return pl.pallas_call(
        _head_kernel,
        out_shape=jax.ShapeDtypeStruct((B, nc), jnp.float32),
        grid=(1,),
        in_specs=[pl.BlockSpec((B, K), lambda i: (0, 0)),
                  pl.BlockSpec((K, nh), lambda i: (0, 0)),
                  pl.BlockSpec((1, nh), lambda i: (0, 0)),
                  pl.BlockSpec((nh, nc), lambda i: (0, 0)),
                  pl.BlockSpec((1, nc), lambda i: (0, 0))],
        out_specs=pl.BlockSpec((B, nc), lambda i: (0, 0)),
        compiler_params=_cparams(parallel=False),
    )(x2d, w1, b1, w2, b2)


# ----------------------------- model forward ---------------------------------

def cnn_adformer_forward(x, params, num_heads, kernel_size):
    B = x.shape[0]
    out = embed(x, params['emb_w'], params['pos_emb'])           # DataEmbedding
    for lp in params['layers']:                                  # TrafficADEncoder
        out = encoder_layer(out, lp, num_heads, kernel_size)
    out = cnn_stack(out, params['cnn1_w'], params['cnn2_w'],     # CNN1/BN/ReLU/pool/CNN2/...
                    params['bn'], params['cnn_b'])               # -> (B, W, D/4)
    out = out.reshape(B, -1)                                     # torch.flatten(out, 1) (win-major)
    return classifier_head(out, params['l1_w'], params['l1_b'],
                           params['l2_w'], params['l2_b'])


# ----------------------------- parameters ------------------------------------

def sinusoidal_pe(length, d_model):
    pos = jnp.arange(length, dtype=jnp.float32)[:, None]
    idx = jnp.arange(0, d_model, 2, dtype=jnp.float32)
    div = jnp.exp(-jnp.log(jnp.float32(10000.0)) * idx / d_model)
    pe = jnp.zeros((length, d_model), jnp.float32)
    pe = pe.at[:, 0::2].set(jnp.sin(pos * div))
    pe = pe.at[:, 1::2].set(jnp.cos(pos * div))
    return pe


def _conv_to_matmul(w_torch):
    """PyTorch Conv1d weight (Cout, Cin, k) -> im2col matmul weight (k*Cin, Cout)."""
    cout, cin, k = w_torch.shape
    return jnp.transpose(w_torch, (2, 1, 0)).reshape(k * cin, cout)


def init_params(key, feature_num, d_model, win_size, e_layers, kernel_size,
                num_heads, num_classes):
    def take(shape, scale=0.05):
        nonlocal key
        key, sub = jax.random.split(key)
        return (scale * jax.random.normal(sub, shape)).astype(jnp.float32)

    d_ff = 4 * d_model
    params = {}

    # DataEmbedding: circular token conv (kernel 3, no bias) + sinusoidal PE.
    params['emb_w'] = _conv_to_matmul(take((d_model, feature_num, 3))).astype(jnp.bfloat16)
    params['pos_emb'] = sinusoidal_pe(win_size, d_model)

    layers = []
    for _ in range(e_layers):
        wq, wk, wv = (take((d_model, d_model, kernel_size)) for _ in range(3))
        bq, bk, bv = (take((d_model,)) for _ in range(3))
        layers.append({
            # fused Q/K/V conv weight, im2col layout: (kernel_size*D, 3D) bf16
            'w_qkv': _conv_to_matmul(jnp.concatenate([wq, wk, wv], axis=0)).astype(jnp.bfloat16),
            'b_qkv': jnp.concatenate([bq, bk, bv]).reshape(1, 3 * d_model),
            # out-projection in x @ W layout (transpose nn.Linear weight when porting)
            'wo': take((d_model, d_model)).astype(jnp.bfloat16),
            'w1': take((d_model, d_ff)).astype(jnp.bfloat16),
            'b1': take((d_ff,)).reshape(1, d_ff),
            'w2': take((d_ff, d_model)).astype(jnp.bfloat16),
            # packed small vectors: [bo, ln1_gamma, ln1_beta, ffn_b2, ln2_gamma, ln2_beta]
            'vec': jnp.stack([take((d_model,)),
                              jnp.ones((d_model,), jnp.float32),
                              jnp.zeros((d_model,), jnp.float32),
                              take((d_model,)),
                              jnp.ones((d_model,), jnp.float32),
                              jnp.zeros((d_model,), jnp.float32)], axis=0),
        })
    params['layers'] = layers

    def prep_cnn(w, bias):
        # Cout permuted to [even | odd] so MaxPool1d(2,2) over features == max of halves.
        cout = w.shape[0]
        perm = jnp.concatenate([jnp.arange(0, cout, 2), jnp.arange(1, cout, 2)])
        return _conv_to_matmul(w[perm]).astype(jnp.bfloat16), bias[perm]

    cnn1_w, cnn1_b = prep_cnn(take((d_model, d_model, 3)), take((d_model,)))
    cnn2_w, cnn2_b = prep_cnn(take((d_model // 2, d_model // 2, 3)), take((d_model // 2,)))
    params['cnn1_w'] = cnn1_w
    params['cnn2_w'] = cnn2_w
    cnn_b = jnp.zeros((2, d_model), jnp.float32)
    cnn_b = cnn_b.at[0, :].set(cnn1_b)
    cnn_b = cnn_b.at[1, :d_model // 2].set(cnn2_b)
    params['cnn_b'] = cnn_b

    # Shared BatchNorm1d(win_size), eval mode -> per-win affine (same instance for both stages).
    gamma = 1.0 + take((win_size,))
    beta = take((win_size,))
    run_mean = take((win_size,))
    run_var = 1.0 + jnp.abs(take((win_size,)))
    scale = gamma * jax.lax.rsqrt(run_var + 1e-5)
    params['bn'] = jnp.stack([scale, beta - run_mean * scale], axis=1)   # (W, 2)

    params['l1_w'] = take((d_model // 4 * win_size, 256)).astype(jnp.bfloat16)
    params['l1_b'] = take((256,)).reshape(1, 256)
    params['l2_w'] = take((256, num_classes)).astype(jnp.bfloat16)
    params['l2_b'] = take((num_classes,)).reshape(1, num_classes)
    return params


# ----------------------------- main -------------------------------------------

if __name__ == "__main__":
    # small config consistent with the module
    batch, win_size, feature_num = 2, 16, 4
    d_model, e_layers, num_heads = 32, 2, 4
    num_classes, kernel_size, padding = 2, 3, 1
    assert padding == (kernel_size - 1) // 2, "projections must preserve sequence length"

    root = jax.random.PRNGKey(0)
    root, pkey, xkey = jax.random.split(root, 3)
    params = init_params(pkey, feature_num, d_model, win_size, e_layers,
                         kernel_size, num_heads, num_classes)
    x = jax.random.normal(xkey, (batch, win_size, feature_num), dtype=jnp.float32)

    fwd = jax.jit(functools.partial(cnn_adformer_forward,
                                    num_heads=num_heads, kernel_size=kernel_size))
    out = fwd(x, params)
    out = jax.block_until_ready(out)
    assert out.shape == (batch, num_classes)
    assert bool(jnp.all(jnp.isfinite(out)))
    print("KERNEL_OK")
</pallas_src>

<mosaic_0001>
module attributes {stable_mosaic.version = 11 : i64} {
  func.func @_embed_kernel(%arg0: i32, %arg1: memref<1x16x4xf32, #tpu.memory_space<vmem>>, %arg2: memref<12x32xbf16, #tpu.memory_space<vmem>>, %arg3: memref<16x32xf32, #tpu.memory_space<vmem>>, %arg4: memref<1x16x32xf32, #tpu.memory_space<vmem>>) attributes {dimension_semantics = [#tpu.dimension_semantics<parallel>], iteration_bounds = array<i64: 2>, scalar_prefetch = 0 : i64, scratch_operands = 0 : i64, tpu.core_type = #tpu.core_type<tc>, window_params = [{transform_indices = @transform_0, window_bounds = array<i64: 1, 16, 4>}, {pipeline_mode = #tpu.pipeline_mode<synchronous>, transform_indices = @transform_1, window_bounds = array<i64: 12, 32>}, {pipeline_mode = #tpu.pipeline_mode<synchronous>, transform_indices = @transform_2, window_bounds = array<i64: 16, 32>}, {transform_indices = @transform_3, window_bounds = array<i64: 1, 16, 32>}]} {
    %c0 = arith.constant 0 : index
    %c0_0 = arith.constant 0 : index
    %c0_1 = arith.constant 0 : index
    %0 = vector.load %arg1[%c0, %c0_0, %c0_1] : memref<1x16x4xf32, #tpu.memory_space<vmem>>, vector<1x16x4xf32>
    %1 = vector.shape_cast %0 : vector<1x16x4xf32> to vector<16x4xf32>
    %2 = arith.truncf %1 : vector<16x4xf32> to vector<16x4xbf16>
    %3 = vector.extract_strided_slice %2 {offsets = [15, 0], sizes = [1, 4], strides = [1, 1]} : vector<16x4xbf16> to vector<1x4xbf16>
    %4 = vector.extract_strided_slice %2 {offsets = [0, 0], sizes = [15, 4], strides = [1, 1]} : vector<16x4xbf16> to vector<15x4xbf16>
    %5 = tpu.concatenate %3, %4 in 0 : vector<1x4xbf16>, vector<15x4xbf16> -> vector<16x4xbf16>
    %6 = vector.extract_strided_slice %2 {offsets = [1, 0], sizes = [15, 4], strides = [1, 1]} : vector<16x4xbf16> to vector<15x4xbf16>
    %7 = vector.extract_strided_slice %2 {offsets = [0, 0], sizes = [1, 4], strides = [1, 1]} : vector<16x4xbf16> to vector<1x4xbf16>
    %8 = tpu.concatenate %6, %7 in 0 : vector<15x4xbf16>, vector<1x4xbf16> -> vector<16x4xbf16>
    %9 = tpu.concatenate %5, %2, %8 in 1 : vector<16x4xbf16>, vector<16x4xbf16>, vector<16x4xbf16> -> vector<16x12xbf16>
    %c0_2 = arith.constant 0 : index
    %c0_3 = arith.constant 0 : index
    %10 = vector.load %arg3[%c0_2, %c0_3] : memref<16x32xf32, #tpu.memory_space<vmem>>, vector<16x32xf32>
    %c0_4 = arith.constant 0 : index
    %c0_5 = arith.constant 0 : index
    %11 = vector.load %arg2[%c0_4, %c0_5] : memref<12x32xbf16, #tpu.memory_space<vmem>>, vector<12x32xbf16>
    %cst = arith.constant dense<0.000000e+00> : vector<16x32xf32>
    %12 = tpu.matmul %9, %11, %cst {dimension_numbers = #tpu.dot_dimension_numbers<[1], [0], [0], [1], [0, 0, 1, 1], [], []>} : vector<16x12xbf16>, vector<12x32xbf16>, vector<16x32xf32> -> vector<16x32xf32>
    %13 = arith.addf %10, %12 : vector<16x32xf32>
    %c0_6 = arith.constant 0 : index
    %c0_7 = arith.constant 0 : index
    %c0_8 = arith.constant 0 : index
    %14 = vector.load %arg4[%c0_6, %c0_7, %c0_8] : memref<1x16x32xf32, #tpu.memory_space<vmem>>, vector<1x16x32xf32>
    %15 = vector.shape_cast %14 : vector<1x16x32xf32> to vector<16x32xf32>
    %16 = vector.shape_cast %13 : vector<16x32xf32> to vector<1x16x32xf32>
    tpu.vector_store %arg4[%c0_6, %c0_7, %c0_8], %16 {strides = array<i32>} : memref<1x16x32xf32, #tpu.memory_space<vmem>>, vector<1x16x32xf32>,
    return
  }
  func.func @transform_0(%arg0: i32) -> (i32, i32, i32) {
    %c0_i32 = arith.constant 0 : i32
    %c0_i32_0 = arith.constant 0 : i32
    %c0_i32_1 = arith.constant 0 : i32
    return %arg0, %c0_i32, %c0_i32_0 : i32, i32, i32
  }
  func.func @transform_1(%arg0: i32) -> (i32, i32) {
    %c0_i32 = arith.constant 0 : i32
    %c0_i32_0 = arith.constant 0 : i32
    %c0_i32_1 = arith.constant 0 : i32
    return %c0_i32, %c0_i32_0 : i32, i32
  }
  func.func @transform_2(%arg0: i32) -> (i32, i32) {
    %c0_i32 = arith.constant 0 : i32
    %c0_i32_0 = arith.constant 0 : i32
    %c0_i32_1 = arith.constant 0 : i32
    return %c0_i32, %c0_i32_0 : i32, i32
  }
  func.func @transform_3(%arg0: i32) -> (i32, i32, i32) {
    %c0_i32 = arith.constant 0 : i32
    %c0_i32_0 = arith.constant 0 : i32
    %c0_i32_1 = arith.constant 0 : i32
    return %arg0, %c0_i32, %c0_i32_0 : i32, i32, i32
  }
}

module attributes {stable_mosaic.version = 11 : i64} {
  func.func @_encoder_layer_kernel(%arg0: i32, %arg1: memref<1x16x32xf32, #tpu.memory_space<vmem>>, %arg2: memref<96x96xbf16, #tpu.memory_space<vmem>>, %arg3: memref<1x96xf32, #tpu.memory_space<vmem>>, %arg4: memref<32x32xbf16, #tpu.memory_space<vmem>>, %arg5: memref<32x128xbf16, #tpu.memory_space<vmem>>, %arg6: memref<1x128xf32, #tpu.memory_space<vmem>>, %arg7: memref<128x32xbf16, #tpu.memory_space<vmem>>, %arg8: memref<6x32xf32, #tpu.memory_space<vmem>>, %arg9: memref<1x16x32xf32, #tpu.memory_space<vmem>>) attributes {dimension_semantics = [#tpu.dimension_semantics<parallel>], iteration_bounds = array<i64: 2>, scalar_prefetch = 0 : i64, scratch_operands = 0 : i64, tpu.core_type = #tpu.core_type<tc>, window_params = [{transform_indices = @transform_0, window_bounds = array<i64: 1, 16, 32>}, {pipeline_mode = #tpu.pipeline_mode<synchronous>, transform_indices = @transform_1, window_bounds = array<i64: 96, 96>}, {pipeline_mode = #tpu.pipeline_mode<synchronous>, transform_indices = @transform_2, window_bounds = array<i64: 1, 96>}, {pipeline_mode = #tpu.pipeline_mode<synchronous>, transform_indices = @transform_3, window_bounds = array<i64: 32, 32>}, {pipeline_mode = #tpu.pipeline_mode<synchronous>, transform_indices = @transform_4, window_bounds = array<i64: 32, 128>}, {pipeline_mode = #tpu.pipeline_mode<synchronous>, transform_indices = @transform_5, window_bounds = array<i64: 1, 128>}, {pipeline_mode = #tpu.pipeline_mode<synchronous>, transform_indices = @transform_6, window_bounds = array<i64: 128, 32>}, {pipeline_mode = #tpu.pipeline_mode<synchronous>, transform_indices = @transform_7, window_bounds = array<i64: 6, 32>}, {transform_indices = @transform_8, window_bounds = array<i64: 1, 16, 32>}]} {
    %c0 = arith.constant 0 : index
    %c0_0 = arith.constant 0 : index
    %c0_1 = arith.constant 0 : index
    %0 = vector.load %arg1[%c0, %c0_0, %c0_1] : memref<1x16x32xf32, #tpu.memory_space<vmem>>, vector<1x16x32xf32>
    %1 = vector.shape_cast %0 : vector<1x16x32xf32> to vector<16x32xf32>
    %2 = arith.truncf %1 : vector<16x32xf32> to vector<16x32xbf16>
    %cst = arith.constant 0.000000e+00 : bf16
    %3 = vector.broadcast %cst : bf16 to vector<1x32xbf16>
    %4 = vector.extract_strided_slice %2 {offsets = [0, 0], sizes = [15, 32], strides = [1, 1]} : vector<16x32xbf16> to vector<15x32xbf16>
    %5 = tpu.concatenate %3, %4 in 0 : vector<1x32xbf16>, vector<15x32xbf16> -> vector<16x32xbf16>
    %cst_2 = arith.constant 0.000000e+00 : bf16
    %6 = vector.broadcast %cst_2 : bf16 to vector<1x32xbf16>
    %7 = vector.extract_strided_slice %2 {offsets = [1, 0], sizes = [15, 32], strides = [1, 1]} : vector<16x32xbf16> to vector<15x32xbf16>
    %8 = tpu.concatenate %7, %6 in 0 : vector<15x32xbf16>, vector<1x32xbf16> -> vector<16x32xbf16>
    %9 = tpu.concatenate %5, %2, %8 in 1 : vector<16x32xbf16>, vector<16x32xbf16>, vector<16x32xbf16> -> vector<16x96xbf16>
    %c0_3 = arith.constant 0 : index
    %c0_4 = arith.constant 0 : index
    %10 = vector.load %arg2[%c0_3, %c0_4] : memref<96x96xbf16, #tpu.memory_space<vmem>>, vector<96x96xbf16>
    %cst_5 = arith.constant dense<0.000000e+00> : vector<16x96xf32>
    %11 = tpu.matmul %9, %10, %cst_5 {dimension_numbers = #tpu.dot_dimension_numbers<[1], [0], [0], [1], [0, 0, 1, 1], [], []>} : vector<16x96xbf16>, vector<96x96xbf16>, vector<16x96xf32> -> vector<16x96xf32>
    %c0_6 = arith.constant 0 : index
    %c0_7 = arith.constant 0 : index
    %12 = vector.load %arg3[%c0_6, %c0_7] : memref<1x96xf32, #tpu.memory_space<vmem>>, vector<1x96xf32>
    %13 = vector.broadcast %12 : vector<1x96xf32> to vector<16x96xf32>
    %14 = arith.addf %11, %13 : vector<16x96xf32>
    %15 = arith.truncf %14 : vector<16x96xf32> to vector<16x96xbf16>
    %16 = vector.extract_strided_slice %15 {offsets = [0, 0], sizes = [16, 8], strides = [1, 1]} : vector<16x96xbf16> to vector<16x8xbf16>
    %17 = vector.extract_strided_slice %15 {offsets = [0, 32], sizes = [16, 8], strides = [1, 1]} : vector<16x96xbf16> to vector<16x8xbf16>
    %18 = vector.extract_strided_slice %15 {offsets = [0, 64], sizes = [16, 8], strides = [1, 1]} : vector<16x96xbf16> to vector<16x8xbf16>
    %19 = tpu.transpose %17, [1, 0] : vector<16x8xbf16> -> vector<8x16xbf16>
    %cst_8 = arith.constant dense<0.000000e+00> : vector<16x16xf32>
    %20 = tpu.matmul %16, %19, %cst_8 {dimension_numbers = #tpu.dot_dimension_numbers<[1], [0], [0], [1], [0, 0, 1, 1], [], []>} : vector<16x8xbf16>, vector<8x16xbf16>, vector<16x16xf32> -> vector<16x16xf32>
    %cst_9 = arith.constant 0.353553385 : f32
    %21 = vector.broadcast %cst_9 : f32 to vector<16x16xf32>
    %22 = arith.mulf %20, %21 : vector<16x16xf32>
    %cst_10 = arith.constant dense<0xFF800000> : vector<16xf32>
    %23 = vector.multi_reduction <maximumf>, %22, %cst_10 [1] : vector<16x16xf32> to vector<16xf32>
    %24 = vector.shape_cast %23 : vector<16xf32> to vector<16x1xf32>
    %25 = vector.broadcast %24 : vector<16x1xf32> to vector<16x16xf32>
    %26 = arith.subf %22, %25 : vector<16x16xf32>
    %27 = math.exp %26 : vector<16x16xf32>
    %cst_11 = arith.constant dense<0.000000e+00> : vector<16xf32>
    %28 = vector.multi_reduction <add>, %27, %cst_11 [1] : vector<16x16xf32> to vector<16xf32>
    %29 = vector.shape_cast %28 : vector<16xf32> to vector<16x1xf32>
    %30 = tpu.reciprocal %29 {approx = true} : vector<16x1xf32> -> vector<16x1xf32>
    %31 = vector.broadcast %30 : vector<16x1xf32> to vector<16x16xf32>
    %32 = arith.mulf %27, %31 : vector<16x16xf32>
    %33 = arith.truncf %32 : vector<16x16xf32> to vector<16x16xbf16>
    %cst_12 = arith.constant dense<0.000000e+00> : vector<16x8xf32>
    %34 = tpu.matmul %33, %18, %cst_12 {dimension_numbers = #tpu.dot_dimension_numbers<[1], [0], [0], [1], [0, 0, 1, 1], [], []>} : vector<16x16xbf16>, vector<16x8xbf16>, vector<16x8xf32> -> vector<16x8xf32>
    %35 = vector.extract_strided_slice %15 {offsets = [0, 8], sizes = [16, 8], strides = [1, 1]} : vector<16x96xbf16> to vector<16x8xbf16>
    %36 = vector.extract_strided_slice %15 {offsets = [0, 40], sizes = [16, 8], strides = [1, 1]} : vector<16x96xbf16> to vector<16x8xbf16>
    %37 = vector.extract_strided_slice %15 {offsets = [0, 72], sizes = [16, 8], strides = [1, 1]} : vector<16x96xbf16> to vector<16x8xbf16>
    %38 = tpu.transpose %36, [1, 0] : vector<16x8xbf16> -> vector<8x16xbf16>
    %cst_13 = arith.constant dense<0.000000e+00> : vector<16x16xf32>
    %39 = tpu.matmul %35, %38, %cst_13 {dimension_numbers = #tpu.dot_dimension_numbers<[1], [0], [0], [1], [0, 0, 1, 1], [], []>} : vector<16x8xbf16>, vector<8x16xbf16>, vector<16x16xf32> -> vector<16x16xf32>
    %cst_14 = arith.constant 0.353553385 : f32
    %40 = vector.broadcast %cst_14 : f32 to vector<16x16xf32>
    %41 = arith.mulf %39, %40 : vector<16x16xf32>
    %cst_15 = arith.constant dense<0xFF800000> : vector<16xf32>
    %42 = vector.multi_reduction <maximumf>, %41, %cst_15 [1] : vector<16x16xf32> to vector<16xf32>
    %43 = vector.shape_cast %42 : vector<16xf32> to vector<16x1xf32>
    %44 = vector.broadcast %43 : vector<16x1xf32> to vector<16x16xf32>
    %45 = arith.subf %41, %44 : vector<16x16xf32>
    %46 = math.exp %45 : vector<16x16xf32>
    %cst_16 = arith.constant dense<0.000000e+00> : vector<16xf32>
    %47 = vector.multi_reduction <add>, %46, %cst_16 [1] : vector<16x16xf32> to vector<16xf32>
    %48 = vector.shape_cast %47 : vector<16xf32> to vector<16x1xf32>
    %49 = tpu.reciprocal %48 {approx = true} : vector<16x1xf32> -> vector<16x1xf32>
    %50 = vector.broadcast %49 : vector<16x1xf32> to vector<16x16xf32>
    %51 = arith.mulf %46, %50 : vector<16x16xf32>
    %52 = arith.truncf %51 : vector<16x16xf32> to vector<16x16xbf16>
    %cst_17 = arith.constant dense<0.000000e+00> : vector<16x8xf32>
    %53 = tpu.matmul %52, %37, %cst_17 {dimension_numbers = #tpu.dot_dimension_numbers<[1], [0], [0], [1], [0, 0, 1, 1], [], []>} : vector<16x16xbf16>, vector<16x8xbf16>, vector<16x8xf32> -> vector<16x8xf32>
    %54 = vector.extract_strided_slice %15 {offsets = [0, 16], sizes = [16, 8], strides = [1, 1]} : vector<16x96xbf16> to vector<16x8xbf16>
    %55 = vector.extract_strided_slice %15 {offsets = [0, 48], sizes = [16, 8], strides = [1, 1]} : vector<16x96xbf16> to vector<16x8xbf16>
    %56 = vector.extract_strided_slice %15 {offsets = [0, 80], sizes = [16, 8], strides = [1, 1]} : vector<16x96xbf16> to vector<16x8xbf16>
    %57 = tpu.transpose %55, [1, 0] : vector<16x8xbf16> -> vector<8x16xbf16>
    %cst_18 = arith.constant dense<0.000000e+00> : vector<16x16xf32>
    %58 = tpu.matmul %54, %57, %cst_18 {dimension_numbers = #tpu.dot_dimension_numbers<[1], [0], [0], [1], [0, 0, 1, 1], [], []>} : vector<16x8xbf16>, vector<8x16xbf16>, vector<16x16xf32> -> vector<16x16xf32>
    %cst_19 = arith.constant 0.353553385 : f32
    %59 = vector.broadcast %cst_19 : f32 to vector<16x16xf32>
    %60 = arith.mulf %58, %59 : vector<16x16xf32>
    %cst_20 = arith.constant dense<0xFF800000> : vector<16xf32>
    %61 = vector.multi_reduction <maximumf>, %60, %cst_20 [1] : vector<16x16xf32> to vector<16xf32>
    %62 = vector.shape_cast %61 : vector<16xf32> to vector<16x1xf32>
    %63 = vector.broadcast %62 : vector<16x1xf32> to vector<16x16xf32>
    %64 = arith.subf %60, %63 : vector<16x16xf32>
    %65 = math.exp %64 : vector<16x16xf32>
    %cst_21 = arith.constant dense<0.000000e+00> : vector<16xf32>
    %66 = vector.multi_reduction <add>, %65, %cst_21 [1] : vector<16x16xf32> to vector<16xf32>
    %67 = vector.shape_cast %66 : vector<16xf32> to vector<16x1xf32>
    %68 = tpu.reciprocal %67 {approx = true} : vector<16x1xf32> -> vector<16x1xf32>
    %69 = vector.broadcast %68 : vector<16x1xf32> to vector<16x16xf32>
    %70 = arith.mulf %65, %69 : vector<16x16xf32>
    %71 = arith.truncf %70 : vector<16x16xf32> to vector<16x16xbf16>
    %cst_22 = arith.constant dense<0.000000e+00> : vector<16x8xf32>
    %72 = tpu.matmul %71, %56, %cst_22 {dimension_numbers = #tpu.dot_dimension_numbers<[1], [0], [0], [1], [0, 0, 1, 1], [], []>} : vector<16x16xbf16>, vector<16x8xbf16>, vector<16x8xf32> -> vector<16x8xf32>
    %73 = vector.extract_strided_slice %15 {offsets = [0, 24], sizes = [16, 8], strides = [1, 1]} : vector<16x96xbf16> to vector<16x8xbf16>
    %74 = vector.extract_strided_slice %15 {offsets = [0, 56], sizes = [16, 8], strides = [1, 1]} : vector<16x96xbf16> to vector<16x8xbf16>
    %75 = vector.extract_strided_slice %15 {offsets = [0, 88], sizes = [16, 8], strides = [1, 1]} : vector<16x96xbf16> to vector<16x8xbf16>
    %76 = tpu.transpose %74, [1, 0] : vector<16x8xbf16> -> vector<8x16xbf16>
    %cst_23 = arith.constant dense<0.000000e+00> : vector<16x16xf32>
    %77 = tpu.matmul %73, %76, %cst_23 {dimension_numbers = #tpu.dot_dimension_numbers<[1], [0], [0], [1], [0, 0, 1, 1], [], []>} : vector<16x8xbf16>, vector<8x16xbf16>, vector<16x16xf32> -> vector<16x16xf32>
    %cst_24 = arith.constant 0.353553385 : f32
    %78 = vector.broadcast %cst_24 : f32 to vector<16x16xf32>
    %79 = arith.mulf %77, %78 : vector<16x16xf32>
    %cst_25 = arith.constant dense<0xFF800000> : vector<16xf32>
    %80 = vector.multi_reduction <maximumf>, %79, %cst_25 [1] : vector<16x16xf32> to vector<16xf32>
    %81 = vector.shape_cast %80 : vector<16xf32> to vector<16x1xf32>
    %82 = vector.broadcast %81 : vector<16x1xf32> to vector<16x16xf32>
    %83 = arith.subf %79, %82 : vector<16x16xf32>
    %84 = math.exp %83 : vector<16x16xf32>
    %cst_26 = arith.constant dense<0.000000e+00> : vector<16xf32>
    %85 = vector.multi_reduction <add>, %84, %cst_26 [1] : vector<16x16xf32> to vector<16xf32>
    %86 = vector.shape_cast %85 : vector<16xf32> to vector<16x1xf32>
    %87 = tpu.reciprocal %86 {approx = true} : vector<16x1xf32> -> vector<16x1xf32>
    %88 = vector.broadcast %87 : vector<16x1xf32> to vector<16x16xf32>
    %89 = arith.mulf %84, %88 : vector<16x16xf32>
    %90 = arith.truncf %89 : vector<16x16xf32> to vector<16x16xbf16>
    %cst_27 = arith.constant dense<0.000000e+00> : vector<16x8xf32>
    %91 = tpu.matmul %90, %75, %cst_27 {dimension_numbers = #tpu.dot_dimension_numbers<[1], [0], [0], [1], [0, 0, 1, 1], [], []>} : vector<16x16xbf16>, vector<16x8xbf16>, vector<16x8xf32> -> vector<16x8xf32>
    %92 = tpu.concatenate %34, %53, %72, %91 in 1 : vector<16x8xf32>, vector<16x8xf32>, vector<16x8xf32>, vector<16x8xf32> -> vector<16x32xf32>
    %c0_28 = arith.constant 0 : index
    %c0_29 = arith.constant 0 : index
    %93 = vector.load %arg8[%c0_28, %c0_29] : memref<6x32xf32, #tpu.memory_space<vmem>>, vector<6x32xf32>
    %94 = vector.extract_strided_slice %93 {offsets = [0, 0], sizes = [1, 32], strides = [1, 1]} : vector<6x32xf32> to vector<1x32xf32>
    %95 = vector.broadcast %94 : vector<1x32xf32> to vector<16x32xf32>
    %96 = arith.addf %1, %95 : vector<16x32xf32>
    %97 = arith.truncf %92 : vector<16x32xf32> to vector<16x32xbf16>
    %c0_30 = arith.constant 0 : index
    %c0_31 = arith.constant 0 : index
    %98 = vector.load %arg4[%c0_30, %c0_31] : memref<32x32xbf16, #tpu.memory_space<vmem>>, vector<32x32xbf16>
    %cst_32 = arith.constant dense<0.000000e+00> : vector<16x32xf32>
    %99 = tpu.matmul %97, %98, %cst_32 {dimension_numbers = #tpu.dot_dimension_numbers<[1], [0], [0], [1], [0, 0, 1, 1], [], []>} : vector<16x32xbf16>, vector<32x32xbf16>, vector<16x32xf32> -> vector<16x32xf32>
    %100 = arith.addf %96, %99 : vector<16x32xf32>
    %cst_33 = arith.constant dense<0.000000e+00> : vector<16xf32>
    %101 = vector.multi_reduction <add>, %100, %cst_33 [1] : vector<16x32xf32> to vector<16xf32>
    %102 = vector.shape_cast %101 : vector<16xf32> to vector<16x1xf32>
    %cst_34 = arith.constant 3.200000e+01 : f32
    %103 = vector.broadcast %cst_34 : f32 to vector<16x1xf32>
    %104 = arith.divf %102, %103 : vector<16x1xf32>
    %105 = vector.broadcast %104 : vector<16x1xf32> to vector<16x32xf32>
    %106 = arith.subf %100, %105 : vector<16x32xf32>
    %107 = arith.mulf %106, %106 : vector<16x32xf32>
    %cst_35 = arith.constant dense<0.000000e+00> : vector<16xf32>
    %108 = vector.multi_reduction <add>, %107, %cst_35 [1] : vector<16x32xf32> to vector<16xf32>
    %109 = vector.shape_cast %108 : vector<16xf32> to vector<16x1xf32>
    %cst_36 = arith.constant 3.200000e+01 : f32
    %110 = vector.broadcast %cst_36 : f32 to vector<16x1xf32>
    %111 = arith.divf %109, %110 : vector<16x1xf32>
    %112 = vector.broadcast %104 : vector<16x1xf32> to vector<16x32xf32>
    %113 = arith.subf %100, %112 : vector<16x32xf32>
    %cst_37 = arith.constant 9.99999974E-6 : f32
    %114 = vector.broadcast %cst_37 : f32 to vector<16x1xf32>
    %115 = arith.addf %111, %114 : vector<16x1xf32>
    %116 = math.rsqrt %115 : vector<16x1xf32>
    %117 = vector.broadcast %116 : vector<16x1xf32> to vector<16x32xf32>
    %118 = arith.mulf %113, %117 : vector<16x32xf32>
    %119 = vector.extract_strided_slice %93 {offsets = [1, 0], sizes = [1, 32], strides = [1, 1]} : vector<6x32xf32> to vector<1x32xf32>
    %120 = vector.broadcast %119 : vector<1x32xf32> to vector<16x32xf32>
    %121 = arith.mulf %118, %120 : vector<16x32xf32>
    %122 = vector.extract_strided_slice %93 {offsets = [2, 0], sizes = [1, 32], strides = [1, 1]} : vector<6x32xf32> to vector<1x32xf32>
    %123 = vector.broadcast %122 : vector<1x32xf32> to vector<16x32xf32>
    %124 = arith.addf %121, %123 : vector<16x32xf32>
    %125 = arith.truncf %124 : vector<16x32xf32> to vector<16x32xbf16>
    %c0_38 = arith.constant 0 : index
    %c0_39 = arith.constant 0 : index
    %126 = vector.load %arg5[%c0_38, %c0_39] : memref<32x128xbf16, #tpu.memory_space<vmem>>, vector<32x128xbf16>
    %cst_40 = arith.constant dense<0.000000e+00> : vector<16x128xf32>
    %127 = tpu.matmul %125, %126, %cst_40 {dimension_numbers = #tpu.dot_dimension_numbers<[1], [0], [0], [1], [0, 0, 1, 1], [], []>} : vector<16x32xbf16>, vector<32x128xbf16>, vector<16x128xf32> -> vector<16x128xf32>
    %c0_41 = arith.constant 0 : index
    %c0_42 = arith.constant 0 : index
    %128 = vector.load %arg6[%c0_41, %c0_42] : memref<1x128xf32, #tpu.memory_space<vmem>>, vector<1x128xf32>
    %129 = vector.broadcast %128 : vector<1x128xf32> to vector<16x128xf32>
    %130 = arith.addf %127, %129 : vector<16x128xf32>
    %cst_43 = arith.constant 0.000000e+00 : f32
    %131 = vector.broadcast %cst_43 : f32 to vector<16x128xf32>
    %132 = arith.maximumf %130, %131 : vector<16x128xf32>
    %133 = vector.extract_strided_slice %93 {offsets = [3, 0], sizes = [1, 32], strides = [1, 1]} : vector<6x32xf32> to vector<1x32xf32>
    %134 = vector.broadcast %133 : vector<1x32xf32> to vector<16x32xf32>
    %135 = arith.addf %124, %134 : vector<16x32xf32>
    %136 = arith.truncf %132 : vector<16x128xf32> to vector<16x128xbf16>
    %c0_44 = arith.constant 0 : index
    %c0_45 = arith.constant 0 : index
    %137 = vector.load %arg7[%c0_44, %c0_45] : memref<128x32xbf16, #tpu.memory_space<vmem>>, vector<128x32xbf16>
    %cst_46 = arith.constant dense<0.000000e+00> : vector<16x32xf32>
    %138 = tpu.matmul %136, %137, %cst_46 {dimension_numbers = #tpu.dot_dimension_numbers<[1], [0], [0], [1], [0, 0, 1, 1], [], []>} : vector<16x128xbf16>, vector<128x32xbf16>, vector<16x32xf32> -> vector<16x32xf32>
    %139 = arith.addf %135, %138 : vector<16x32xf32>
    %cst_47 = arith.constant dense<0.000000e+00> : vector<16xf32>
    %140 = vector.multi_reduction <add>, %139, %cst_47 [1] : vector<16x32xf32> to vector<16xf32>
    %141 = vector.shape_cast %140 : vector<16xf32> to vector<16x1xf32>
    %cst_48 = arith.constant 3.200000e+01 : f32
    %142 = vector.broadcast %cst_48 : f32 to vector<16x1xf32>
    %143 = arith.divf %141, %142 : vector<16x1xf32>
    %144 = vector.broadcast %143 : vector<16x1xf32> to vector<16x32xf32>
    %145 = arith.subf %139, %144 : vector<16x32xf32>
    %146 = arith.mulf %145, %145 : vector<16x32xf32>
    %cst_49 = arith.constant dense<0.000000e+00> : vector<16xf32>
    %147 = vector.multi_reduction <add>, %146, %cst_49 [1] : vector<16x32xf32> to vector<16xf32>
    %148 = vector.shape_cast %147 : vector<16xf32> to vector<16x1xf32>
    %cst_50 = arith.constant 3.200000e+01 : f32
    %149 = vector.broadcast %cst_50 : f32 to vector<16x1xf32>
    %150 = arith.divf %148, %149 : vector<16x1xf32>
    %151 = vector.broadcast %143 : vector<16x1xf32> to vector<16x32xf32>
    %152 = arith.subf %139, %151 : vector<16x32xf32>
    %cst_51 = arith.constant 9.99999974E-6 : f32
    %153 = vector.broadcast %cst_51 : f32 to vector<16x1xf32>
    %154 = arith.addf %150, %153 : vector<16x1xf32>
    %155 = math.rsqrt %154 : vector<16x1xf32>
    %156 = vector.broadcast %155 : vector<16x1xf32> to vector<16x32xf32>
    %157 = arith.mulf %152, %156 : vector<16x32xf32>
    %158 = vector.extract_strided_slice %93 {offsets = [4, 0], sizes = [1, 32], strides = [1, 1]} : vector<6x32xf32> to vector<1x32xf32>
    %159 = vector.broadcast %158 : vector<1x32xf32> to vector<16x32xf32>
    %160 = arith.mulf %157, %159 : vector<16x32xf32>
    %161 = vector.extract_strided_slice %93 {offsets = [5, 0], sizes = [1, 32], strides = [1, 1]} : vector<6x32xf32> to vector<1x32xf32>
    %162 = vector.broadcast %161 : vector<1x32xf32> to vector<16x32xf32>
    %163 = arith.addf %160, %162 : vector<16x32xf32>
    %c0_52 = arith.constant 0 : index
    %c0_53 = arith.constant 0 : index
    %c0_54 = arith.constant 0 : index
    %164 = vector.load %arg9[%c0_52, %c0_53, %c0_54] : memref<1x16x32xf32, #tpu.memory_space<vmem>>, vector<1x16x32xf32>
    %165 = vector.shape_cast %164 : vector<1x16x32xf32> to vector<16x32xf32>
    %166 = vector.shape_cast %163 : vector<16x32xf32> to vector<1x16x32xf32>
    tpu.vector_store %arg9[%c0_52, %c0_53, %c0_54], %166 {strides = array<i32>} : memref<1x16x32xf32, #tpu.memory_space<vmem>>, vector<1x16x32xf32>,
    return
  }
  func.func @transform_0(%arg0: i32) -> (i32, i32, i32) {
    %c0_i32 = arith.constant 0 : i32
    %c0_i32_0 = arith.constant 0 : i32
    %c0_i32_1 = arith.constant 0 : i32
    return %arg0, %c0_i32, %c0_i32_0 : i32, i32, i32
  }
  func.func @transform_1(%arg0: i32) -> (i32, i32) {
    %c0_i32 = arith.constant 0 : i32
    %c0_i32_0 = arith.constant 0 : i32
    %c0_i32_1 = arith.constant 0 : i32
    return %c0_i32, %c0_i32_0 : i32, i32
  }
  func.func @transform_2(%arg0: i32) -> (i32, i32) {
    %c0_i32 = arith.constant 0 : i32
    %c0_i32_0 = arith.constant 0 : i32
    %c0_i32_1 = arith.constant 0 : i32
    return %c0_i32, %c0_i32_0 : i32, i32
  }
  func.func @transform_3(%arg0: i32) -> (i32, i32) {
    %c0_i32 = arith.constant 0 : i32
    %c0_i32_0 = arith.constant 0 : i32
    %c0_i32_1 = arith.constant 0 : i32
    return %c0_i32, %c0_i32_0 : i32, i32
  }
  func.func @transform_4(%arg0: i32) -> (i32, i32) {
    %c0_i32 = arith.constant 0 : i32
    %c0_i32_0 = arith.constant 0 : i32
    %c0_i32_1 = arith.constant 0 : i32
    return %c0_i32, %c0_i32_0 : i32, i32
  }
  func.func @transform_5(%arg0: i32) -> (i32, i32) {
    %c0_i32 = arith.constant 0 : i32
    %c0_i32_0 = arith.constant 0 : i32
    %c0_i32_1 = arith.constant 0 : i32
    return %c0_i32, %c0_i32_0 : i32, i32
  }
  func.func @transform_6(%arg0: i32) -> (i32, i32) {
    %c0_i32 = arith.constant 0 : i32
    %c0_i32_0 = arith.constant 0 : i32
    %c0_i32_1 = arith.constant 0 : i32
    return %c0_i32, %c0_i32_0 : i32, i32
  }
  func.func @transform_7(%arg0: i32) -> (i32, i32) {
    %c0_i32 = arith.constant 0 : i32
    %c0_i32_0 = arith.constant 0 : i32
    %c0_i32_1 = arith.constant 0 : i32
    return %c0_i32, %c0_i32_0 : i32, i32
  }
  func.func @transform_8(%arg0: i32) -> (i32, i32, i32) {
    %c0_i32 = arith.constant 0 : i32
    %c0_i32_0 = arith.constant 0 : i32
    %c0_i32_1 = arith.constant 0 : i32
    return %arg0, %c0_i32, %c0_i32_0 : i32, i32, i32
  }
}

module attributes {stable_mosaic.version = 11 : i64} {
  func.func @_cnn_stack_kernel(%arg0: i32, %arg1: memref<1x16x32xf32, #tpu.memory_space<vmem>>, %arg2: memref<96x32xbf16, #tpu.memory_space<vmem>>, %arg3: memref<48x16xbf16, #tpu.memory_space<vmem>>, %arg4: memref<16x2xf32, #tpu.memory_space<vmem>>, %arg5: memref<2x32xf32, #tpu.memory_space<vmem>>, %arg6: memref<1x16x8xf32, #tpu.memory_space<vmem>>) attributes {dimension_semantics = [#tpu.dimension_semantics<parallel>], iteration_bounds = array<i64: 2>, scalar_prefetch = 0 : i64, scratch_operands = 0 : i64, tpu.core_type = #tpu.core_type<tc>, window_params = [{transform_indices = @transform_0, window_bounds = array<i64: 1, 16, 32>}, {pipeline_mode = #tpu.pipeline_mode<synchronous>, transform_indices = @transform_1, window_bounds = array<i64: 96, 32>}, {pipeline_mode = #tpu.pipeline_mode<synchronous>, transform_indices = @transform_2, window_bounds = array<i64: 48, 16>}, {pipeline_mode = #tpu.pipeline_mode<synchronous>, transform_indices = @transform_3, window_bounds = array<i64: 16, 2>}, {pipeline_mode = #tpu.pipeline_mode<synchronous>, transform_indices = @transform_4, window_bounds = array<i64: 2, 32>}, {transform_indices = @transform_5, window_bounds = array<i64: 1, 16, 8>}]} {
    %c0 = arith.constant 0 : index
    %c0_0 = arith.constant 0 : index
    %c0_1 = arith.constant 0 : index
    %0 = vector.load %arg1[%c0, %c0_0, %c0_1] : memref<1x16x32xf32, #tpu.memory_space<vmem>>, vector<1x16x32xf32>
    %1 = vector.shape_cast %0 : vector<1x16x32xf32> to vector<16x32xf32>
    %c0_2 = arith.constant 0 : index
    %c0_3 = arith.constant 0 : index
    %2 = vector.load %arg4[%c0_2, %c0_3] : memref<16x2xf32, #tpu.memory_space<vmem>>, vector<16x2xf32>
    %3 = vector.extract_strided_slice %2 {offsets = [0, 0], sizes = [16, 1], strides = [1, 1]} : vector<16x2xf32> to vector<16x1xf32>
    %4 = vector.extract_strided_slice %2 {offsets = [0, 1], sizes = [16, 1], strides = [1, 1]} : vector<16x2xf32> to vector<16x1xf32>
    %c0_4 = arith.constant 0 : index
    %c0_5 = arith.constant 0 : index
    %5 = vector.load %arg5[%c0_4, %c0_5] : memref<2x32xf32, #tpu.memory_space<vmem>>, vector<2x32xf32>
    %6 = arith.truncf %1 : vector<16x32xf32> to vector<16x32xbf16>
    %cst = arith.constant 0.000000e+00 : bf16
    %7 = vector.broadcast %cst : bf16 to vector<1x32xbf16>
    %8 = vector.extract_strided_slice %6 {offsets = [0, 0], sizes = [15, 32], strides = [1, 1]} : vector<16x32xbf16> to vector<15x32xbf16>
    %9 = tpu.concatenate %7, %8 in 0 : vector<1x32xbf16>, vector<15x32xbf16> -> vector<16x32xbf16>
    %cst_6 = arith.constant 0.000000e+00 : bf16
    %10 = vector.broadcast %cst_6 : bf16 to vector<1x32xbf16>
    %11 = vector.extract_strided_slice %6 {offsets = [1, 0], sizes = [15, 32], strides = [1, 1]} : vector<16x32xbf16> to vector<15x32xbf16>
    %12 = tpu.concatenate %11, %10 in 0 : vector<15x32xbf16>, vector<1x32xbf16> -> vector<16x32xbf16>
    %13 = tpu.concatenate %9, %6, %12 in 1 : vector<16x32xbf16>, vector<16x32xbf16>, vector<16x32xbf16> -> vector<16x96xbf16>
    %c0_7 = arith.constant 0 : index
    %c0_8 = arith.constant 0 : index
    %14 = vector.load %arg2[%c0_7, %c0_8] : memref<96x32xbf16, #tpu.memory_space<vmem>>, vector<96x32xbf16>
    %cst_9 = arith.constant dense<0.000000e+00> : vector<16x32xf32>
    %15 = tpu.matmul %13, %14, %cst_9 {dimension_numbers = #tpu.dot_dimension_numbers<[1], [0], [0], [1], [0, 0, 1, 1], [], []>} : vector<16x96xbf16>, vector<96x32xbf16>, vector<16x32xf32> -> vector<16x32xf32>
    %16 = vector.extract_strided_slice %5 {offsets = [0, 0], sizes = [1, 32], strides = [1, 1]} : vector<2x32xf32> to vector<1x32xf32>
    %17 = vector.broadcast %16 : vector<1x32xf32> to vector<16x32xf32>
    %18 = arith.addf %15, %17 : vector<16x32xf32>
    %19 = vector.broadcast %3 : vector<16x1xf32> to vector<16x32xf32>
    %20 = arith.mulf %18, %19 : vector<16x32xf32>
    %21 = vector.broadcast %4 : vector<16x1xf32> to vector<16x32xf32>
    %22 = arith.addf %20, %21 : vector<16x32xf32>
    %cst_10 = arith.constant 0.000000e+00 : f32
    %23 = vector.broadcast %cst_10 : f32 to vector<16x32xf32>
    %24 = arith.maximumf %22, %23 : vector<16x32xf32>
    %25 = vector.extract_strided_slice %24 {offsets = [0, 0], sizes = [16, 16], strides = [1, 1]} : vector<16x32xf32> to vector<16x16xf32>
    %26 = vector.extract_strided_slice %24 {offsets = [0, 16], sizes = [16, 16], strides = [1, 1]} : vector<16x32xf32> to vector<16x16xf32>
    %27 = arith.maximumf %25, %26 : vector<16x16xf32>
    %28 = arith.truncf %27 : vector<16x16xf32> to vector<16x16xbf16>
    %cst_11 = arith.constant 0.000000e+00 : bf16
    %29 = vector.broadcast %cst_11 : bf16 to vector<1x16xbf16>
    %30 = vector.extract_strided_slice %28 {offsets = [0, 0], sizes = [15, 16], strides = [1, 1]} : vector<16x16xbf16> to vector<15x16xbf16>
    %31 = tpu.concatenate %29, %30 in 0 : vector<1x16xbf16>, vector<15x16xbf16> -> vector<16x16xbf16>
    %cst_12 = arith.constant 0.000000e+00 : bf16
    %32 = vector.broadcast %cst_12 : bf16 to vector<1x16xbf16>
    %33 = vector.extract_strided_slice %28 {offsets = [1, 0], sizes = [15, 16], strides = [1, 1]} : vector<16x16xbf16> to vector<15x16xbf16>
    %34 = tpu.concatenate %33, %32 in 0 : vector<15x16xbf16>, vector<1x16xbf16> -> vector<16x16xbf16>
    %35 = tpu.concatenate %31, %28, %34 in 1 : vector<16x16xbf16>, vector<16x16xbf16>, vector<16x16xbf16> -> vector<16x48xbf16>
    %c0_13 = arith.constant 0 : index
    %c0_14 = arith.constant 0 : index
    %36 = vector.load %arg3[%c0_13, %c0_14] : memref<48x16xbf16, #tpu.memory_space<vmem>>, vector<48x16xbf16>
    %cst_15 = arith.constant dense<0.000000e+00> : vector<16x16xf32>
    %37 = tpu.matmul %35, %36, %cst_15 {dimension_numbers = #tpu.dot_dimension_numbers<[1], [0], [0], [1], [0, 0, 1, 1], [], []>} : vector<16x48xbf16>, vector<48x16xbf16>, vector<16x16xf32> -> vector<16x16xf32>
    %38 = vector.extract_strided_slice %5 {offsets = [1, 0], sizes = [1, 16], strides = [1, 1]} : vector<2x32xf32> to vector<1x16xf32>
    %39 = vector.broadcast %38 : vector<1x16xf32> to vector<16x16xf32>
    %40 = arith.addf %37, %39 : vector<16x16xf32>
    %41 = vector.broadcast %3 : vector<16x1xf32> to vector<16x16xf32>
    %42 = arith.mulf %40, %41 : vector<16x16xf32>
    %43 = vector.broadcast %4 : vector<16x1xf32> to vector<16x16xf32>
    %44 = arith.addf %42, %43 : vector<16x16xf32>
    %cst_16 = arith.constant 0.000000e+00 : f32
    %45 = vector.broadcast %cst_16 : f32 to vector<16x16xf32>
    %46 = arith.maximumf %44, %45 : vector<16x16xf32>
    %47 = vector.extract_strided_slice %46 {offsets = [0, 0], sizes = [16, 8], strides = [1, 1]} : vector<16x16xf32> to vector<16x8xf32>
    %48 = vector.extract_strided_slice %46 {offsets = [0, 8], sizes = [16, 8], strides = [1, 1]} : vector<16x16xf32> to vector<16x8xf32>
    %49 = arith.maximumf %47, %48 : vector<16x8xf32>
    %c0_17 = arith.constant 0 : index
    %c0_18 = arith.constant 0 : index
    %c0_19 = arith.constant 0 : index
    %50 = vector.load %arg6[%c0_17, %c0_18, %c0_19] : memref<1x16x8xf32, #tpu.memory_space<vmem>>, vector<1x16x8xf32>
    %51 = vector.shape_cast %50 : vector<1x16x8xf32> to vector<16x8xf32>
    %52 = vector.shape_cast %49 : vector<16x8xf32> to vector<1x16x8xf32>
    tpu.vector_store %arg6[%c0_17, %c0_18, %c0_19], %52 {strides = array<i32>} : memref<1x16x8xf32, #tpu.memory_space<vmem>>, vector<1x16x8xf32>,
    return
  }
  func.func @transform_0(%arg0: i32) -> (i32, i32, i32) {
    %c0_i32 = arith.constant 0 : i32
    %c0_i32_0 = arith.constant 0 : i32
    %c0_i32_1 = arith.constant 0 : i32
    return %arg0, %c0_i32, %c0_i32_0 : i32, i32, i32
  }
  func.func @transform_1(%arg0: i32) -> (i32, i32) {
    %c0_i32 = arith.constant 0 : i32
    %c0_i32_0 = arith.constant 0 : i32
    %c0_i32_1 = arith.constant 0 : i32
    return %c0_i32, %c0_i32_0 : i32, i32
  }
  func.func @transform_2(%arg0: i32) -> (i32, i32) {
    %c0_i32 = arith.constant 0 : i32
    %c0_i32_0 = arith.constant 0 : i32
    %c0_i32_1 = arith.constant 0 : i32
    return %c0_i32, %c0_i32_0 : i32, i32
  }
  func.func @transform_3(%arg0: i32) -> (i32, i32) {
    %c0_i32 = arith.constant 0 : i32
    %c0_i32_0 = arith.constant 0 : i32
    %c0_i32_1 = arith.constant 0 : i32
    return %c0_i32, %c0_i32_0 : i32, i32
  }
  func.func @transform_4(%arg0: i32) -> (i32, i32) {
    %c0_i32 = arith.constant 0 : i32
    %c0_i32_0 = arith.constant 0 : i32
    %c0_i32_1 = arith.constant 0 : i32
    return %c0_i32, %c0_i32_0 : i32, i32
  }
  func.func @transform_5(%arg0: i32) -> (i32, i32, i32) {
    %c0_i32 = arith.constant 0 : i32
    %c0_i32_0 = arith.constant 0 : i32
    %c0_i32_1 = arith.constant 0 : i32
    return %arg0, %c0_i32, %c0_i32_0 : i32, i32, i32
  }
}

module attributes {stable_mosaic.version = 11 : i64} {
  func.func @_head_kernel(%arg0: i32, %arg1: memref<2x128xf32, #tpu.memory_space<vmem>>, %arg2: memref<128x256xbf16, #tpu.memory_space<vmem>>, %arg3: memref<1x256xf32, #tpu.memory_space<vmem>>, %arg4: memref<256x2xbf16, #tpu.memory_space<vmem>>, %arg5: memref<1x2xf32, #tpu.memory_space<vmem>>, %arg6: memref<2x2xf32, #tpu.memory_space<vmem>>) attributes {dimension_semantics = [#tpu.dimension_semantics<arbitrary>], iteration_bounds = array<i64: 1>, scalar_prefetch = 0 : i64, scratch_operands = 0 : i64, tpu.core_type = #tpu.core_type<tc>, window_params = [{pipeline_mode = #tpu.pipeline_mode<synchronous>, transform_indices = @transform_0, window_bounds = array<i64: 2, 128>}, {pipeline_mode = #tpu.pipeline_mode<synchronous>, transform_indices = @transform_1, window_bounds = array<i64: 128, 256>}, {pipeline_mode = #tpu.pipeline_mode<synchronous>, transform_indices = @transform_2, window_bounds = array<i64: 1, 256>}, {pipeline_mode = #tpu.pipeline_mode<synchronous>, transform_indices = @transform_3, window_bounds = array<i64: 256, 2>}, {pipeline_mode = #tpu.pipeline_mode<synchronous>, transform_indices = @transform_4, window_bounds = array<i64: 1, 2>}, {pipeline_mode = #tpu.pipeline_mode<synchronous>, transform_indices = @transform_5, window_bounds = array<i64: 2, 2>}]} {
    %c0 = arith.constant 0 : index
    %c0_0 = arith.constant 0 : index
    %0 = vector.load %arg1[%c0, %c0_0] : memref<2x128xf32, #tpu.memory_space<vmem>>, vector<2x128xf32>
    %1 = arith.truncf %0 : vector<2x128xf32> to vector<2x128xbf16>
    %c0_1 = arith.constant 0 : index
    %c0_2 = arith.constant 0 : index
    %2 = vector.load %arg2[%c0_1, %c0_2] : memref<128x256xbf16, #tpu.memory_space<vmem>>, vector<128x256xbf16>
    %cst = arith.constant dense<0.000000e+00> : vector<2x256xf32>
    %3 = tpu.matmul %1, %2, %cst {dimension_numbers = #tpu.dot_dimension_numbers<[1], [0], [0], [1], [0, 0, 1, 1], [], []>} : vector<2x128xbf16>, vector<128x256xbf16>, vector<2x256xf32> -> vector<2x256xf32>
    %c0_3 = arith.constant 0 : index
    %c0_4 = arith.constant 0 : index
    %4 = vector.load %arg3[%c0_3, %c0_4] : memref<1x256xf32, #tpu.memory_space<vmem>>, vector<1x256xf32>
    %5 = vector.broadcast %4 : vector<1x256xf32> to vector<2x256xf32>
    %6 = arith.addf %3, %5 : vector<2x256xf32>
    %7 = arith.truncf %6 : vector<2x256xf32> to vector<2x256xbf16>
    %c0_5 = arith.constant 0 : index
    %c0_6 = arith.constant 0 : index
    %8 = vector.load %arg4[%c0_5, %c0_6] : memref<256x2xbf16, #tpu.memory_space<vmem>>, vector<256x2xbf16>
    %cst_7 = arith.constant dense<0.000000e+00> : vector<2x2xf32>
    %9 = tpu.matmul %7, %8, %cst_7 {dimension_numbers = #tpu.dot_dimension_numbers<[1], [0], [0], [1], [0, 0, 1, 1], [], []>} : vector<2x256xbf16>, vector<256x2xbf16>, vector<2x2xf32> -> vector<2x2xf32>
    %c0_8 = arith.constant 0 : index
    %c0_9 = arith.constant 0 : index
    %10 = vector.load %arg5[%c0_8, %c0_9] : memref<1x2xf32, #tpu.memory_space<vmem>>, vector<1x2xf32>
    %11 = vector.broadcast %10 : vector<1x2xf32> to vector<2x2xf32>
    %12 = arith.addf %9, %11 : vector<2x2xf32>
    %c0_10 = arith.constant 0 : index
    %c0_11 = arith.constant 0 : index
    %13 = vector.load %arg6[%c0_10, %c0_11] : memref<2x2xf32, #tpu.memory_space<vmem>>, vector<2x2xf32>
    tpu.vector_store %arg6[%c0_10, %c0_11], %12 {strides = array<i32>} : memref<2x2xf32, #tpu.memory_space<vmem>>, vector<2x2xf32>,
    return
  }
  func.func @transform_0(%arg0: i32) -> (i32, i32) {
    %c0_i32 = arith.constant 0 : i32
    %c0_i32_0 = arith.constant 0 : i32
    %c0_i32_1 = arith.constant 0 : i32
    return %c0_i32, %c0_i32_0 : i32, i32
  }
  func.func @transform_1(%arg0: i32) -> (i32, i32) {
    %c0_i32 = arith.constant 0 : i32
    %c0_i32_0 = arith.constant 0 : i32
    %c0_i32_1 = arith.constant 0 : i32
    return %c0_i32, %c0_i32_0 : i32, i32
  }
  func.func @transform_2(%arg0: i32) -> (i32, i32) {
    %c0_i32 = arith.constant 0 : i32
    %c0_i32_0 = arith.constant 0 : i32
    %c0_i32_1 = arith.constant 0 : i32
    return %c0_i32, %c0_i32_0 : i32, i32
  }
  func.func @transform_3(%arg0: i32) -> (i32, i32) {
    %c0_i32 = arith.constant 0 : i32
    %c0_i32_0 = arith.constant 0 : i32
    %c0_i32_1 = arith.constant 0 : i32
    return %c0_i32, %c0_i32_0 : i32, i32
  }
  func.func @transform_4(%arg0: i32) -> (i32, i32) {
    %c0_i32 = arith.constant 0 : i32
    %c0_i32_0 = arith.constant 0 : i32
    %c0_i32_1 = arith.constant 0 : i32
    return %c0_i32, %c0_i32_0 : i32, i32
  }
  func.func @transform_5(%arg0: i32) -> (i32, i32) {
    %c0_i32 = arith.constant 0 : i32
    %c0_i32_0 = arith.constant 0 : i32
    %c0_i32_1 = arith.constant 0 : i32
    return %c0_i32, %c0_i32_0 : i32, i32
  }
}

</mosaic_0001>

<llo_original>
// kernel: cnn_adformer_forward.5
$region0: #{cnn_adformer_forward.5}
  #allocation0 [shape = 'u32[]', space=smem, size = 0x4, offset = 0x4, fixed_abs, tag = 'smem constant byte address 0x4 - core index']
  #allocation1 [shape = 'u32[144,128]{1,0:T(1,128)}', space=vmem, size = 0x12000, scoped, tag = 'internal scratch']
  %s0 = inlined_call_operand.vmem [shape: f32[2,16,4], index: 0, kind: input, shape index: {}]
  %s1 = inlined_call_operand.vmem [shape: bf16[12,32], index: 1, kind: input, shape index: {}]
  %s2 = inlined_call_operand.vmem [shape: f32[16,32], index: 2, kind: input, shape index: {}]
  %s3 = inlined_call_operand.vmem [shape: f32[2,16,32], index: 3, kind: output, shape index: {}]
  %s4 = sld [smem:[#allocation0]]
  $region45: #{cnn_adformer_forward.5} parent=0
    _
  %s6 = ssub.s32 1, %s4
  %s7 = scalar_select 0, %s6, %s4
  loop: start=0, step=1, limit=4
  $region2: #{cnn_adformer_forward.5} parent=0 // loop_pre_header
    _
  $region3: #{cnn_adformer_forward.5} parent=0 // loop_header
    %s9 = sphi 0, %s13
    %p10 = scmp.ge.s32.totalorder %s9, 4
    %s19 = sphi 0, %s21
    %s22 = sphi 0, %s19
    %s23 = sphi 0, %s22
    %s39 = sphi 0, %s23
    %s43 = sphi 0, %s43
    %s45 = sphi 0, %s43
    %s46 = sphi 0, %s45
    %s60 = sphi 0, %s46
    %s64 = sphi 0, %s64
    %s66 = sphi 0, %s64
    %s67 = sphi 0, %s66
    %s81 = sphi 0, %s67
    %s87 = sphi 0, %s89
    %s90 = sphi 0, %s87
    %s91 = sphi 0, %s90
    %s107 = sphi 0, %s91
  $region4: #{cnn_adformer_forward.5} parent=0 // loop_header_branch
    %12 = sbr.rel (%p10) target = $region8
  $region5: #{cnn_adformer_forward.5} parent=0 // loop_body
    %s14 = ssub.s32 %s9, 1
    %s15 = ssub.s32 %s9, 2
    %s16 = sadd.s32 %s9, 1
    %s17 = ssub.s32 %s9, %s16
    %p18 = scmp.eq.s32.totalorder %s17, 0
    %s20 = sadd.s32 %s19, 1
    %s21 = scalar_select %p18, %s19, %s20
    %p24 = pneg %p18
    %p25 = scmp.eq.s32.totalorder %s9, 1
    %p26 = por %p24, %p25
    %p27 = scmp.ne.s32.totalorder %s19, %s22
    %p28 = scmp.eq.s32.totalorder %s9, 0
    %p29 = por %p27, %p28
    %p30 = scmp.ne.s32.totalorder %s19, %s22
    %p31 = scmp.eq.s32.totalorder %s14, 1
    %p32 = por %p30, %p31
    %p33 = scmp.ne.s32.totalorder %s22, %s23
    %p34 = scmp.eq.s32.totalorder %s14, 0
    %p35 = por %p33, %p34
    %p36 = scmp.ne.s32.totalorder %s22, %s23
    %p37 = scmp.eq.s32.totalorder %s15, 1
    %p38 = por %p36, %p37
    %p40 = scmp.ne.s32.totalorder %s23, %s39
    %p41 = scmp.eq.s32.totalorder %s15, 0
    %p42 = por %p40, %p41
    %s44 = sadd.s32 %s43, 1
    %p47 = scmp.eq.s32.totalorder %s9, 1
    %p48 = scmp.ne.s32.totalorder %s43, %s45
    %p49 = scmp.eq.s32.totalorder %s9, 0
    %p50 = por %p48, %p49
    %p51 = scmp.ne.s32.totalorder %s43, %s45
    %p52 = scmp.eq.s32.totalorder %s14, 1
    %p53 = por %p51, %p52
    %p54 = scmp.ne.s32.totalorder %s45, %s46
    %p55 = scmp.eq.s32.totalorder %s14, 0
    %p56 = por %p54, %p55
    %p57 = scmp.ne.s32.totalorder %s45, %s46
    %p58 = scmp.eq.s32.totalorder %s15, 1
    %p59 = por %p57, %p58
    %p61 = scmp.ne.s32.totalorder %s46, %s60
    %p62 = scmp.eq.s32.totalorder %s15, 0
    %p63 = por %p61, %p62
    %s65 = sadd.s32 %s64, 1
    %p68 = scmp.eq.s32.totalorder %s9, 1
    %p69 = scmp.ne.s32.totalorder %s64, %s66
    %p70 = scmp.eq.s32.totalorder %s9, 0
    %p71 = por %p69, %p70
    %p72 = scmp.ne.s32.totalorder %s64, %s66
    %p73 = scmp.eq.s32.totalorder %s14, 1
    %p74 = por %p72, %p73
    %p75 = scmp.ne.s32.totalorder %s66, %s67
    %p76 = scmp.eq.s32.totalorder %s14, 0
    %p77 = por %p75, %p76
    %p78 = scmp.ne.s32.totalorder %s66, %s67
    %p79 = scmp.eq.s32.totalorder %s15, 1
    %p80 = por %p78, %p79
    %p82 = scmp.ne.s32.totalorder %s67, %s81
    %p83 = scmp.eq.s32.totalorder %s15, 0
    %p84 = por %p82, %p83
    %s85 = ssub.s32 %s9, %s16
    %p86 = scmp.eq.s32.totalorder %s85, 0
    %s88 = sadd.s32 %s87, 1
    %s89 = scalar_select %p86, %s87, %s88
    %p92 = pneg %p86
    %p93 = scmp.eq.s32.totalorder %s9, 1
    %p94 = por %p92, %p93
    %p95 = scmp.ne.s32.totalorder %s87, %s90
    %p96 = scmp.eq.s32.totalorder %s9, 0
    %p97 = por %p95, %p96
    %p98 = scmp.ne.s32.totalorder %s87, %s90
    %p99 = scmp.eq.s32.totalorder %s14, 1
    %p100 = por %p98, %p99
    %p101 = scmp.ne.s32.totalorder %s90, %s91
    %p102 = scmp.eq.s32.totalorder %s14, 0
    %p103 = por %p101, %p102
    %p104 = scmp.ne.s32.totalorder %s90, %s91
    %p105 = scmp.eq.s32.totalorder %s15, 1
    %p106 = por %p104, %p105
    %p108 = scmp.ne.s32.totalorder %s91, %s107
    %p109 = scmp.eq.s32.totalorder %s15, 0
    %p110 = por %p108, %p109
    %p111 = scmp.le.s32.totalorder 1, %s9
    %p112 = scmp.lt.s32.totalorder %s9, 3
    %p113 = pnand %p111, %p112
    %p114 = pneg %p113
    // Predicated region
    $region9: #{cnn_adformer_forward.5} parent=5 // pred_check
      _
    $region10: #{cnn_adformer_forward.5} parent=5 // pred_check_branch
      %116 = sbr.rel (%p113) target = $region12
    $region11: #{cnn_adformer_forward.5} parent=5 // pred_region
      %s117 = ssub.s32 %s9, 1
      // Predicated region
      $region13: #{cnn_adformer_forward.5} parent=11 // pred_check
        %p118 = pneg %p56
      $region14: #{cnn_adformer_forward.5} parent=11 // pred_check_branch
        %120 = sbr.rel (%p118) target = $region16
      $region15: #{cnn_adformer_forward.5} parent=11 // pred_region
        _
      $region16: #{cnn_adformer_forward.5} parent=11 // pred_fallthru
        _
      // Predicated region
      $region17: #{cnn_adformer_forward.5} parent=11 // pred_check
        %p121 = pneg %p77
      $region18: #{cnn_adformer_forward.5} parent=11 // pred_check_branch
        %123 = sbr.rel (%p121) target = $region20
      $region19: #{cnn_adformer_forward.5} parent=11 // pred_region
        _
      $region20: #{cnn_adformer_forward.5} parent=11 // pred_fallthru
        _
    $region12: #{cnn_adformer_forward.5} parent=5 // pred_fallthru
      _
    %p124 = scmp.lt.s32.totalorder %s9, 2
    // Predicated region
    $region21: #{cnn_adformer_forward.5} parent=5 // pred_check
      %p125 = pneg %p124
    $region22: #{cnn_adformer_forward.5} parent=5 // pred_check_branch
      %127 = sbr.rel (%p125) target = $region24
    $region23: #{cnn_adformer_forward.5} parent=5 // pred_region
      // Predicated region
      $region25: #{cnn_adformer_forward.5} parent=23 // pred_check
        %p128 = pneg %p29
      $region26: #{cnn_adformer_forward.5} parent=23 // pred_check_branch
        %130 = sbr.rel (%p128) target = $region28
      $region27: #{cnn_adformer_forward.5} parent=23 // pred_region
        %p131 = scmp.lt.s32.totalorder %s9, 1
        %s132 = scalar_select %p131, %s9, 1
        %s133 = smul.addr %s132, 2
        %s134 = smul.addr %s133, 8
        %s135 = scalar_lea.vmem %s0, %s134
      $region28: #{cnn_adformer_forward.5} parent=23 // pred_fallthru
        _
    $region24: #{cnn_adformer_forward.5} parent=5 // pred_fallthru
      _
    %p136 = scmp.le.s32.totalorder 1, %s9
    %p137 = scmp.lt.s32.totalorder %s9, 3
    %p138 = pnand %p136, %p137
    %p139 = pneg %p138
    // Predicated region
    $region29: #{cnn_adformer_forward.5} parent=5 // pred_check
      _
    $region30: #{cnn_adformer_forward.5} parent=5 // pred_check_branch
      %141 = sbr.rel (%p138) target = $region32
    $region31: #{cnn_adformer_forward.5} parent=5 // pred_region
      %s142 = ssub.s32 %s9, 1
      %p143 = scmp.lt.s32.totalorder %s14, 1
      %s144 = scalar_select %p143, %s14, 1
      %s145 = smul.addr %s144, 2
      %s146 = smul.addr %s145, 8
      %s147 = scalar_lea.vmem %s0, %s146
      %p148 = pneg %p35
      %p149 = pneg %p32
      %p150 = pneg %p56
      %p151 = pneg %p53
      %p152 = pneg %p77
      %p153 = pneg %p74
      %p154 = pneg %p103
      %p155 = pneg %p100
      %p156 = scmp.lt.s32.totalorder %s14, 1
      %s157 = scalar_select %p156, %s14, 1
      %s158 = smul.addr %s157, 2
      %s159 = smul.addr %s158, 8
      %s160 = scalar_lea.vmem %s3, %s159
      %p161 = scmp.lt.s32.totalorder %s14, 1
      %s162 = scalar_select %p161, %s14, 1
      %s163 = smul.addr %s162, 2
      %s164 = smul.addr %s163, 8
      %s165 = scalar_lea.vmem %s0, %s164
      %p166 = scmp.lt.s32.totalorder %s14, 1
      %s167 = scalar_select %p166, %s14, 1
      %s168 = smul.addr %s167, 2
      %s169 = smul.addr %s168, 8
      %s170 = scalar_lea.vmem %s3, %s169
      %v172 = vld [vmem:[%s165] sm:$0xff]
      %v173 = vld [vmem:[%s165 + $0x8] sm:$0xff]
      %v174 = vpack.c.bf16 %v173, %v172
      %v176 = vshrl.u32 %v174, 16
      %v178 = vrot.slane %v176, 7
      %v180 = vshll.u32 %v174, 16
      %v182 = vor.u32 %v178, %v180
      %vm184 = vcmask 1040384
      %vm185 = vsmask.f32 256
      %vm186 = vmand %vm184, %vm185
      %v187 = vsel %vm186, %v178, %v182
      %v188 = vrot.slane %v180, 1
      %v189 = vor.u32 %v176, %v188
      %vm192 = vcmask 1047552
      %vm193 = vsmask.f32 7424
      %vm194 = vmand %vm192, %vm193
      %v195 = vsel %vm194, %v189, %v188
      %197 = vrot.lane.b32.xlu0 %v174, 4
      %v198 = vpop.permute.xlu0 %197
      %200 = vrot.lane.b32.xlu0 %v195, 8
      %v201 = vpop.permute.xlu0 %200
      %vm202 = vcmask 31744
      %v205 = vsel %vm202, %v187, %v198
      %vm206 = vcmask 64512
      %v208 = vsel %vm206, %v205, %v201
      %v209 = vld [vmem:[%s2] sm:$0xff]
      %v210 = vld [vmem:[%s2 + $0x8] sm:$0xff]
      %v211 = vld [vmem:[%s1] sm:$0xf]
      %v212 = vld [vmem:[%s1 + $0x4] sm:$0x3]
      %v215 = vunpack.c.l.b16 %v211
      %v216 = vunpack.c.l.b16 %v212
      %v217 = vpack.c.b16 %v216, %v215
      %vm218 = vcmask 97280
      %v219 = vsel %vm218, %v208, 0
      %vm221 = vcmask 1045504
      %v223 = vsel %vm221, %v217, 0
      %225 = vmatprep.subr.bf16.mxu0 0
      %226 = vmatpush1.bf16.msra.mxu0 %v223
      %227 = vmatprep.subr.bf16.mxu0 0
      %228 = vmatpush1.bf16.msra.mxu0 0
      %229 = vmatprep.subr.bf16.mxu0 0
      %230 = vmatpush1.bf16.msra.mxu0 0
      %231 = vmatprep.subr.bf16.mxu0 0
      %232 = vmatpush1.bf16.msra.mxu0 0
      %233 = vmatprep.subr.bf16.mxu0 0
      %234 = vmatpush1.bf16.msra.mxu0 0
      %235 = vmatprep.subr.bf16.mxu0 0
      %236 = vmatpush1.bf16.msra.mxu0 0
      %237 = vmatprep.subr.bf16.mxu0 0
      %238 = vmatpush1.bf16.msra.mxu0 0
      %239 = vmatprep.subr.bf16.mxu0 0
      %240 = vmatpush1.bf16.msra.mxu0 0
      %241 = vmatprep.subr.bf16.mxu0 0
      %242 = vmatpush1.bf16.msra.mxu0 0
      %243 = vmatprep.subr.bf16.mxu0 0
      %244 = vmatpush1.bf16.msra.mxu0 0
      %245 = vmatprep.subr.bf16.mxu0 0
      %246 = vmatpush1.bf16.msra.mxu0 0
      %247 = vmatprep.subr.bf16.mxu0 0
      %248 = vmatpush1.bf16.msra.mxu0 0
      %249 = vmatprep.subr.bf16.mxu0 0
      %250 = vmatpush1.bf16.msra.mxu0 0
      %251 = vmatprep.subr.bf16.mxu0 0
      %252 = vmatpush1.bf16.msra.mxu0 0
      %253 = vmatprep.subr.bf16.mxu0 0
      %254 = vmatpush1.bf16.msra.mxu0 0
      %255 = vmatprep.subr.bf16.mxu0 0
      %256 = vmatpush1.bf16.msra.mxu0 0
      %257 = vmatprep.mubr.bf16.mxu0 0
      %258 = vmatmul.mubr.bf16.gmra.mrb[0].mxu0 %v219
      %v259 = vpop.f32.mrb[0].mxu0
      %v260 = vadd.f32 0.0, %v259
      %v261 = vpop.f32.mrb[0].mxu0
      %v262 = vpop.f32.mrb[0].mxu0
      %v263 = vadd.f32 0.0, %v262
      %v264 = vpop.f32.mrb[0].mxu0
      %265 = vdwg.mxu0
      %v266 = vadd.f32 %v209, %v260
      %v267 = vadd.f32 %v210, %v263
      %vm268 = vcmask 261120
      %269 = vst.msk [vmem:[%s170] sm:$0xff] %vm268, %v266
      %270 = vst.msk [vmem:[%s170 + $0x8] sm:$0xff] %vm268, %v267
      %p271 = scmp.lt.s32.totalorder %s14, 1
      %s272 = scalar_select %p271, %s14, 1
      %s273 = smul.addr %s272, 2
      %s274 = smul.addr %s273, 8
      %s275 = scalar_lea.vmem %s3, %s274
      // Predicated region
      $region33: #{cnn_adformer_forward.5} parent=31 // pred_check
        %p276 = pneg %p100
      $region34: #{cnn_adformer_forward.5} parent=31 // pred_check_branch
        %278 = sbr.rel (%p276) target = $region36
      $region35: #{cnn_adformer_forward.5} parent=31 // pred_region
        _
      $region36: #{cnn_adformer_forward.5} parent=31 // pred_fallthru
        _
    $region32: #{cnn_adformer_forward.5} parent=5 // pred_fallthru
      _
    %p279 = scmp.le.s32.totalorder 2, %s9
    // Predicated region
    $region37: #{cnn_adformer_forward.5} parent=5 // pred_check
      %p280 = pneg %p279
    $region38: #{cnn_adformer_forward.5} parent=5 // pred_check_branch
      %282 = sbr.rel (%p280) target = $region40
    $region39: #{cnn_adformer_forward.5} parent=5 // pred_region
      %s283 = ssub.s32 %s9, 2
      // Predicated region
      $region41: #{cnn_adformer_forward.5} parent=39 // pred_check
        %p284 = pneg %p106
      $region42: #{cnn_adformer_forward.5} parent=39 // pred_check_branch
        %286 = sbr.rel (%p284) target = $region44
      $region43: #{cnn_adformer_forward.5} parent=39 // pred_region
        %p287 = scmp.lt.s32.totalorder %s15, 1
        %s288 = scalar_select %p287, %s15, 1
        %s289 = smul.addr %s288, 2
        %s290 = smul.addr %s289, 8
        %s291 = scalar_lea.vmem %s3, %s290
      $region44: #{cnn_adformer_forward.5} parent=39 // pred_fallthru
        _
    $region40: #{cnn_adformer_forward.5} parent=5 // pred_fallthru
      _
  $region6: #{cnn_adformer_forward.5} parent=0 // loop_footer
    %s13 = sadd.s32 1, %s9
  $region7: #{cnn_adformer_forward.5} parent=0 // loop_footer_branch
    %8 = sbr.rel target = $region3
  $region8: #{cnn_adformer_forward.5} parent=0 // loop_exit
    _

// kernel: cnn_adformer_forward.6
$region0: #{cnn_adformer_forward.6}
  #allocation0 [shape = 'u32[]', space=smem, size = 0x4, offset = 0x4, fixed_abs, tag = 'smem constant byte address 0x4 - core index']
  #allocation1 [shape = 'u32[144,128]{1,0:T(1,128)}', space=vmem, size = 0x12000, scoped, tag = 'internal scratch']
  %s0 = inlined_call_operand.vmem [shape: f32[2,16,32], index: 0, kind: input, shape index: {}]
  %s1 = inlined_call_operand.vmem [shape: bf16[96,96], index: 1, kind: input, shape index: {}]
  %s2 = inlined_call_operand.vmem [shape: f32[1,96], index: 2, kind: input, shape index: {}]
  %s3 = inlined_call_operand.vmem [shape: bf16[32,32], index: 3, kind: input, shape index: {}]
  %s4 = inlined_call_operand.vmem [shape: bf16[32,128], index: 4, kind: input, shape index: {}]
  %s5 = inlined_call_operand.vmem [shape: f32[1,128], index: 5, kind: input, shape index: {}]
  %s6 = inlined_call_operand.vmem [shape: bf16[128,32], index: 6, kind: input, shape index: {}]
  %s7 = inlined_call_operand.vmem [shape: f32[6,32], index: 7, kind: input, shape index: {}]
  %s8 = inlined_call_operand.vmem [shape: f32[2,16,32], index: 8, kind: output, shape index: {}]
  %s9 = sld [smem:[#allocation0]]
  $region65: #{cnn_adformer_forward.6} parent=0
    _
  %s11 = ssub.s32 1, %s9
  %s12 = scalar_select 0, %s11, %s9
  loop: start=0, step=1, limit=4
  $region2: #{cnn_adformer_forward.6} parent=0 // loop_pre_header
    _
  $region3: #{cnn_adformer_forward.6} parent=0 // loop_header
    %s14 = sphi 0, %s18
    %p15 = scmp.ge.s32.totalorder %s14, 4
    %s24 = sphi 0, %s26
    %s27 = sphi 0, %s24
    %s28 = sphi 0, %s27
    %s44 = sphi 0, %s28
    %s48 = sphi 0, %s48
    %s50 = sphi 0, %s48
    %s51 = sphi 0, %s50
    %s65 = sphi 0, %s51
    %s69 = sphi 0, %s69
    %s71 = sphi 0, %s69
    %s72 = sphi 0, %s71
    %s86 = sphi 0, %s72
    %s90 = sphi 0, %s90
    %s92 = sphi 0, %s90
    %s93 = sphi 0, %s92
    %s107 = sphi 0, %s93
    %s111 = sphi 0, %s111
    %s113 = sphi 0, %s111
    %s114 = sphi 0, %s113
    %s128 = sphi 0, %s114
    %s132 = sphi 0, %s132
    %s134 = sphi 0, %s132
    %s135 = sphi 0, %s134
    %s149 = sphi 0, %s135
    %s153 = sphi 0, %s153
    %s155 = sphi 0, %s153
    %s156 = sphi 0, %s155
    %s170 = sphi 0, %s156
    %s174 = sphi 0, %s174
    %s176 = sphi 0, %s174
    %s177 = sphi 0, %s176
    %s191 = sphi 0, %s177
    %s197 = sphi 0, %s199
    %s200 = sphi 0, %s197
    %s201 = sphi 0, %s200
    %s217 = sphi 0, %s201
  $region4: #{cnn_adformer_forward.6} parent=0 // loop_header_branch
    %17 = sbr.rel (%p15) target = $region8
  $region5: #{cnn_adformer_forward.6} parent=0 // loop_body
    %s19 = ssub.s32 %s14, 1
    %s20 = ssub.s32 %s14, 2
    %s21 = sadd.s32 %s14, 1
    %s22 = ssub.s32 %s14, %s21
    %p23 = scmp.eq.s32.totalorder %s22, 0
    %s25 = sadd.s32 %s24, 1
    %s26 = scalar_select %p23, %s24, %s25
    %p29 = pneg %p23
    %p30 = scmp.eq.s32.totalorder %s14, 1
    %p31 = por %p29, %p30
    %p32 = scmp.ne.s32.totalorder %s24, %s27
    %p33 = scmp.eq.s32.totalorder %s14, 0
    %p34 = por %p32, %p33
    %p35 = scmp.ne.s32.totalorder %s24, %s27
    %p36 = scmp.eq.s32.totalorder %s19, 1
    %p37 = por %p35, %p36
    %p38 = scmp.ne.s32.totalorder %s27, %s28
    %p39 = scmp.eq.s32.totalorder %s19, 0
    %p40 = por %p38, %p39
    %p41 = scmp.ne.s32.totalorder %s27, %s28
    %p42 = scmp.eq.s32.totalorder %s20, 1
    %p43 = por %p41, %p42
    %p45 = scmp.ne.s32.totalorder %s28, %s44
    %p46 = scmp.eq.s32.totalorder %s20, 0
    %p47 = por %p45, %p46
    %s49 = sadd.s32 %s48, 1
    %p52 = scmp.eq.s32.totalorder %s14, 1
    %p53 = scmp.ne.s32.totalorder %s48, %s50
    %p54 = scmp.eq.s32.totalorder %s14, 0
    %p55 = por %p53, %p54
    %p56 = scmp.ne.s32.totalorder %s48, %s50
    %p57 = scmp.eq.s32.totalorder %s19, 1
    %p58 = por %p56, %p57
    %p59 = scmp.ne.s32.totalorder %s50, %s51
    %p60 = scmp.eq.s32.totalorder %s19, 0
    %p61 = por %p59, %p60
    %p62 = scmp.ne.s32.totalorder %s50, %s51
    %p63 = scmp.eq.s32.totalorder %s20, 1
    %p64 = por %p62, %p63
    %p66 = scmp.ne.s32.totalorder %s51, %s65
    %p67 = scmp.eq.s32.totalorder %s20, 0
    %p68 = por %p66, %p67
    %s70 = sadd.s32 %s69, 1
    %p73 = scmp.eq.s32.totalorder %s14, 1
    %p74 = scmp.ne.s32.totalorder %s69, %s71
    %p75 = scmp.eq.s32.totalorder %s14, 0
    %p76 = por %p74, %p75
    %p77 = scmp.ne.s32.totalorder %s69, %s71
    %p78 = scmp.eq.s32.totalorder %s19, 1
    %p79 = por %p77, %p78
    %p80 = scmp.ne.s32.totalorder %s71, %s72
    %p81 = scmp.eq.s32.totalorder %s19, 0
    %p82 = por %p80, %p81
    %p83 = scmp.ne.s32.totalorder %s71, %s72
    %p84 = scmp.eq.s32.totalorder %s20, 1
    %p85 = por %p83, %p84
    %p87 = scmp.ne.s32.totalorder %s72, %s86
    %p88 = scmp.eq.s32.totalorder %s20, 0
    %p89 = por %p87, %p88
    %s91 = sadd.s32 %s90, 1
    %p94 = scmp.eq.s32.totalorder %s14, 1
    %p95 = scmp.ne.s32.totalorder %s90, %s92
    %p96 = scmp.eq.s32.totalorder %s14, 0
    %p97 = por %p95, %p96
    %p98 = scmp.ne.s32.totalorder %s90, %s92
    %p99 = scmp.eq.s32.totalorder %s19, 1
    %p100 = por %p98, %p99
    %p101 = scmp.ne.s32.totalorder %s92, %s93
    %p102 = scmp.eq.s32.totalorder %s19, 0
    %p103 = por %p101, %p102
    %p104 = scmp.ne.s32.totalorder %s92, %s93
    %p105 = scmp.eq.s32.totalorder %s20, 1
    %p106 = por %p104, %p105
    %p108 = scmp.ne.s32.totalorder %s93, %s107
    %p109 = scmp.eq.s32.totalorder %s20, 0
    %p110 = por %p108, %p109
    %s112 = sadd.s32 %s111, 1
    %p115 = scmp.eq.s32.totalorder %s14, 1
    %p116 = scmp.ne.s32.totalorder %s111, %s113
    %p117 = scmp.eq.s32.totalorder %s14, 0
    %p118 = por %p116, %p117
    %p119 = scmp.ne.s32.totalorder %s111, %s113
    %p120 = scmp.eq.s32.totalorder %s19, 1
    %p121 = por %p119, %p120
    %p122 = scmp.ne.s32.totalorder %s113, %s114
    %p123 = scmp.eq.s32.totalorder %s19, 0
    %p124 = por %p122, %p123
    %p125 = scmp.ne.s32.totalorder %s113, %s114
    %p126 = scmp.eq.s32.totalorder %s20, 1
    %p127 = por %p125, %p126
    %p129 = scmp.ne.s32.totalorder %s114, %s128
    %p130 = scmp.eq.s32.totalorder %s20, 0
    %p131 = por %p129, %p130
    %s133 = sadd.s32 %s132, 1
    %p136 = scmp.eq.s32.totalorder %s14, 1
    %p137 = scmp.ne.s32.totalorder %s132, %s134
    %p138 = scmp.eq.s32.totalorder %s14, 0
    %p139 = por %p137, %p138
    %p140 = scmp.ne.s32.totalorder %s132, %s134
    %p141 = scmp.eq.s32.totalorder %s19, 1
    %p142 = por %p140, %p141
    %p143 = scmp.ne.s32.totalorder %s134, %s135
    %p144 = scmp.eq.s32.totalorder %s19, 0
    %p145 = por %p143, %p144
    %p146 = scmp.ne.s32.totalorder %s134, %s135
    %p147 = scmp.eq.s32.totalorder %s20, 1
    %p148 = por %p146, %p147
    %p150 = scmp.ne.s32.totalorder %s135, %s149
    %p151 = scmp.eq.s32.totalorder %s20, 0
    %p152 = por %p150, %p151
    %s154 = sadd.s32 %s153, 1
    %p157 = scmp.eq.s32.totalorder %s14, 1
    %p158 = scmp.ne.s32.totalorder %s153, %s155
    %p159 = scmp.eq.s32.totalorder %s14, 0
    %p160 = por %p158, %p159
    %p161 = scmp.ne.s32.totalorder %s153, %s155
    %p162 = scmp.eq.s32.totalorder %s19, 1
    %p163 = por %p161, %p162
    %p164 = scmp.ne.s32.totalorder %s155, %s156
    %p165 = scmp.eq.s32.totalorder %s19, 0
    %p166 = por %p164, %p165
    %p167 = scmp.ne.s32.totalorder %s155, %s156
    %p168 = scmp.eq.s32.totalorder %s20, 1
    %p169 = por %p167, %p168
    %p171 = scmp.ne.s32.totalorder %s156, %s170
    %p172 = scmp.eq.s32.totalorder %s20, 0
    %p173 = por %p171, %p172
    %s175 = sadd.s32 %s174, 1
    %p178 = scmp.eq.s32.totalorder %s14, 1
    %p179 = scmp.ne.s32.totalorder %s174, %s176
    %p180 = scmp.eq.s32.totalorder %s14, 0
    %p181 = por %p179, %p180
    %p182 = scmp.ne.s32.totalorder %s174, %s176
    %p183 = scmp.eq.s32.totalorder %s19, 1
    %p184 = por %p182, %p183
    %p185 = scmp.ne.s32.totalorder %s176, %s177
    %p186 = scmp.eq.s32.totalorder %s19, 0
    %p187 = por %p185, %p186
    %p188 = scmp.ne.s32.totalorder %s176, %s177
    %p189 = scmp.eq.s32.totalorder %s20, 1
    %p190 = por %p188, %p189
    %p192 = scmp.ne.s32.totalorder %s177, %s191
    %p193 = scmp.eq.s32.totalorder %s20, 0
    %p194 = por %p192, %p193
    %s195 = ssub.s32 %s14, %s21
    %p196 = scmp.eq.s32.totalorder %s195, 0
    %s198 = sadd.s32 %s197, 1
    %s199 = scalar_select %p196, %s197, %s198
    %p202 = pneg %p196
    %p203 = scmp.eq.s32.totalorder %s14, 1
    %p204 = por %p202, %p203
    %p205 = scmp.ne.s32.totalorder %s197, %s200
    %p206 = scmp.eq.s32.totalorder %s14, 0
    %p207 = por %p205, %p206
    %p208 = scmp.ne.s32.totalorder %s197, %s200
    %p209 = scmp.eq.s32.totalorder %s19, 1
    %p210 = por %p208, %p209
    %p211 = scmp.ne.s32.totalorder %s200, %s201
    %p212 = scmp.eq.s32.totalorder %s19, 0
    %p213 = por %p211, %p212
    %p214 = scmp.ne.s32.totalorder %s200, %s201
    %p215 = scmp.eq.s32.totalorder %s20, 1
    %p216 = por %p214, %p215
    %p218 = scmp.ne.s32.totalorder %s201, %s217
    %p219 = scmp.eq.s32.totalorder %s20, 0
    %p220 = por %p218, %p219
    %p221 = scmp.le.s32.totalorder 1, %s14
    %p222 = scmp.lt.s32.totalorder %s14, 3
    %p223 = pnand %p221, %p222
    %p224 = pneg %p223
    // Predicated region
    $region9: #{cnn_adformer_forward.6} parent=5 // pred_check
      _
    $region10: #{cnn_adformer_forward.6} parent=5 // pred_check_branch
      %226 = sbr.rel (%p223) target = $region12
    $region11: #{cnn_adformer_forward.6} parent=5 // pred_region
      %s227 = ssub.s32 %s14, 1
      // Predicated region
      $region13: #{cnn_adformer_forward.6} parent=11 // pred_check
        %p228 = pneg %p61
      $region14: #{cnn_adformer_forward.6} parent=11 // pred_check_branch
        %230 = sbr.rel (%p228) target = $region16
      $region15: #{cnn_adformer_forward.6} parent=11 // pred_region
        _
      $region16: #{cnn_adformer_forward.6} parent=11 // pred_fallthru
        _
      // Predicated region
      $region17: #{cnn_adformer_forward.6} parent=11 // pred_check
        %p231 = pneg %p82
      $region18: #{cnn_adformer_forward.6} parent=11 // pred_check_branch
        %233 = sbr.rel (%p231) target = $region20
      $region19: #{cnn_adformer_forward.6} parent=11 // pred_region
        _
      $region20: #{cnn_adformer_forward.6} parent=11 // pred_fallthru
        _
      // Predicated region
      $region21: #{cnn_adformer_forward.6} parent=11 // pred_check
        %p234 = pneg %p103
      $region22: #{cnn_adformer_forward.6} parent=11 // pred_check_branch
        %236 = sbr.rel (%p234) target = $region24
      $region23: #{cnn_adformer_forward.6} parent=11 // pred_region
        _
      $region24: #{cnn_adformer_forward.6} parent=11 // pred_fallthru
        _
      // Predicated region
      $region25: #{cnn_adformer_forward.6} parent=11 // pred_check
        %p237 = pneg %p124
      $region26: #{cnn_adformer_forward.6} parent=11 // pred_check_branch
        %239 = sbr.rel (%p237) target = $region28
      $region27: #{cnn_adformer_forward.6} parent=11 // pred_region
        _
      $region28: #{cnn_adformer_forward.6} parent=11 // pred_fallthru
        _
      // Predicated region
      $region29: #{cnn_adformer_forward.6} parent=11 // pred_check
        %p240 = pneg %p145
      $region30: #{cnn_adformer_forward.6} parent=11 // pred_check_branch
        %242 = sbr.rel (%p240) target = $region32
      $region31: #{cnn_adformer_forward.6} parent=11 // pred_region
        _
      $region32: #{cnn_adformer_forward.6} parent=11 // pred_fallthru
        _
      // Predicated region
      $region33: #{cnn_adformer_forward.6} parent=11 // pred_check
        %p243 = pneg %p166
      $region34: #{cnn_adformer_forward.6} parent=11 // pred_check_branch
        %245 = sbr.rel (%p243) target = $region36
      $region35: #{cnn_adformer_forward.6} parent=11 // pred_region
        _
      $region36: #{cnn_adformer_forward.6} parent=11 // pred_fallthru
        _
      // Predicated region
      $region37: #{cnn_adformer_forward.6} parent=11 // pred_check
        %p246 = pneg %p187
      $region38: #{cnn_adformer_forward.6} parent=11 // pred_check_branch
        %248 = sbr.rel (%p246) target = $region40
      $region39: #{cnn_adformer_forward.6} parent=11 // pred_region
        _
      $region40: #{cnn_adformer_forward.6} parent=11 // pred_fallthru
        _
    $region12: #{cnn_adformer_forward.6} parent=5 // pred_fallthru
      _
    %p249 = scmp.lt.s32.totalorder %s14, 2
    // Predicated region
    $region41: #{cnn_adformer_forward.6} parent=5 // pred_check
      %p250 = pneg %p249
    $region42: #{cnn_adformer_forward.6} parent=5 // pred_check_branch
      %252 = sbr.rel (%p250) target = $region44
    $region43: #{cnn_adformer_forward.6} parent=5 // pred_region
      // Predicated region
      $region45: #{cnn_adformer_forward.6} parent=43 // pred_check
        %p253 = pneg %p34
      $region46: #{cnn_adformer_forward.6} parent=43 // pred_check_branch
        %255 = sbr.rel (%p253) target = $region48
      $region47: #{cnn_adformer_forward.6} parent=43 // pred_region
        %p256 = scmp.lt.s32.totalorder %s14, 1
        %s257 = scalar_select %p256, %s14, 1
        %s258 = smul.addr %s257, 2
        %s259 = smul.addr %s258, 8
        %s260 = scalar_lea.vmem %s0, %s259
      $region48: #{cnn_adformer_forward.6} parent=43 // pred_fallthru
        _
    $region44: #{cnn_adformer_forward.6} parent=5 // pred_fallthru
      _
    %p261 = scmp.le.s32.totalorder 1, %s14
    %p262 = scmp.lt.s32.totalorder %s14, 3
    %p263 = pnand %p261, %p262
    %p264 = pneg %p263
    // Predicated region
    $region49: #{cnn_adformer_forward.6} parent=5 // pred_check
      _
    $region50: #{cnn_adformer_forward.6} parent=5 // pred_check_branch
      %266 = sbr.rel (%p263) target = $region52
    $region51: #{cnn_adformer_forward.6} parent=5 // pred_region
      %s267 = ssub.s32 %s14, 1
      %p268 = scmp.lt.s32.totalorder %s19, 1
      %s269 = scalar_select %p268, %s19, 1
      %s270 = smul.addr %s269, 2
      %s271 = smul.addr %s270, 8
      %s272 = scalar_lea.vmem %s0, %s271
      %p273 = pneg %p40
      %p274 = pneg %p37
      %p275 = pneg %p61
      %p276 = pneg %p58
      %p277 = pneg %p82
      %p278 = pneg %p79
      %p279 = pneg %p103
      %p280 = pneg %p100
      %p281 = pneg %p124
      %p282 = pneg %p121
      %p283 = pneg %p145
      %p284 = pneg %p142
      %p285 = pneg %p166
      %p286 = pneg %p163
      %p287 = pneg %p187
      %p288 = pneg %p184
      %p289 = pneg %p213
      %p290 = pneg %p210
      %p291 = scmp.lt.s32.totalorder %s19, 1
      %s292 = scalar_select %p291, %s19, 1
      %s293 = smul.addr %s292, 2
      %s294 = smul.addr %s293, 8
      %s295 = scalar_lea.vmem %s8, %s294
      %p296 = scmp.lt.s32.totalorder %s19, 1
      %s297 = scalar_select %p296, %s19, 1
      %s298 = smul.addr %s297, 2
      %s299 = smul.addr %s298, 8
      %s300 = scalar_lea.vmem %s0, %s299
      %p301 = scmp.lt.s32.totalorder %s19, 1
      %s302 = scalar_select %p301, %s19, 1
      %s303 = smul.addr %s302, 2
      %s304 = smul.addr %s303, 8
      %s305 = scalar_lea.vmem %s8, %s304
      %v307 = vld [vmem:[%s300] sm:$0xff]
      %v308 = vld [vmem:[%s300 + $0x8] sm:$0xff]
      %v309 = vpack.c.bf16 %v308, %v307
      %v311 = vshrl.u32 %v309, 16
      %v313 = vrot.slane %v311, 7
      %v314 = vshll.u32 %v309, 16
      %v316 = vor.u32 %v313, %v314
      %vm318 = vcmask 1040384
      %vm319 = vsmask.f32 256
      %vm320 = vmand %vm318, %vm319
      %v321 = vsel %vm320, 0, %v316
      %v322 = vrot.slane %v314, 1
      %v323 = vor.u32 %v311, %v322
      %vm325 = vcmask 1047552
      %vm326 = vsmask.f32 7424
      %vm327 = vmand %vm325, %vm326
      %v328 = vsel %vm327, %v323, 0
      %330 = vrot.lane.b32.xlu0 %v309, 32
      %v331 = vpop.permute.xlu0 %330
      %333 = vrot.lane.b32.xlu0 %v328, 64
      %v334 = vpop.permute.xlu0 %333
      %vm335 = vcmask 261120
      %v338 = vsel %vm335, %v321, %v331
      %vm339 = vcmask 523264
      %v341 = vsel %vm339, %v338, %v334
      %v342 = vld [vmem:[%s1] sm:$0xf]
      %v343 = vld [vmem:[%s1 + $0x4] sm:$0xf]
      %v344 = vld [vmem:[%s1 + $0x8] sm:$0xf]
      %v345 = vld [vmem:[%s1 + $0xc] sm:$0xf]
      %v346 = vld [vmem:[%s1 + $0x10] sm:$0xf]
      %v347 = vld [vmem:[%s1 + $0x14] sm:$0xf]
      %v348 = vld [vmem:[%s1 + $0x18] sm:$0xf]
      %v349 = vld [vmem:[%s1 + $0x1c] sm:$0xf]
      %v350 = vld [vmem:[%s1 + $0x20] sm:$0xf]
      %v351 = vld [vmem:[%s1 + $0x24] sm:$0xf]
      %v352 = vld [vmem:[%s1 + $0x28] sm:$0xf]
      %v353 = vld [vmem:[%s1 + $0x2c] sm:$0xf]
      %v354 = vld [vmem:[%s2] sm:$0x1]
      %v356 = vlaneseq
      %v357 = vshrl.u32 %v356, 7
      %v358 = vsub.s32 0, %v357
      %v359 = vrot.slane %v354, %v358
      %v373 = vunpack.c.l.b16 %v342
      %v374 = vunpack.c.l.b16 %v343
      %v375 = vunpack.c.l.b16 %v344
      %v376 = vunpack.c.l.b16 %v345
      %v377 = vunpack.c.l.b16 %v346
      %v378 = vunpack.c.l.b16 %v347
      %v379 = vunpack.c.l.b16 %v348
      %v380 = vunpack.c.l.b16 %v349
      %v381 = vunpack.c.l.b16 %v350
      %v382 = vunpack.c.l.b16 %v351
      %v383 = vunpack.c.l.b16 %v352
      %v384 = vunpack.c.l.b16 %v353
      %v385 = vpack.c.b16 %v374, %v373
      %v386 = vpack.c.b16 %v376, %v375
      %v387 = vpack.c.b16 %v378, %v377
      %v388 = vpack.c.b16 %v380, %v379
      %v389 = vpack.c.b16 %v382, %v381
      %v390 = vpack.c.b16 %v384, %v383
      %vm397 = vcmask 785408
      %v398 = vsel %vm397, %v341, 0
      %400 = vmatprep.subr.bf16.mxu0 0
      %401 = vmatpush1.bf16.msra.mxu0 %v385
      %402 = vmatprep.subr.bf16.mxu0 0
      %403 = vmatpush1.bf16.msra.mxu0 %v386
      %404 = vmatprep.subr.bf16.mxu0 0
      %405 = vmatpush1.bf16.msra.mxu0 %v387
      %406 = vmatprep.subr.bf16.mxu0 0
      %407 = vmatpush1.bf16.msra.mxu0 %v388
      %408 = vmatprep.subr.bf16.mxu0 0
      %409 = vmatpush1.bf16.msra.mxu0 %v389
      %410 = vmatprep.subr.bf16.mxu0 0
      %411 = vmatpush1.bf16.msra.mxu0 %v390
      %412 = vmatprep.subr.bf16.mxu0 0
      %413 = vmatpush1.bf16.msra.mxu0 0
      %414 = vmatprep.subr.bf16.mxu0 0
      %415 = vmatpush1.bf16.msra.mxu0 0
      %416 = vmatprep.subr.bf16.mxu0 0
      %417 = vmatpush1.bf16.msra.mxu0 0
      %418 = vmatprep.subr.bf16.mxu0 0
      %419 = vmatpush1.bf16.msra.mxu0 0
      %420 = vmatprep.subr.bf16.mxu0 0
      %421 = vmatpush1.bf16.msra.mxu0 0
      %422 = vmatprep.subr.bf16.mxu0 0
      %423 = vmatpush1.bf16.msra.mxu0 0
      %424 = vmatprep.subr.bf16.mxu0 0
      %425 = vmatpush1.bf16.msra.mxu0 0
      %426 = vmatprep.subr.bf16.mxu0 0
      %427 = vmatpush1.bf16.msra.mxu0 0
      %428 = vmatprep.subr.bf16.mxu0 0
      %429 = vmatpush1.bf16.msra.mxu0 0
      %430 = vmatprep.subr.bf16.mxu0 0
      %431 = vmatpush1.bf16.msra.mxu0 0
      %432 = vmatprep.mubr.bf16.mxu0 0
      %433 = vmatmul.mubr.bf16.gmra.mrb[0].mxu0 %v398
      %v434 = vpop.f32.mrb[0].mxu0
      %v435 = vadd.f32 %v359, %v434
      %v436 = vpop.f32.mrb[0].mxu0
      %v437 = vpop.f32.mrb[0].mxu0
      %v438 = vadd.f32 %v359, %v437
      %v439 = vpop.f32.mrb[0].mxu0
      %440 = vdwg.mxu0
      %v441 = vpack.c.bf16 %v438, %v435
      %443 = vrot.lane.b32.xlu0 %v441, 96
      %v444 = vpop.permute.xlu0 %443
      %vm445 = vcmask 64512
      %v447 = vsel %vm445, %v441, 0
      %v450 = vsel %vm445, %v444, 0
      %452 = vmatprep.subr.bf16.mxu0 0
      %453 = vmatpush1.bf16.xpose.msra.mxu0 %v450
      %454 = vmatprep.subr.bf16.mxu0 0
      %455 = vmatpush1.bf16.xpose.msra.mxu0 0
      %456 = vmatprep.subr.bf16.mxu0 0
      %457 = vmatpush1.bf16.xpose.msra.mxu0 0
      %458 = vmatprep.subr.bf16.mxu0 0
      %459 = vmatpush1.bf16.xpose.msra.mxu0 0
      %460 = vmatprep.subr.bf16.mxu0 0
      %461 = vmatpush1.bf16.xpose.msra.mxu0 0
      %462 = vmatprep.subr.bf16.mxu0 0
      %463 = vmatpush1.bf16.xpose.msra.mxu0 0
      %464 = vmatprep.subr.bf16.mxu0 0
      %465 = vmatpush1.bf16.xpose.msra.mxu0 0
      %466 = vmatprep.subr.bf16.mxu0 0
      %467 = vmatpush1.bf16.xpose.msra.mxu0 0
      %468 = vmatprep.subr.bf16.mxu0 0
      %469 = vmatpush1.bf16.xpose.msra.mxu0 0
      %470 = vmatprep.subr.bf16.mxu0 0
      %471 = vmatpush1.bf16.xpose.msra.mxu0 0
      %472 = vmatprep.subr.bf16.mxu0 0
      %473 = vmatpush1.bf16.xpose.msra.mxu0 0
      %474 = vmatprep.subr.bf16.mxu0 0
      %475 = vmatpush1.bf16.xpose.msra.mxu0 0
      %476 = vmatprep.subr.bf16.mxu0 0
      %477 = vmatpush1.bf16.xpose.msra.mxu0 0
      %478 = vmatprep.subr.bf16.mxu0 0
      %479 = vmatpush1.bf16.xpose.msra.mxu0 0
      %480 = vmatprep.subr.bf16.mxu0 0
      %481 = vmatpush1.bf16.xpose.msra.mxu0 0
      %482 = vmatprep.subr.bf16.mxu0 0
      %483 = vmatpush1.bf16.xpose.msra.mxu0 0
      %484 = vmatprep.mubr.bf16.mxu0 0
      %485 = vmatmul.mubr.bf16.gmra.mrb[0].mxu0 %v447
      %v486 = vpop.f32.mrb[0].mxu0
      %v487 = vadd.f32 0.0, %v486
      %v488 = vpop.f32.mrb[0].mxu0
      %v489 = vpop.f32.mrb[0].mxu0
      %v490 = vadd.f32 0.0, %v489
      %v491 = vpop.f32.mrb[0].mxu0
      %492 = vdwg.mxu0
      %v493 = vmul.f32 %v487, 0.35355338
      %v494 = vmul.f32 %v490, 0.35355338
      %vm495 = vcmask 130048
      %v496 = vsel %vm495, %v493, -inf
      %497 = vmax.xlane.f32.xlu0 %v496
      %v498 = vpop.xlane.xlu0 %497
      %v499 = vsel %vm495, %v494, -inf
      %500 = vmax.xlane.f32.xlu0 %v499
      %v501 = vpop.xlane.xlu0 %500
      %v502 = vsub.f32 %v493, %v498
      %v503 = vsub.f32 %v494, %v501
      %v504 = vmul.f32 %v502, 1.442695
      %v505 = vpow.pop %v504
      %v506 = vmul.f32 %v503, 1.442695
      %v507 = vpow.pop %v506
      %v508 = vsel %vm495, %v505, 0.0
      %509 = vadd.xlane.f32.xlu0 %v508
      %v510 = vpop.xlane.xlu0 %509
      %v511 = vsel %vm495, %v507, 0.0
      %512 = vadd.xlane.f32.xlu0 %v511
      %v513 = vpop.xlane.xlu0 %512
      %v514 = vrcp.pop %v510
      %v515 = vrcp.pop %v513
      %v516 = vmul.f32 %v505, %v514
      %v517 = vmul.f32 %v507, %v515
      %v518 = vpack.c.bf16 %v517, %v516
      %519 = vrot.lane.b32.xlu0 %v441, 64
      %v520 = vpop.permute.xlu0 %519
      %v523 = vsel %vm495, %v518, 0
      %525 = vmatprep.subr.bf16.mxu0 0
      %526 = vmatpush1.bf16.msra.mxu0 %v520
      %527 = vmatprep.subr.bf16.mxu0 0
      %528 = vmatpush1.bf16.msra.mxu0 0
      %529 = vmatprep.subr.bf16.mxu0 0
      %530 = vmatpush1.bf16.msra.mxu0 0
      %531 = vmatprep.subr.bf16.mxu0 0
      %532 = vmatpush1.bf16.msra.mxu0 0
      %533 = vmatprep.subr.bf16.mxu0 0
      %534 = vmatpush1.bf16.msra.mxu0 0
      %535 = vmatprep.subr.bf16.mxu0 0
      %536 = vmatpush1.bf16.msra.mxu0 0
      %537 = vmatprep.subr.bf16.mxu0 0
      %538 = vmatpush1.bf16.msra.mxu0 0
      %539 = vmatprep.subr.bf16.mxu0 0
      %540 = vmatpush1.bf16.msra.mxu0 0
      %541 = vmatprep.subr.bf16.mxu0 0
      %542 = vmatpush1.bf16.msra.mxu0 0
      %543 = vmatprep.subr.bf16.mxu0 0
      %544 = vmatpush1.bf16.msra.mxu0 0
      %545 = vmatprep.subr.bf16.mxu0 0
      %546 = vmatpush1.bf16.msra.mxu0 0
      %547 = vmatprep.subr.bf16.mxu0 0
      %548 = vmatpush1.bf16.msra.mxu0 0
      %549 = vmatprep.subr.bf16.mxu0 0
      %550 = vmatpush1.bf16.msra.mxu0 0
      %551 = vmatprep.subr.bf16.mxu0 0
      %552 = vmatpush1.bf16.msra.mxu0 0
      %553 = vmatprep.subr.bf16.mxu0 0
      %554 = vmatpush1.bf16.msra.mxu0 0
      %555 = vmatprep.subr.bf16.mxu0 0
      %556 = vmatpush1.bf16.msra.mxu0 0
      %557 = vmatprep.mubr.bf16.mxu0 0
      %558 = vmatmul.mubr.bf16.gmra.mrb[0].mxu0 %v523
      %v559 = vpop.f32.mrb[0].mxu0
      %v560 = vadd.f32 0.0, %v559
      %v561 = vpop.f32.mrb[0].mxu0
      %v562 = vpop.f32.mrb[0].mxu0
      %v563 = vadd.f32 0.0, %v562
      %v564 = vpop.f32.mrb[0].mxu0
      %565 = vdwg.mxu0
      %566 = vrot.lane.b32.xlu0 %v441, 120
      %v567 = vpop.permute.xlu0 %566
      %568 = vrot.lane.b32.xlu0 %v441, 88
      %v569 = vpop.permute.xlu0 %568
      %v571 = vsel %vm445, %v567, 0
      %v574 = vsel %vm445, %v569, 0
      %576 = vmatprep.subr.bf16.mxu0 0
      %577 = vmatpush1.bf16.xpose.msra.mxu0 %v574
      %578 = vmatprep.subr.bf16.mxu0 0
      %579 = vmatpush1.bf16.xpose.msra.mxu0 0
      %580 = vmatprep.subr.bf16.mxu0 0
      %581 = vmatpush1.bf16.xpose.msra.mxu0 0
      %582 = vmatprep.subr.bf16.mxu0 0
      %583 = vmatpush1.bf16.xpose.msra.mxu0 0
      %584 = vmatprep.subr.bf16.mxu0 0
      %585 = vmatpush1.bf16.xpose.msra.mxu0 0
      %586 = vmatprep.subr.bf16.mxu0 0
      %587 = vmatpush1.bf16.xpose.msra.mxu0 0
      %588 = vmatprep.subr.bf16.mxu0 0
      %589 = vmatpush1.bf16.xpose.msra.mxu0 0
      %590 = vmatprep.subr.bf16.mxu0 0
      %591 = vmatpush1.bf16.xpose.msra.mxu0 0
      %592 = vmatprep.subr.bf16.mxu0 0
      %593 = vmatpush1.bf16.xpose.msra.mxu0 0
      %594 = vmatprep.subr.bf16.mxu0 0
      %595 = vmatpush1.bf16.xpose.msra.mxu0 0
      %596 = vmatprep.subr.bf16.mxu0 0
      %597 = vmatpush1.bf16.xpose.msra.mxu0 0
      %598 = vmatprep.subr.bf16.mxu0 0
      %599 = vmatpush1.bf16.xpose.msra.mxu0 0
      %600 = vmatprep.subr.bf16.mxu0 0
      %601 = vmatpush1.bf16.xpose.msra.mxu0 0
      %602 = vmatprep.subr.bf16.mxu0 0
      %603 = vmatpush1.bf16.xpose.msra.mxu0 0
      %604 = vmatprep.subr.bf16.mxu0 0
      %605 = vmatpush1.bf16.xpose.msra.mxu0 0
      %606 = vmatprep.subr.bf16.mxu0 0
      %607 = vmatpush1.bf16.xpose.msra.mxu0 0
      %608 = vmatprep.mubr.bf16.mxu0 0
      %609 = vmatmul.mubr.bf16.gmra.mrb[0].mxu0 %v571
      %v610 = vpop.f32.mrb[0].mxu0
      %v611 = vadd.f32 0.0, %v610
      %v612 = vpop.f32.mrb[0].mxu0
      %v613 = vpop.f32.mrb[0].mxu0
      %v614 = vadd.f32 0.0, %v613
      %v615 = vpop.f32.mrb[0].mxu0
      %616 = vdwg.mxu0
      %v617 = vmul.f32 %v611, 0.35355338
      %v618 = vmul.f32 %v614, 0.35355338
      %v619 = vsel %vm495, %v617, -inf
      %620 = vmax.xlane.f32.xlu0 %v619
      %v621 = vpop.xlane.xlu0 %620
      %v622 = vsel %vm495, %v618, -inf
      %623 = vmax.xlane.f32.xlu0 %v622
      %v624 = vpop.xlane.xlu0 %623
      %v625 = vsub.f32 %v617, %v621
      %v626 = vsub.f32 %v618, %v624
      %v627 = vmul.f32 %v625, 1.442695
      %v628 = vpow.pop %v627
      %v629 = vmul.f32 %v626, 1.442695
      %v630 = vpow.pop %v629
      %v631 = vsel %vm495, %v628, 0.0
      %632 = vadd.xlane.f32.xlu0 %v631
      %v633 = vpop.xlane.xlu0 %632
      %v634 = vsel %vm495, %v630, 0.0
      %635 = vadd.xlane.f32.xlu0 %v634
      %v636 = vpop.xlane.xlu0 %635
      %v637 = vrcp.pop %v633
      %v638 = vrcp.pop %v636
      %v639 = vmul.f32 %v628, %v637
      %v640 = vmul.f32 %v630, %v638
      %v641 = vpack.c.bf16 %v640, %v639
      %642 = vrot.lane.b32.xlu0 %v441, 56
      %v643 = vpop.permute.xlu0 %642
      %v646 = vsel %vm495, %v641, 0
      %648 = vmatprep.subr.bf16.mxu0 0
      %649 = vmatpush1.bf16.msra.mxu0 %v643
      %650 = vmatprep.subr.bf16.mxu0 0
      %651 = vmatpush1.bf16.msra.mxu0 0
      %652 = vmatprep.subr.bf16.mxu0 0
      %653 = vmatpush1.bf16.msra.mxu0 0
      %654 = vmatprep.subr.bf16.mxu0 0
      %655 = vmatpush1.bf16.msra.mxu0 0
      %656 = vmatprep.subr.bf16.mxu0 0
      %657 = vmatpush1.bf16.msra.mxu0 0
      %658 = vmatprep.subr.bf16.mxu0 0
      %659 = vmatpush1.bf16.msra.mxu0 0
      %660 = vmatprep.subr.bf16.mxu0 0
      %661 = vmatpush1.bf16.msra.mxu0 0
      %662 = vmatprep.subr.bf16.mxu0 0
      %663 = vmatpush1.bf16.msra.mxu0 0
      %664 = vmatprep.subr.bf16.mxu0 0
      %665 = vmatpush1.bf16.msra.mxu0 0
      %666 = vmatprep.subr.bf16.mxu0 0
      %667 = vmatpush1.bf16.msra.mxu0 0
      %668 = vmatprep.subr.bf16.mxu0 0
      %669 = vmatpush1.bf16.msra.mxu0 0
      %670 = vmatprep.subr.bf16.mxu0 0
      %671 = vmatpush1.bf16.msra.mxu0 0
      %672 = vmatprep.subr.bf16.mxu0 0
      %673 = vmatpush1.bf16.msra.mxu0 0
      %674 = vmatprep.subr.bf16.mxu0 0
      %675 = vmatpush1.bf16.msra.mxu0 0
      %676 = vmatprep.subr.bf16.mxu0 0
      %677 = vmatpush1.bf16.msra.mxu0 0
      %678 = vmatprep.subr.bf16.mxu0 0
      %679 = vmatpush1.bf16.msra.mxu0 0
      %680 = vmatprep.mubr.bf16.mxu0 0
      %681 = vmatmul.mubr.bf16.gmra.mrb[0].mxu0 %v646
      %v682 = vpop.f32.mrb[0].mxu0
      %v683 = vadd.f32 0.0, %v682
      %v684 = vpop.f32.mrb[0].mxu0
      %v685 = vpop.f32.mrb[0].mxu0
      %v686 = vadd.f32 0.0, %v685
      %v687 = vpop.f32.mrb[0].mxu0
      %688 = vdwg.mxu0
      %689 = vrot.lane.b32.xlu0 %v441, 112
      %v690 = vpop.permute.xlu0 %689
      %691 = vrot.lane.b32.xlu0 %v441, 80
      %v692 = vpop.permute.xlu0 %691
      %v694 = vsel %vm445, %v690, 0
      %v697 = vsel %vm445, %v692, 0
      %699 = vmatprep.subr.bf16.mxu0 0
      %700 = vmatpush1.bf16.xpose.msra.mxu0 %v697
      %701 = vmatprep.subr.bf16.mxu0 0
      %702 = vmatpush1.bf16.xpose.msra.mxu0 0
      %703 = vmatprep.subr.bf16.mxu0 0
      %704 = vmatpush1.bf16.xpose.msra.mxu0 0
      %705 = vmatprep.subr.bf16.mxu0 0
      %706 = vmatpush1.bf16.xpose.msra.mxu0 0
      %707 = vmatprep.subr.bf16.mxu0 0
      %708 = vmatpush1.bf16.xpose.msra.mxu0 0
      %709 = vmatprep.subr.bf16.mxu0 0
      %710 = vmatpush1.bf16.xpose.msra.mxu0 0
      %711 = vmatprep.subr.bf16.mxu0 0
      %712 = vmatpush1.bf16.xpose.msra.mxu0 0
      %713 = vmatprep.subr.bf16.mxu0 0
      %714 = vmatpush1.bf16.xpose.msra.mxu0 0
      %715 = vmatprep.subr.bf16.mxu0 0
      %716 = vmatpush1.bf16.xpose.msra.mxu0 0
      %717 = vmatprep.subr.bf16.mxu0 0
      %718 = vmatpush1.bf16.xpose.msra.mxu0 0
      %719 = vmatprep.subr.bf16.mxu0 0
      %720 = vmatpush1.bf16.xpose.msra.mxu0 0
      %721 = vmatprep.subr.bf16.mxu0 0
      %722 = vmatpush1.bf16.xpose.msra.mxu0 0
      %723 = vmatprep.subr.bf16.mxu0 0
      %724 = vmatpush1.bf16.xpose.msra.mxu0 0
      %725 = vmatprep.subr.bf16.mxu0 0
      %726 = vmatpush1.bf16.xpose.msra.mxu0 0
      %727 = vmatprep.subr.bf16.mxu0 0
      %728 = vmatpush1.bf16.xpose.msra.mxu0 0
      %729 = vmatprep.subr.bf16.mxu0 0
      %730 = vmatpush1.bf16.xpose.msra.mxu0 0
      %731 = vmatprep.mubr.bf16.mxu0 0
      %732 = vmatmul.mubr.bf16.gmra.mrb[0].mxu0 %v694
      %v733 = vpop.f32.mrb[0].mxu0
      %v734 = vadd.f32 0.0, %v733
      %v735 = vpop.f32.mrb[0].mxu0
      %v736 = vpop.f32.mrb[0].mxu0
      %v737 = vadd.f32 0.0, %v736
      %v738 = vpop.f32.mrb[0].mxu0
      %739 = vdwg.mxu0
      %v740 = vmul.f32 %v734, 0.35355338
      %v741 = vmul.f32 %v737, 0.35355338
      %v742 = vsel %vm495, %v740, -inf
      %743 = vmax.xlane.f32.xlu0 %v742
      %v744 = vpop.xlane.xlu0 %743
      %v745 = vsel %vm495, %v741, -inf
      %746 = vmax.xlane.f32.xlu0 %v745
      %v747 = vpop.xlane.xlu0 %746
      %v748 = vsub.f32 %v740, %v744
      %v749 = vsub.f32 %v741, %v747
      %v750 = vmul.f32 %v748, 1.442695
      %v751 = vpow.pop %v750
      %v752 = vmul.f32 %v749, 1.442695
      %v753 = vpow.pop %v752
      %v754 = vsel %vm495, %v751, 0.0
      %755 = vadd.xlane.f32.xlu0 %v754
      %v756 = vpop.xlane.xlu0 %755
      %v757 = vsel %vm495, %v753, 0.0
      %758 = vadd.xlane.f32.xlu0 %v757
      %v759 = vpop.xlane.xlu0 %758
      %v760 = vrcp.pop %v756
      %v761 = vrcp.pop %v759
      %v762 = vmul.f32 %v751, %v760
      %v763 = vmul.f32 %v753, %v761
      %v764 = vpack.c.bf16 %v763, %v762
      %765 = vrot.lane.b32.xlu0 %v441, 48
      %v766 = vpop.permute.xlu0 %765
      %v769 = vsel %vm495, %v764, 0
      %771 = vmatprep.subr.bf16.mxu0 0
      %772 = vmatpush1.bf16.msra.mxu0 %v766
      %773 = vmatprep.subr.bf16.mxu0 0
      %774 = vmatpush1.bf16.msra.mxu0 0
      %775 = vmatprep.subr.bf16.mxu0 0
      %776 = vmatpush1.bf16.msra.mxu0 0
      %777 = vmatprep.subr.bf16.mxu0 0
      %778 = vmatpush1.bf16.msra.mxu0 0
      %779 = vmatprep.subr.bf16.mxu0 0
      %780 = vmatpush1.bf16.msra.mxu0 0
      %781 = vmatprep.subr.bf16.mxu0 0
      %782 = vmatpush1.bf16.msra.mxu0 0
      %783 = vmatprep.subr.bf16.mxu0 0
      %784 = vmatpush1.bf16.msra.mxu0 0
      %785 = vmatprep.subr.bf16.mxu0 0
      %786 = vmatpush1.bf16.msra.mxu0 0
      %787 = vmatprep.subr.bf16.mxu0 0
      %788 = vmatpush1.bf16.msra.mxu0 0
      %789 = vmatprep.subr.bf16.mxu0 0
      %790 = vmatpush1.bf16.msra.mxu0 0
      %791 = vmatprep.subr.bf16.mxu0 0
      %792 = vmatpush1.bf16.msra.mxu0 0
      %793 = vmatprep.subr.bf16.mxu0 0
      %794 = vmatpush1.bf16.msra.mxu0 0
      %795 = vmatprep.subr.bf16.mxu0 0
      %796 = vmatpush1.bf16.msra.mxu0 0
      %797 = vmatprep.subr.bf16.mxu0 0
      %798 = vmatpush1.bf16.msra.mxu0 0
      %799 = vmatprep.subr.bf16.mxu0 0
      %800 = vmatpush1.bf16.msra.mxu0 0
      %801 = vmatprep.subr.bf16.mxu0 0
      %802 = vmatpush1.bf16.msra.mxu0 0
      %803 = vmatprep.mubr.bf16.mxu0 0
      %804 = vmatmul.mubr.bf16.gmra.mrb[0].mxu0 %v769
      %v805 = vpop.f32.mrb[0].mxu0
      %v806 = vadd.f32 0.0, %v805
      %v807 = vpop.f32.mrb[0].mxu0
      %v808 = vpop.f32.mrb[0].mxu0
      %v809 = vadd.f32 0.0, %v808
      %v810 = vpop.f32.mrb[0].mxu0
      %811 = vdwg.mxu0
      %812 = vrot.lane.b32.xlu0 %v441, 104
      %v813 = vpop.permute.xlu0 %812
      %814 = vrot.lane.b32.xlu0 %v441, 72
      %v815 = vpop.permute.xlu0 %814
      %v817 = vsel %vm445, %v813, 0
      %v820 = vsel %vm445, %v815, 0
      %822 = vmatprep.subr.bf16.mxu0 0
      %823 = vmatpush1.bf16.xpose.msra.mxu0 %v820
      %824 = vmatprep.subr.bf16.mxu0 0
      %825 = vmatpush1.bf16.xpose.msra.mxu0 0
      %826 = vmatprep.subr.bf16.mxu0 0
      %827 = vmatpush1.bf16.xpose.msra.mxu0 0
      %828 = vmatprep.subr.bf16.mxu0 0
      %829 = vmatpush1.bf16.xpose.msra.mxu0 0
      %830 = vmatprep.subr.bf16.mxu0 0
      %831 = vmatpush1.bf16.xpose.msra.mxu0 0
      %832 = vmatprep.subr.bf16.mxu0 0
      %833 = vmatpush1.bf16.xpose.msra.mxu0 0
      %834 = vmatprep.subr.bf16.mxu0 0
      %835 = vmatpush1.bf16.xpose.msra.mxu0 0
      %836 = vmatprep.subr.bf16.mxu0 0
      %837 = vmatpush1.bf16.xpose.msra.mxu0 0
      %838 = vmatprep.subr.bf16.mxu0 0
      %839 = vmatpush1.bf16.xpose.msra.mxu0 0
      %840 = vmatprep.subr.bf16.mxu0 0
      %841 = vmatpush1.bf16.xpose.msra.mxu0 0
      %842 = vmatprep.subr.bf16.mxu0 0
      %843 = vmatpush1.bf16.xpose.msra.mxu0 0
      %844 = vmatprep.subr.bf16.mxu0 0
      %845 = vmatpush1.bf16.xpose.msra.mxu0 0
      %846 = vmatprep.subr.bf16.mxu0 0
      %847 = vmatpush1.bf16.xpose.msra.mxu0 0
      %848 = vmatprep.subr.bf16.mxu0 0
      %849 = vmatpush1.bf16.xpose.msra.mxu0 0
      %850 = vmatprep.subr.bf16.mxu0 0
      %851 = vmatpush1.bf16.xpose.msra.mxu0 0
      %852 = vmatprep.subr.bf16.mxu0 0
      %853 = vmatpush1.bf16.xpose.msra.mxu0 0
      %854 = vmatprep.mubr.bf16.mxu0 0
      %855 = vmatmul.mubr.bf16.gmra.mrb[0].mxu0 %v817
      %v856 = vpop.f32.mrb[0].mxu0
      %v857 = vadd.f32 0.0, %v856
      %v858 = vpop.f32.mrb[0].mxu0
      %v859 = vpop.f32.mrb[0].mxu0
      %v860 = vadd.f32 0.0, %v859
      %v861 = vpop.f32.mrb[0].mxu0
      %862 = vdwg.mxu0
      %v863 = vmul.f32 %v857, 0.35355338
      %v864 = vmul.f32 %v860, 0.35355338
      %v865 = vsel %vm495, %v863, -inf
      %866 = vmax.xlane.f32.xlu0 %v865
      %v867 = vpop.xlane.xlu0 %866
      %v868 = vsel %vm495, %v864, -inf
      %869 = vmax.xlane.f32.xlu0 %v868
      %v870 = vpop.xlane.xlu0 %869
      %v871 = vsub.f32 %v863, %v867
      %v872 = vsub.f32 %v864, %v870
      %v873 = vmul.f32 %v871, 1.442695
      %v874 = vpow.pop %v873
      %v875 = vmul.f32 %v872, 1.442695
      %v876 = vpow.pop %v875
      %v877 = vsel %vm495, %v874, 0.0
      %878 = vadd.xlane.f32.xlu0 %v877
      %v879 = vpop.xlane.xlu0 %878
      %v880 = vsel %vm495, %v876, 0.0
      %881 = vadd.xlane.f32.xlu0 %v880
      %v882 = vpop.xlane.xlu0 %881
      %v883 = vrcp.pop %v879
      %v884 = vrcp.pop %v882
      %v885 = vmul.f32 %v874, %v883
      %v886 = vmul.f32 %v876, %v884
      %v887 = vpack.c.bf16 %v886, %v885
      %888 = vrot.lane.b32.xlu0 %v441, 40
      %v889 = vpop.permute.xlu0 %888
      %v892 = vsel %vm495, %v887, 0
      %894 = vmatprep.subr.bf16.mxu0 0
      %895 = vmatpush1.bf16.msra.mxu0 %v889
      %896 = vmatprep.subr.bf16.mxu0 0
      %897 = vmatpush1.bf16.msra.mxu0 0
      %898 = vmatprep.subr.bf16.mxu0 0
      %899 = vmatpush1.bf16.msra.mxu0 0
      %900 = vmatprep.subr.bf16.mxu0 0
      %901 = vmatpush1.bf16.msra.mxu0 0
      %902 = vmatprep.subr.bf16.mxu0 0
      %903 = vmatpush1.bf16.msra.mxu0 0
      %904 = vmatprep.subr.bf16.mxu0 0
      %905 = vmatpush1.bf16.msra.mxu0 0
      %906 = vmatprep.subr.bf16.mxu0 0
      %907 = vmatpush1.bf16.msra.mxu0 0
      %908 = vmatprep.subr.bf16.mxu0 0
      %909 = vmatpush1.bf16.msra.mxu0 0
      %910 = vmatprep.subr.bf16.mxu0 0
      %911 = vmatpush1.bf16.msra.mxu0 0
      %912 = vmatprep.subr.bf16.mxu0 0
      %913 = vmatpush1.bf16.msra.mxu0 0
      %914 = vmatprep.subr.bf16.mxu0 0
      %915 = vmatpush1.bf16.msra.mxu0 0
      %916 = vmatprep.subr.bf16.mxu0 0
      %917 = vmatpush1.bf16.msra.mxu0 0
      %918 = vmatprep.subr.bf16.mxu0 0
      %919 = vmatpush1.bf16.msra.mxu0 0
      %920 = vmatprep.subr.bf16.mxu0 0
      %921 = vmatpush1.bf16.msra.mxu0 0
      %922 = vmatprep.subr.bf16.mxu0 0
      %923 = vmatpush1.bf16.msra.mxu0 0
      %924 = vmatprep.subr.bf16.mxu0 0
      %925 = vmatpush1.bf16.msra.mxu0 0
      %926 = vmatprep.mubr.bf16.mxu0 0
      %927 = vmatmul.mubr.bf16.gmra.mrb[0].mxu0 %v892
      %v928 = vpop.f32.mrb[0].mxu0
      %v929 = vadd.f32 0.0, %v928
      %v930 = vpop.f32.mrb[0].mxu0
      %v931 = vpop.f32.mrb[0].mxu0
      %v932 = vadd.f32 0.0, %v931
      %v933 = vpop.f32.mrb[0].mxu0
      %934 = vdwg.mxu0
      %937 = vrot.lane.b32.xlu0 %v683, 8
      %v938 = vpop.permute.xlu0 %937
      %939 = vrot.lane.b32.xlu0 %v686, 8
      %v940 = vpop.permute.xlu0 %939
      %945 = vrot.lane.b32.xlu0 %v806, 16
      %v946 = vpop.permute.xlu0 %945
      %947 = vrot.lane.b32.xlu0 %v809, 16
      %v948 = vpop.permute.xlu0 %947
      %953 = vrot.lane.b32.xlu0 %v929, 24
      %v954 = vpop.permute.xlu0 %953
      %955 = vrot.lane.b32.xlu0 %v932, 24
      %v956 = vpop.permute.xlu0 %955
      %v959 = vsel %vm445, %v560, %v938
      %v960 = vsel %vm445, %v563, %v940
      %v961 = vsel %vm495, %v959, %v946
      %v962 = vsel %vm495, %v960, %v948
      %vm963 = vcmask 195584
      %v964 = vsel %vm963, %v961, %v954
      %v965 = vsel %vm963, %v962, %v956
      %v966 = vld [vmem:[%s7] sm:$0x3f]
      %v967 = vlaneseq
      %v968 = vshrl.u32 %v967, 7
      %v969 = vsub.s32 0, %v968
      %v970 = vrot.slane %v966, %v969
      %v971 = vadd.f32 %v307, %v970
      %v972 = vadd.f32 %v308, %v970
      %v973 = vpack.c.bf16 %v965, %v964
      %v974 = vld [vmem:[%s3] sm:$0xf]
      %v975 = vld [vmem:[%s3 + $0x4] sm:$0xf]
      %v976 = vld [vmem:[%s3 + $0x8] sm:$0xf]
      %v977 = vld [vmem:[%s3 + $0xc] sm:$0xf]
      %v982 = vunpack.c.l.b16 %v974
      %v983 = vunpack.c.l.b16 %v975
      %v984 = vunpack.c.l.b16 %v976
      %v985 = vunpack.c.l.b16 %v977
      %v986 = vpack.c.b16 %v983, %v982
      %v987 = vpack.c.b16 %v985, %v984
      %v991 = vsel %vm335, %v973, 0
      %993 = vmatprep.subr.bf16.mxu0 0
      %994 = vmatpush1.bf16.msra.mxu0 %v986
      %995 = vmatprep.subr.bf16.mxu0 0
      %996 = vmatpush1.bf16.msra.mxu0 %v987
      %997 = vmatprep.subr.bf16.mxu0 0
      %998 = vmatpush1.bf16.msra.mxu0 0
      %999 = vmatprep.subr.bf16.mxu0 0
      %1000 = vmatpush1.bf16.msra.mxu0 0
      %1001 = vmatprep.subr.bf16.mxu0 0
      %1002 = vmatpush1.bf16.msra.mxu0 0
      %1003 = vmatprep.subr.bf16.mxu0 0
      %1004 = vmatpush1.bf16.msra.mxu0 0
      %1005 = vmatprep.subr.bf16.mxu0 0
      %1006 = vmatpush1.bf16.msra.mxu0 0
      %1007 = vmatprep.subr.bf16.mxu0 0
      %1008 = vmatpush1.bf16.msra.mxu0 0
      %1009 = vmatprep.subr.bf16.mxu0 0
      %1010 = vmatpush1.bf16.msra.mxu0 0
      %1011 = vmatprep.subr.bf16.mxu0 0
      %1012 = vmatpush1.bf16.msra.mxu0 0
      %1013 = vmatprep.subr.bf16.mxu0 0
      %1014 = vmatpush1.bf16.msra.mxu0 0
      %1015 = vmatprep.subr.bf16.mxu0 0
      %1016 = vmatpush1.bf16.msra.mxu0 0
      %1017 = vmatprep.subr.bf16.mxu0 0
      %1018 = vmatpush1.bf16.msra.mxu0 0
      %1019 = vmatprep.subr.bf16.mxu0 0
      %1020 = vmatpush1.bf16.msra.mxu0 0
      %1021 = vmatprep.subr.bf16.mxu0 0
      %1022 = vmatpush1.bf16.msra.mxu0 0
      %1023 = vmatprep.subr.bf16.mxu0 0
      %1024 = vmatpush1.bf16.msra.mxu0 0
      %1025 = vmatprep.mubr.bf16.mxu0 0
      %1026 = vmatmul.mubr.bf16.gmra.mrb[0].mxu0 %v991
      %v1027 = vpop.f32.mrb[0].mxu0
      %v1028 = vadd.f32 0.0, %v1027
      %v1029 = vpop.f32.mrb[0].mxu0
      %v1030 = vpop.f32.mrb[0].mxu0
      %v1031 = vadd.f32 0.0, %v1030
      %v1032 = vpop.f32.mrb[0].mxu0
      %1033 = vdwg.mxu0
      %v1034 = vadd.f32 %v971, %v1028
      %v1035 = vadd.f32 %v972, %v1031
      %v1036 = vsel %vm335, %v1034, 0.0
      %1037 = vadd.xlane.f32.xlu0 %v1036
      %v1038 = vpop.xlane.xlu0 %1037
      %v1039 = vsel %vm335, %v1035, 0.0
      %1040 = vadd.xlane.f32.xlu0 %v1039
      %v1041 = vpop.xlane.xlu0 %1040
      %v1042 = vrcp.pop 32.0
      %v1043 = vmul.f32 %v1038, %v1042
      %v1044 = vmul.f32 %v1041, %v1042
      %v1045 = vsub.f32 %v1034, %v1043
      %v1046 = vsub.f32 %v1035, %v1044
      %v1047 = vmul.f32 %v1045, %v1045
      %v1048 = vmul.f32 %v1046, %v1046
      %v1049 = vsel %vm335, %v1047, 0.0
      %1050 = vadd.xlane.f32.xlu0 %v1049
      %v1051 = vpop.xlane.xlu0 %1050
      %v1052 = vsel %vm335, %v1048, 0.0
      %1053 = vadd.xlane.f32.xlu0 %v1052
      %v1054 = vpop.xlane.xlu0 %1053
      %v1055 = vmul.f32 %v1051, %v1042
      %v1056 = vmul.f32 %v1054, %v1042
      %v1057 = vadd.f32 %v1055, 1e-05
      %v1058 = vadd.f32 %v1056, 1e-05
      %v1059 = vrsqrt.pop %v1057
      %v1060 = vrsqrt.pop %v1058
      %v1061 = vmul.f32 %v1045, %v1059
      %v1062 = vmul.f32 %v1046, %v1060
      %v1063 = vlaneseq
      %v1064 = vshrl.u32 %v1063, 7
      %v1065 = vsub.s32 1, %v1064
      %v1066 = vrot.slane %v966, %v1065
      %v1067 = vmul.f32 %v1061, %v1066
      %v1068 = vmul.f32 %v1062, %v1066
      %v1069 = vlaneseq
      %v1070 = vshrl.u32 %v1069, 7
      %v1071 = vsub.s32 2, %v1070
      %v1072 = vrot.slane %v966, %v1071
      %v1073 = vadd.f32 %v1067, %v1072
      %v1074 = vadd.f32 %v1068, %v1072
      %v1075 = vpack.c.bf16 %v1074, %v1073
      %v1076 = vld [vmem:[%s4] sm:$0xf]
      %v1077 = vld [vmem:[%s4 + $0x4] sm:$0xf]
      %v1078 = vld [vmem:[%s4 + $0x8] sm:$0xf]
      %v1079 = vld [vmem:[%s4 + $0xc] sm:$0xf]
      %v1080 = vld [vmem:[%s5] sm:$0x1]
      %v1082 = vlaneseq
      %v1083 = vshrl.u32 %v1082, 7
      %v1084 = vsub.s32 0, %v1083
      %v1085 = vrot.slane %v1080, %v1084
      %v1091 = vunpack.c.l.b16 %v1076
      %v1092 = vunpack.c.l.b16 %v1077
      %v1093 = vunpack.c.l.b16 %v1078
      %v1094 = vunpack.c.l.b16 %v1079
      %v1095 = vpack.c.b16 %v1092, %v1091
      %v1096 = vpack.c.b16 %v1094, %v1093
      %v1100 = vsel %vm335, %v1075, 0
      %1102 = vmatprep.subr.bf16.mxu0 0
      %1103 = vmatpush1.bf16.msra.mxu0 %v1095
      %1104 = vmatprep.subr.bf16.mxu0 0
      %1105 = vmatpush1.bf16.msra.mxu0 %v1096
      %1106 = vmatprep.subr.bf16.mxu0 0
      %1107 = vmatpush1.bf16.msra.mxu0 0
      %1108 = vmatprep.subr.bf16.mxu0 0
      %1109 = vmatpush1.bf16.msra.mxu0 0
      %1110 = vmatprep.subr.bf16.mxu0 0
      %1111 = vmatpush1.bf16.msra.mxu0 0
      %1112 = vmatprep.subr.bf16.mxu0 0
      %1113 = vmatpush1.bf16.msra.mxu0 0
      %1114 = vmatprep.subr.bf16.mxu0 0
      %1115 = vmatpush1.bf16.msra.mxu0 0
      %1116 = vmatprep.subr.bf16.mxu0 0
      %1117 = vmatpush1.bf16.msra.mxu0 0
      %1118 = vmatprep.subr.bf16.mxu0 0
      %1119 = vmatpush1.bf16.msra.mxu0 0
      %1120 = vmatprep.subr.bf16.mxu0 0
      %1121 = vmatpush1.bf16.msra.mxu0 0
      %1122 = vmatprep.subr.bf16.mxu0 0
      %1123 = vmatpush1.bf16.msra.mxu0 0
      %1124 = vmatprep.subr.bf16.mxu0 0
      %1125 = vmatpush1.bf16.msra.mxu0 0
      %1126 = vmatprep.subr.bf16.mxu0 0
      %1127 = vmatpush1.bf16.msra.mxu0 0
      %1128 = vmatprep.subr.bf16.mxu0 0
      %1129 = vmatpush1.bf16.msra.mxu0 0
      %1130 = vmatprep.subr.bf16.mxu0 0
      %1131 = vmatpush1.bf16.msra.mxu0 0
      %1132 = vmatprep.subr.bf16.mxu0 0
      %1133 = vmatpush1.bf16.msra.mxu0 0
      %1134 = vmatprep.mubr.bf16.mxu0 0
      %1135 = vmatmul.mubr.bf16.gmra.mrb[0].mxu0 %v1100
      %v1136 = vpop.f32.mrb[0].mxu0
      %v1137 = vadd.f32 %v1085, %v1136
      %v1138 = vpop.f32.mrb[0].mxu0
      %v1139 = vpop.f32.mrb[0].mxu0
      %v1140 = vadd.f32 %v1085, %v1139
      %v1141 = vpop.f32.mrb[0].mxu0
      %1142 = vdwg.mxu0
      %v1143 = vmax.f32 %v1137, 0.0
      %v1144 = vmax.f32 %v1140, 0.0
      %v1145 = vlaneseq
      %v1146 = vshrl.u32 %v1145, 7
      %v1147 = vsub.s32 3, %v1146
      %v1148 = vrot.slane %v966, %v1147
      %v1149 = vadd.f32 %v1073, %v1148
      %v1150 = vadd.f32 %v1074, %v1148
      %v1151 = vpack.c.bf16 %v1144, %v1143
      %v1152 = vld [vmem:[%s6] sm:$0xf]
      %v1153 = vld [vmem:[%s6 + $0x4] sm:$0xf]
      %v1154 = vld [vmem:[%s6 + $0x8] sm:$0xf]
      %v1155 = vld [vmem:[%s6 + $0xc] sm:$0xf]
      %v1156 = vld [vmem:[%s6 + $0x10] sm:$0xf]
      %v1157 = vld [vmem:[%s6 + $0x14] sm:$0xf]
      %v1158 = vld [vmem:[%s6 + $0x18] sm:$0xf]
      %v1159 = vld [vmem:[%s6 + $0x1c] sm:$0xf]
      %v1160 = vld [vmem:[%s6 + $0x20] sm:$0xf]
      %v1161 = vld [vmem:[%s6 + $0x24] sm:$0xf]
      %v1162 = vld [vmem:[%s6 + $0x28] sm:$0xf]
      %v1163 = vld [vmem:[%s6 + $0x2c] sm:$0xf]
      %v1164 = vld [vmem:[%s6 + $0x30] sm:$0xf]
      %v1165 = vld [vmem:[%s6 + $0x34] sm:$0xf]
      %v1166 = vld [vmem:[%s6 + $0x38] sm:$0xf]
      %v1167 = vld [vmem:[%s6 + $0x3c] sm:$0xf]
      %v1184 = vunpack.c.l.b16 %v1152
      %v1185 = vunpack.c.l.b16 %v1153
      %v1186 = vunpack.c.l.b16 %v1154
      %v1187 = vunpack.c.l.b16 %v1155
      %v1188 = vunpack.c.l.b16 %v1156
      %v1189 = vunpack.c.l.b16 %v1157
      %v1190 = vunpack.c.l.b16 %v1158
      %v1191 = vunpack.c.l.b16 %v1159
      %v1192 = vunpack.c.l.b16 %v1160
      %v1193 = vunpack.c.l.b16 %v1161
      %v1194 = vunpack.c.l.b16 %v1162
      %v1195 = vunpack.c.l.b16 %v1163
      %v1196 = vunpack.c.l.b16 %v1164
      %v1197 = vunpack.c.l.b16 %v1165
      %v1198 = vunpack.c.l.b16 %v1166
      %v1199 = vunpack.c.l.b16 %v1167
      %v1200 = vpack.c.b16 %v1185, %v1184
      %v1201 = vpack.c.b16 %v1187, %v1186
      %v1202 = vpack.c.b16 %v1189, %v1188
      %v1203 = vpack.c.b16 %v1191, %v1190
      %v1204 = vpack.c.b16 %v1193, %v1192
      %v1205 = vpack.c.b16 %v1195, %v1194
      %v1206 = vpack.c.b16 %v1197, %v1196
      %v1207 = vpack.c.b16 %v1199, %v1198
      %1216 = vmatprep.subr.bf16.mxu0 0
      %1217 = vmatpush1.bf16.msra.mxu0 %v1200
      %1218 = vmatprep.subr.bf16.mxu0 0
      %1219 = vmatpush1.bf16.msra.mxu0 %v1201
      %1220 = vmatprep.subr.bf16.mxu0 0
      %1221 = vmatpush1.bf16.msra.mxu0 %v1202
      %1222 = vmatprep.subr.bf16.mxu0 0
      %1223 = vmatpush1.bf16.msra.mxu0 %v1203
      %1224 = vmatprep.subr.bf16.mxu0 0
      %1225 = vmatpush1.bf16.msra.mxu0 %v1204
      %1226 = vmatprep.subr.bf16.mxu0 0
      %1227 = vmatpush1.bf16.msra.mxu0 %v1205
      %1228 = vmatprep.subr.bf16.mxu0 0
      %1229 = vmatpush1.bf16.msra.mxu0 %v1206
      %1230 = vmatprep.subr.bf16.mxu0 0
      %1231 = vmatpush1.bf16.msra.mxu0 %v1207
      %1232 = vmatprep.subr.bf16.mxu0 0
      %1233 = vmatpush1.bf16.msra.mxu0 0
      %1234 = vmatprep.subr.bf16.mxu0 0
      %1235 = vmatpush1.bf16.msra.mxu0 0
      %1236 = vmatprep.subr.bf16.mxu0 0
      %1237 = vmatpush1.bf16.msra.mxu0 0
      %1238 = vmatprep.subr.bf16.mxu0 0
      %1239 = vmatpush1.bf16.msra.mxu0 0
      %1240 = vmatprep.subr.bf16.mxu0 0
      %1241 = vmatpush1.bf16.msra.mxu0 0
      %1242 = vmatprep.subr.bf16.mxu0 0
      %1243 = vmatpush1.bf16.msra.mxu0 0
      %1244 = vmatprep.subr.bf16.mxu0 0
      %1245 = vmatpush1.bf16.msra.mxu0 0
      %1246 = vmatprep.subr.bf16.mxu0 0
      %1247 = vmatpush1.bf16.msra.mxu0 0
      %1248 = vmatprep.mubr.bf16.mxu0 0
      %1249 = vmatmul.mubr.bf16.gmra.mrb[0].mxu0 %v1151
      %v1250 = vpop.f32.mrb[0].mxu0
      %v1251 = vadd.f32 0.0, %v1250
      %v1252 = vpop.f32.mrb[0].mxu0
      %v1253 = vpop.f32.mrb[0].mxu0
      %v1254 = vadd.f32 0.0, %v1253
      %v1255 = vpop.f32.mrb[0].mxu0
      %1256 = vdwg.mxu0
      %v1257 = vadd.f32 %v1149, %v1251
      %v1258 = vadd.f32 %v1150, %v1254
      %v1259 = vsel %vm335, %v1257, 0.0
      %1260 = vadd.xlane.f32.xlu0 %v1259
      %v1261 = vpop.xlane.xlu0 %1260
      %v1262 = vsel %vm335, %v1258, 0.0
      %1263 = vadd.xlane.f32.xlu0 %v1262
      %v1264 = vpop.xlane.xlu0 %1263
      %v1265 = vmul.f32 %v1261, %v1042
      %v1266 = vmul.f32 %v1264, %v1042
      %v1267 = vsub.f32 %v1257, %v1265
      %v1268 = vsub.f32 %v1258, %v1266
      %v1269 = vmul.f32 %v1267, %v1267
      %v1270 = vmul.f32 %v1268, %v1268
      %v1271 = vsel %vm335, %v1269, 0.0
      %1272 = vadd.xlane.f32.xlu0 %v1271
      %v1273 = vpop.xlane.xlu0 %1272
      %v1274 = vsel %vm335, %v1270, 0.0
      %1275 = vadd.xlane.f32.xlu0 %v1274
      %v1276 = vpop.xlane.xlu0 %1275
      %v1277 = vmul.f32 %v1273, %v1042
      %v1278 = vmul.f32 %v1276, %v1042
      %v1279 = vadd.f32 %v1277, 1e-05
      %v1280 = vadd.f32 %v1278, 1e-05
      %v1281 = vrsqrt.pop %v1279
      %v1282 = vrsqrt.pop %v1280
      %v1283 = vmul.f32 %v1267, %v1281
      %v1284 = vmul.f32 %v1268, %v1282
      %v1285 = vlaneseq
      %v1286 = vshrl.u32 %v1285, 7
      %v1287 = vsub.s32 4, %v1286
      %v1288 = vrot.slane %v966, %v1287
      %v1289 = vmul.f32 %v1283, %v1288
      %v1290 = vmul.f32 %v1284, %v1288
      %v1291 = vlaneseq
      %v1292 = vshrl.u32 %v1291, 7
      %v1293 = vsub.s32 5, %v1292
      %v1294 = vrot.slane %v966, %v1293
      %v1295 = vadd.f32 %v1289, %v1294
      %v1296 = vadd.f32 %v1290, %v1294
      %1297 = vst.msk [vmem:[%s305] sm:$0xff] %vm335, %v1295
      %1298 = vst.msk [vmem:[%s305 + $0x8] sm:$0xff] %vm335, %v1296
      %p1299 = scmp.lt.s32.totalorder %s19, 1
      %s1300 = scalar_select %p1299, %s19, 1
      %s1301 = smul.addr %s1300, 2
      %s1302 = smul.addr %s1301, 8
      %s1303 = scalar_lea.vmem %s8, %s1302
      // Predicated region
      $region53: #{cnn_adformer_forward.6} parent=51 // pred_check
        %p1304 = pneg %p210
      $region54: #{cnn_adformer_forward.6} parent=51 // pred_check_branch
        %1306 = sbr.rel (%p1304) target = $region56
      $region55: #{cnn_adformer_forward.6} parent=51 // pred_region
        _
      $region56: #{cnn_adformer_forward.6} parent=51 // pred_fallthru
        _
    $region52: #{cnn_adformer_forward.6} parent=5 // pred_fallthru
      _
    %p1307 = scmp.le.s32.totalorder 2, %s14
    // Predicated region
    $region57: #{cnn_adformer_forward.6} parent=5 // pred_check
      %p1308 = pneg %p1307
    $region58: #{cnn_adformer_forward.6} parent=5 // pred_check_branch
      %1310 = sbr.rel (%p1308) target = $region60
    $region59: #{cnn_adformer_forward.6} parent=5 // pred_region
      %s1311 = ssub.s32 %s14, 2
      // Predicated region
      $region61: #{cnn_adformer_forward.6} parent=59 // pred_check
        %p1312 = pneg %p216
      $region62: #{cnn_adformer_forward.6} parent=59 // pred_check_branch
        %1314 = sbr.rel (%p1312) target = $region64
      $region63: #{cnn_adformer_forward.6} parent=59 // pred_region
        %p1315 = scmp.lt.s32.totalorder %s20, 1
        %s1316 = scalar_select %p1315, %s20, 1
        %s1317 = smul.addr %s1316, 2
        %s1318 = smul.addr %s1317, 8
        %s1319 = scalar_lea.vmem %s8, %s1318
      $region64: #{cnn_adformer_forward.6} parent=59 // pred_fallthru
        _
    $region60: #{cnn_adformer_forward.6} parent=5 // pred_fallthru
      _
  $region6: #{cnn_adformer_forward.6} parent=0 // loop_footer
    %s18 = sadd.s32 1, %s14
  $region7: #{cnn_adformer_forward.6} parent=0 // loop_footer_branch
    %13 = sbr.rel target = $region3
  $region8: #{cnn_adformer_forward.6} parent=0 // loop_exit
    _

// kernel: cnn_adformer_forward.8
$region0: #{cnn_adformer_forward.8}
  #allocation0 [shape = 'u32[]', space=smem, size = 0x4, offset = 0x4, fixed_abs, tag = 'smem constant byte address 0x4 - core index']
  #allocation1 [shape = 'u32[144,128]{1,0:T(1,128)}', space=vmem, size = 0x12000, scoped, tag = 'internal scratch']
  %s0 = inlined_call_operand.vmem [shape: f32[2,16,32], index: 0, kind: input, shape index: {}]
  %s1 = inlined_call_operand.vmem [shape: bf16[96,32], index: 1, kind: input, shape index: {}]
  %s2 = inlined_call_operand.vmem [shape: bf16[48,16], index: 2, kind: input, shape index: {}]
  %s3 = inlined_call_operand.vmem [shape: f32[16,2], index: 3, kind: input, shape index: {}]
  %s4 = inlined_call_operand.vmem [shape: f32[2,32], index: 4, kind: input, shape index: {}]
  %s5 = inlined_call_operand.vmem [shape: f32[2,16,8], index: 5, kind: output, shape index: {}]
  %s6 = sld [smem:[#allocation0]]
  $region53: #{cnn_adformer_forward.8} parent=0
    _
  %s8 = ssub.s32 1, %s6
  %s9 = scalar_select 0, %s8, %s6
  loop: start=0, step=1, limit=4
  $region2: #{cnn_adformer_forward.8} parent=0 // loop_pre_header
    _
  $region3: #{cnn_adformer_forward.8} parent=0 // loop_header
    %s11 = sphi 0, %s15
    %p12 = scmp.ge.s32.totalorder %s11, 4
    %s21 = sphi 0, %s23
    %s24 = sphi 0, %s21
    %s25 = sphi 0, %s24
    %s41 = sphi 0, %s25
    %s45 = sphi 0, %s45
    %s47 = sphi 0, %s45
    %s48 = sphi 0, %s47
    %s62 = sphi 0, %s48
    %s66 = sphi 0, %s66
    %s68 = sphi 0, %s66
    %s69 = sphi 0, %s68
    %s83 = sphi 0, %s69
    %s87 = sphi 0, %s87
    %s89 = sphi 0, %s87
    %s90 = sphi 0, %s89
    %s104 = sphi 0, %s90
    %s108 = sphi 0, %s108
    %s110 = sphi 0, %s108
    %s111 = sphi 0, %s110
    %s125 = sphi 0, %s111
    %s131 = sphi 0, %s133
    %s134 = sphi 0, %s131
    %s135 = sphi 0, %s134
    %s151 = sphi 0, %s135
  $region4: #{cnn_adformer_forward.8} parent=0 // loop_header_branch
    %14 = sbr.rel (%p12) target = $region8
  $region5: #{cnn_adformer_forward.8} parent=0 // loop_body
    %s16 = ssub.s32 %s11, 1
    %s17 = ssub.s32 %s11, 2
    %s18 = sadd.s32 %s11, 1
    %s19 = ssub.s32 %s11, %s18
    %p20 = scmp.eq.s32.totalorder %s19, 0
    %s22 = sadd.s32 %s21, 1
    %s23 = scalar_select %p20, %s21, %s22
    %p26 = pneg %p20
    %p27 = scmp.eq.s32.totalorder %s11, 1
    %p28 = por %p26, %p27
    %p29 = scmp.ne.s32.totalorder %s21, %s24
    %p30 = scmp.eq.s32.totalorder %s11, 0
    %p31 = por %p29, %p30
    %p32 = scmp.ne.s32.totalorder %s21, %s24
    %p33 = scmp.eq.s32.totalorder %s16, 1
    %p34 = por %p32, %p33
    %p35 = scmp.ne.s32.totalorder %s24, %s25
    %p36 = scmp.eq.s32.totalorder %s16, 0
    %p37 = por %p35, %p36
    %p38 = scmp.ne.s32.totalorder %s24, %s25
    %p39 = scmp.eq.s32.totalorder %s17, 1
    %p40 = por %p38, %p39
    %p42 = scmp.ne.s32.totalorder %s25, %s41
    %p43 = scmp.eq.s32.totalorder %s17, 0
    %p44 = por %p42, %p43
    %s46 = sadd.s32 %s45, 1
    %p49 = scmp.eq.s32.totalorder %s11, 1
    %p50 = scmp.ne.s32.totalorder %s45, %s47
    %p51 = scmp.eq.s32.totalorder %s11, 0
    %p52 = por %p50, %p51
    %p53 = scmp.ne.s32.totalorder %s45, %s47
    %p54 = scmp.eq.s32.totalorder %s16, 1
    %p55 = por %p53, %p54
    %p56 = scmp.ne.s32.totalorder %s47, %s48
    %p57 = scmp.eq.s32.totalorder %s16, 0
    %p58 = por %p56, %p57
    %p59 = scmp.ne.s32.totalorder %s47, %s48
    %p60 = scmp.eq.s32.totalorder %s17, 1
    %p61 = por %p59, %p60
    %p63 = scmp.ne.s32.totalorder %s48, %s62
    %p64 = scmp.eq.s32.totalorder %s17, 0
    %p65 = por %p63, %p64
    %s67 = sadd.s32 %s66, 1
    %p70 = scmp.eq.s32.totalorder %s11, 1
    %p71 = scmp.ne.s32.totalorder %s66, %s68
    %p72 = scmp.eq.s32.totalorder %s11, 0
    %p73 = por %p71, %p72
    %p74 = scmp.ne.s32.totalorder %s66, %s68
    %p75 = scmp.eq.s32.totalorder %s16, 1
    %p76 = por %p74, %p75
    %p77 = scmp.ne.s32.totalorder %s68, %s69
    %p78 = scmp.eq.s32.totalorder %s16, 0
    %p79 = por %p77, %p78
    %p80 = scmp.ne.s32.totalorder %s68, %s69
    %p81 = scmp.eq.s32.totalorder %s17, 1
    %p82 = por %p80, %p81
    %p84 = scmp.ne.s32.totalorder %s69, %s83
    %p85 = scmp.eq.s32.totalorder %s17, 0
    %p86 = por %p84, %p85
    %s88 = sadd.s32 %s87, 1
    %p91 = scmp.eq.s32.totalorder %s11, 1
    %p92 = scmp.ne.s32.totalorder %s87, %s89
    %p93 = scmp.eq.s32.totalorder %s11, 0
    %p94 = por %p92, %p93
    %p95 = scmp.ne.s32.totalorder %s87, %s89
    %p96 = scmp.eq.s32.totalorder %s16, 1
    %p97 = por %p95, %p96
    %p98 = scmp.ne.s32.totalorder %s89, %s90
    %p99 = scmp.eq.s32.totalorder %s16, 0
    %p100 = por %p98, %p99
    %p101 = scmp.ne.s32.totalorder %s89, %s90
    %p102 = scmp.eq.s32.totalorder %s17, 1
    %p103 = por %p101, %p102
    %p105 = scmp.ne.s32.totalorder %s90, %s104
    %p106 = scmp.eq.s32.totalorder %s17, 0
    %p107 = por %p105, %p106
    %s109 = sadd.s32 %s108, 1
    %p112 = scmp.eq.s32.totalorder %s11, 1
    %p113 = scmp.ne.s32.totalorder %s108, %s110
    %p114 = scmp.eq.s32.totalorder %s11, 0
    %p115 = por %p113, %p114
    %p116 = scmp.ne.s32.totalorder %s108, %s110
    %p117 = scmp.eq.s32.totalorder %s16, 1
    %p118 = por %p116, %p117
    %p119 = scmp.ne.s32.totalorder %s110, %s111
    %p120 = scmp.eq.s32.totalorder %s16, 0
    %p121 = por %p119, %p120
    %p122 = scmp.ne.s32.totalorder %s110, %s111
    %p123 = scmp.eq.s32.totalorder %s17, 1
    %p124 = por %p122, %p123
    %p126 = scmp.ne.s32.totalorder %s111, %s125
    %p127 = scmp.eq.s32.totalorder %s17, 0
    %p128 = por %p126, %p127
    %s129 = ssub.s32 %s11, %s18
    %p130 = scmp.eq.s32.totalorder %s129, 0
    %s132 = sadd.s32 %s131, 1
    %s133 = scalar_select %p130, %s131, %s132
    %p136 = pneg %p130
    %p137 = scmp.eq.s32.totalorder %s11, 1
    %p138 = por %p136, %p137
    %p139 = scmp.ne.s32.totalorder %s131, %s134
    %p140 = scmp.eq.s32.totalorder %s11, 0
    %p141 = por %p139, %p140
    %p142 = scmp.ne.s32.totalorder %s131, %s134
    %p143 = scmp.eq.s32.totalorder %s16, 1
    %p144 = por %p142, %p143
    %p145 = scmp.ne.s32.totalorder %s134, %s135
    %p146 = scmp.eq.s32.totalorder %s16, 0
    %p147 = por %p145, %p146
    %p148 = scmp.ne.s32.totalorder %s134, %s135
    %p149 = scmp.eq.s32.totalorder %s17, 1
    %p150 = por %p148, %p149
    %p152 = scmp.ne.s32.totalorder %s135, %s151
    %p153 = scmp.eq.s32.totalorder %s17, 0
    %p154 = por %p152, %p153
    %p155 = scmp.le.s32.totalorder 1, %s11
    %p156 = scmp.lt.s32.totalorder %s11, 3
    %p157 = pnand %p155, %p156
    %p158 = pneg %p157
    // Predicated region
    $region9: #{cnn_adformer_forward.8} parent=5 // pred_check
      _
    $region10: #{cnn_adformer_forward.8} parent=5 // pred_check_branch
      %160 = sbr.rel (%p157) target = $region12
    $region11: #{cnn_adformer_forward.8} parent=5 // pred_region
      %s161 = ssub.s32 %s11, 1
      // Predicated region
      $region13: #{cnn_adformer_forward.8} parent=11 // pred_check
        %p162 = pneg %p58
      $region14: #{cnn_adformer_forward.8} parent=11 // pred_check_branch
        %164 = sbr.rel (%p162) target = $region16
      $region15: #{cnn_adformer_forward.8} parent=11 // pred_region
        _
      $region16: #{cnn_adformer_forward.8} parent=11 // pred_fallthru
        _
      // Predicated region
      $region17: #{cnn_adformer_forward.8} parent=11 // pred_check
        %p165 = pneg %p79
      $region18: #{cnn_adformer_forward.8} parent=11 // pred_check_branch
        %167 = sbr.rel (%p165) target = $region20
      $region19: #{cnn_adformer_forward.8} parent=11 // pred_region
        _
      $region20: #{cnn_adformer_forward.8} parent=11 // pred_fallthru
        _
      // Predicated region
      $region21: #{cnn_adformer_forward.8} parent=11 // pred_check
        %p168 = pneg %p100
      $region22: #{cnn_adformer_forward.8} parent=11 // pred_check_branch
        %170 = sbr.rel (%p168) target = $region24
      $region23: #{cnn_adformer_forward.8} parent=11 // pred_region
        _
      $region24: #{cnn_adformer_forward.8} parent=11 // pred_fallthru
        _
      // Predicated region
      $region25: #{cnn_adformer_forward.8} parent=11 // pred_check
        %p171 = pneg %p121
      $region26: #{cnn_adformer_forward.8} parent=11 // pred_check_branch
        %173 = sbr.rel (%p171) target = $region28
      $region27: #{cnn_adformer_forward.8} parent=11 // pred_region
        _
      $region28: #{cnn_adformer_forward.8} parent=11 // pred_fallthru
        _
    $region12: #{cnn_adformer_forward.8} parent=5 // pred_fallthru
      _
    %p174 = scmp.lt.s32.totalorder %s11, 2
    // Predicated region
    $region29: #{cnn_adformer_forward.8} parent=5 // pred_check
      %p175 = pneg %p174
    $region30: #{cnn_adformer_forward.8} parent=5 // pred_check_branch
      %177 = sbr.rel (%p175) target = $region32
    $region31: #{cnn_adformer_forward.8} parent=5 // pred_region
      // Predicated region
      $region33: #{cnn_adformer_forward.8} parent=31 // pred_check
        %p178 = pneg %p31
      $region34: #{cnn_adformer_forward.8} parent=31 // pred_check_branch
        %180 = sbr.rel (%p178) target = $region36
      $region35: #{cnn_adformer_forward.8} parent=31 // pred_region
        %p181 = scmp.lt.s32.totalorder %s11, 1
        %s182 = scalar_select %p181, %s11, 1
        %s183 = smul.addr %s182, 2
        %s184 = smul.addr %s183, 8
        %s185 = scalar_lea.vmem %s0, %s184
      $region36: #{cnn_adformer_forward.8} parent=31 // pred_fallthru
        _
    $region32: #{cnn_adformer_forward.8} parent=5 // pred_fallthru
      _
    %p186 = scmp.le.s32.totalorder 1, %s11
    %p187 = scmp.lt.s32.totalorder %s11, 3
    %p188 = pnand %p186, %p187
    %p189 = pneg %p188
    // Predicated region
    $region37: #{cnn_adformer_forward.8} parent=5 // pred_check
      _
    $region38: #{cnn_adformer_forward.8} parent=5 // pred_check_branch
      %191 = sbr.rel (%p188) target = $region40
    $region39: #{cnn_adformer_forward.8} parent=5 // pred_region
      %s192 = ssub.s32 %s11, 1
      %p193 = scmp.lt.s32.totalorder %s16, 1
      %s194 = scalar_select %p193, %s16, 1
      %s195 = smul.addr %s194, 2
      %s196 = smul.addr %s195, 8
      %s197 = scalar_lea.vmem %s0, %s196
      %p198 = pneg %p37
      %p199 = pneg %p34
      %p200 = pneg %p58
      %p201 = pneg %p55
      %p202 = pneg %p79
      %p203 = pneg %p76
      %p204 = pneg %p100
      %p205 = pneg %p97
      %p206 = pneg %p121
      %p207 = pneg %p118
      %p208 = pneg %p147
      %p209 = pneg %p144
      %p210 = scmp.lt.s32.totalorder %s16, 1
      %s211 = scalar_select %p210, %s16, 1
      %s212 = smul.addr %s211, 2
      %s213 = smul.addr %s212, 8
      %s214 = scalar_lea.vmem %s5, %s213
      %p215 = scmp.lt.s32.totalorder %s16, 1
      %s216 = scalar_select %p215, %s16, 1
      %s217 = smul.addr %s216, 2
      %s218 = smul.addr %s217, 8
      %s219 = scalar_lea.vmem %s0, %s218
      %p220 = scmp.lt.s32.totalorder %s16, 1
      %s221 = scalar_select %p220, %s16, 1
      %s222 = smul.addr %s221, 2
      %s223 = smul.addr %s222, 8
      %s224 = scalar_lea.vmem %s5, %s223
      %v226 = vld [vmem:[%s219] sm:$0xff]
      %v227 = vld [vmem:[%s219 + $0x8] sm:$0xff]
      %v228 = vld [vmem:[%s3] sm:$0xff]
      %v229 = vld [vmem:[%s3 + $0x8] sm:$0xff]
      %v230 = vld [vmem:[%s4] sm:$0x3]
      %v231 = vpack.c.bf16 %v227, %v226
      %v233 = vshrl.u32 %v231, 16
      %v235 = vrot.slane %v233, 7
      %v236 = vshll.u32 %v231, 16
      %v238 = vor.u32 %v235, %v236
      %vm240 = vcmask 1040384
      %vm241 = vsmask.f32 256
      %vm242 = vmand %vm240, %vm241
      %v243 = vsel %vm242, 0, %v238
      %v244 = vrot.slane %v236, 1
      %v245 = vor.u32 %v233, %v244
      %vm247 = vcmask 1047552
      %vm248 = vsmask.f32 7424
      %vm249 = vmand %vm247, %vm248
      %v250 = vsel %vm249, %v245, 0
      %252 = vrot.lane.b32.xlu0 %v231, 32
      %v253 = vpop.permute.xlu0 %252
      %255 = vrot.lane.b32.xlu0 %v250, 64
      %v256 = vpop.permute.xlu0 %255
      %vm257 = vcmask 261120
      %v260 = vsel %vm257, %v243, %v253
      %vm261 = vcmask 523264
      %v263 = vsel %vm261, %v260, %v256
      %v264 = vld [vmem:[%s1] sm:$0xf]
      %v265 = vld [vmem:[%s1 + $0x4] sm:$0xf]
      %v266 = vld [vmem:[%s1 + $0x8] sm:$0xf]
      %v267 = vld [vmem:[%s1 + $0xc] sm:$0xf]
      %v268 = vld [vmem:[%s1 + $0x10] sm:$0xf]
      %v269 = vld [vmem:[%s1 + $0x14] sm:$0xf]
      %v270 = vld [vmem:[%s1 + $0x18] sm:$0xf]
      %v271 = vld [vmem:[%s1 + $0x1c] sm:$0xf]
      %v272 = vld [vmem:[%s1 + $0x20] sm:$0xf]
      %v273 = vld [vmem:[%s1 + $0x24] sm:$0xf]
      %v274 = vld [vmem:[%s1 + $0x28] sm:$0xf]
      %v275 = vld [vmem:[%s1 + $0x2c] sm:$0xf]
      %v276 = vlaneseq
      %v277 = vshrl.u32 %v276, 7
      %v278 = vsub.s32 0, %v277
      %v279 = vrot.slane %v230, %v278
      %v292 = vunpack.c.l.b16 %v264
      %v293 = vunpack.c.l.b16 %v265
      %v294 = vunpack.c.l.b16 %v266
      %v295 = vunpack.c.l.b16 %v267
      %v296 = vunpack.c.l.b16 %v268
      %v297 = vunpack.c.l.b16 %v269
      %v298 = vunpack.c.l.b16 %v270
      %v299 = vunpack.c.l.b16 %v271
      %v300 = vunpack.c.l.b16 %v272
      %v301 = vunpack.c.l.b16 %v273
      %v302 = vunpack.c.l.b16 %v274
      %v303 = vunpack.c.l.b16 %v275
      %v304 = vpack.c.b16 %v293, %v292
      %v305 = vpack.c.b16 %v295, %v294
      %v306 = vpack.c.b16 %v297, %v296
      %v307 = vpack.c.b16 %v299, %v298
      %v308 = vpack.c.b16 %v301, %v300
      %v309 = vpack.c.b16 %v303, %v302
      %vm316 = vcmask 785408
      %v317 = vsel %vm316, %v263, 0
      %319 = vmatprep.subr.bf16.mxu0 0
      %320 = vmatpush1.bf16.msra.mxu0 %v304
      %321 = vmatprep.subr.bf16.mxu0 0
      %322 = vmatpush1.bf16.msra.mxu0 %v305
      %323 = vmatprep.subr.bf16.mxu0 0
      %324 = vmatpush1.bf16.msra.mxu0 %v306
      %325 = vmatprep.subr.bf16.mxu0 0
      %326 = vmatpush1.bf16.msra.mxu0 %v307
      %327 = vmatprep.subr.bf16.mxu0 0
      %328 = vmatpush1.bf16.msra.mxu0 %v308
      %329 = vmatprep.subr.bf16.mxu0 0
      %330 = vmatpush1.bf16.msra.mxu0 %v309
      %331 = vmatprep.subr.bf16.mxu0 0
      %332 = vmatpush1.bf16.msra.mxu0 0
      %333 = vmatprep.subr.bf16.mxu0 0
      %334 = vmatpush1.bf16.msra.mxu0 0
      %335 = vmatprep.subr.bf16.mxu0 0
      %336 = vmatpush1.bf16.msra.mxu0 0
      %337 = vmatprep.subr.bf16.mxu0 0
      %338 = vmatpush1.bf16.msra.mxu0 0
      %339 = vmatprep.subr.bf16.mxu0 0
      %340 = vmatpush1.bf16.msra.mxu0 0
      %341 = vmatprep.subr.bf16.mxu0 0
      %342 = vmatpush1.bf16.msra.mxu0 0
      %343 = vmatprep.subr.bf16.mxu0 0
      %344 = vmatpush1.bf16.msra.mxu0 0
      %345 = vmatprep.subr.bf16.mxu0 0
      %346 = vmatpush1.bf16.msra.mxu0 0
      %347 = vmatprep.subr.bf16.mxu0 0
      %348 = vmatpush1.bf16.msra.mxu0 0
      %349 = vmatprep.subr.bf16.mxu0 0
      %350 = vmatpush1.bf16.msra.mxu0 0
      %351 = vmatprep.mubr.bf16.mxu0 0
      %352 = vmatmul.mubr.bf16.gmra.mrb[0].mxu0 %v317
      %v353 = vpop.f32.mrb[0].mxu0
      %v354 = vadd.f32 %v279, %v353
      %v355 = vpop.f32.mrb[0].mxu0
      %v356 = vpop.f32.mrb[0].mxu0
      %v357 = vadd.f32 %v279, %v356
      %v358 = vpop.f32.mrb[0].mxu0
      %359 = vdwg.mxu0
      %361 = vset.pattern.permute.xlu0 0
      %362 = vperm.xlu0 %361, %v228
      %v363 = vpop.permute.xlu0 %362
      %366 = vset.pattern.permute.xlu0 0
      %367 = vperm.xlu0 %366, %v229
      %v368 = vpop.permute.xlu0 %367
      %v370 = vmul.f32 %v354, %v363
      %v371 = vmul.f32 %v357, %v368
      %372 = vset.pattern.permute.xlu0 1
      %373 = vperm.xlu0 %372, %v228
      %v374 = vpop.permute.xlu0 %373
      %376 = vset.pattern.permute.xlu0 1
      %377 = vperm.xlu0 %376, %v229
      %v378 = vpop.permute.xlu0 %377
      %v380 = vadd.f32 %v370, %v374
      %v381 = vadd.f32 %v371, %v378
      %v382 = vmax.f32 %v380, 0.0
      %v383 = vmax.f32 %v381, 0.0
      %386 = vrot.lane.b32.xlu0 %v382, 112
      %v387 = vpop.permute.xlu0 %386
      %388 = vrot.lane.b32.xlu0 %v383, 112
      %v389 = vpop.permute.xlu0 %388
      %v392 = vmax.f32 %v382, %v387
      %v393 = vmax.f32 %v383, %v389
      %v394 = vpack.c.bf16 %v393, %v392
      %v396 = vshrl.u32 %v394, 16
      %v398 = vrot.slane %v396, 7
      %v399 = vshll.u32 %v394, 16
      %v401 = vor.u32 %v398, %v399
      %v403 = vsel %vm242, 0, %v401
      %v404 = vrot.slane %v399, 1
      %v405 = vor.u32 %v396, %v404
      %v407 = vsel %vm249, %v405, 0
      %409 = vrot.lane.b32.xlu0 %v394, 16
      %v410 = vpop.permute.xlu0 %409
      %412 = vrot.lane.b32.xlu0 %v407, 32
      %v413 = vpop.permute.xlu0 %412
      %vm414 = vcmask 130048
      %v417 = vsel %vm414, %v403, %v410
      %v419 = vsel %vm257, %v417, %v413
      %v420 = vld [vmem:[%s2] sm:$0xf]
      %v421 = vld [vmem:[%s2 + $0x4] sm:$0xf]
      %v422 = vld [vmem:[%s2 + $0x8] sm:$0xf]
      %v423 = vld [vmem:[%s2 + $0xc] sm:$0xf]
      %v424 = vld [vmem:[%s2 + $0x10] sm:$0xf]
      %v425 = vld [vmem:[%s2 + $0x14] sm:$0xf]
      %v426 = vlaneseq
      %v427 = vshrl.u32 %v426, 7
      %v428 = vsub.s32 1, %v427
      %v429 = vrot.slane %v230, %v428
      %v436 = vunpack.c.l.b16 %v420
      %v437 = vunpack.c.l.b16 %v421
      %v438 = vunpack.c.l.b16 %v422
      %v439 = vunpack.c.l.b16 %v423
      %v440 = vunpack.c.l.b16 %v424
      %v441 = vunpack.c.l.b16 %v425
      %v442 = vpack.c.b16 %v437, %v436
      %v443 = vpack.c.b16 %v439, %v438
      %v444 = vpack.c.b16 %v441, %v440
      %vm448 = vcmask 392192
      %v449 = vsel %vm448, %v419, 0
      %451 = vmatprep.subr.bf16.mxu0 0
      %452 = vmatpush1.bf16.msra.mxu0 %v442
      %453 = vmatprep.subr.bf16.mxu0 0
      %454 = vmatpush1.bf16.msra.mxu0 %v443
      %455 = vmatprep.subr.bf16.mxu0 0
      %456 = vmatpush1.bf16.msra.mxu0 %v444
      %457 = vmatprep.subr.bf16.mxu0 0
      %458 = vmatpush1.bf16.msra.mxu0 0
      %459 = vmatprep.subr.bf16.mxu0 0
      %460 = vmatpush1.bf16.msra.mxu0 0
      %461 = vmatprep.subr.bf16.mxu0 0
      %462 = vmatpush1.bf16.msra.mxu0 0
      %463 = vmatprep.subr.bf16.mxu0 0
      %464 = vmatpush1.bf16.msra.mxu0 0
      %465 = vmatprep.subr.bf16.mxu0 0
      %466 = vmatpush1.bf16.msra.mxu0 0
      %467 = vmatprep.subr.bf16.mxu0 0
      %468 = vmatpush1.bf16.msra.mxu0 0
      %469 = vmatprep.subr.bf16.mxu0 0
      %470 = vmatpush1.bf16.msra.mxu0 0
      %471 = vmatprep.subr.bf16.mxu0 0
      %472 = vmatpush1.bf16.msra.mxu0 0
      %473 = vmatprep.subr.bf16.mxu0 0
      %474 = vmatpush1.bf16.msra.mxu0 0
      %475 = vmatprep.subr.bf16.mxu0 0
      %476 = vmatpush1.bf16.msra.mxu0 0
      %477 = vmatprep.subr.bf16.mxu0 0
      %478 = vmatpush1.bf16.msra.mxu0 0
      %479 = vmatprep.subr.bf16.mxu0 0
      %480 = vmatpush1.bf16.msra.mxu0 0
      %481 = vmatprep.subr.bf16.mxu0 0
      %482 = vmatpush1.bf16.msra.mxu0 0
      %483 = vmatprep.mubr.bf16.mxu0 0
      %484 = vmatmul.mubr.bf16.gmra.mrb[0].mxu0 %v449
      %v485 = vpop.f32.mrb[0].mxu0
      %v486 = vadd.f32 %v429, %v485
      %v487 = vpop.f32.mrb[0].mxu0
      %v488 = vpop.f32.mrb[0].mxu0
      %v489 = vadd.f32 %v429, %v488
      %v490 = vpop.f32.mrb[0].mxu0
      %491 = vdwg.mxu0
      %v492 = vmul.f32 %v486, %v363
      %v493 = vmul.f32 %v489, %v368
      %v494 = vadd.f32 %v492, %v374
      %v495 = vadd.f32 %v493, %v378
      %v496 = vmax.f32 %v494, 0.0
      %v497 = vmax.f32 %v495, 0.0
      %500 = vrot.lane.b32.xlu0 %v496, 120
      %v501 = vpop.permute.xlu0 %500
      %502 = vrot.lane.b32.xlu0 %v497, 120
      %v503 = vpop.permute.xlu0 %502
      %v506 = vmax.f32 %v496, %v501
      %v507 = vmax.f32 %v497, %v503
      %vm508 = vcmask 64512
      %509 = vst.msk [vmem:[%s224] sm:$0xff] %vm508, %v506
      %510 = vst.msk [vmem:[%s224 + $0x8] sm:$0xff] %vm508, %v507
      %p511 = scmp.lt.s32.totalorder %s16, 1
      %s512 = scalar_select %p511, %s16, 1
      %s513 = smul.addr %s512, 2
      %s514 = smul.addr %s513, 8
      %s515 = scalar_lea.vmem %s5, %s514
      // Predicated region
      $region41: #{cnn_adformer_forward.8} parent=39 // pred_check
        %p516 = pneg %p144
      $region42: #{cnn_adformer_forward.8} parent=39 // pred_check_branch
        %518 = sbr.rel (%p516) target = $region44
      $region43: #{cnn_adformer_forward.8} parent=39 // pred_region
        _
      $region44: #{cnn_adformer_forward.8} parent=39 // pred_fallthru
        _
    $region40: #{cnn_adformer_forward.8} parent=5 // pred_fallthru
      _
    %p519 = scmp.le.s32.totalorder 2, %s11
    // Predicated region
    $region45: #{cnn_adformer_forward.8} parent=5 // pred_check
      %p520 = pneg %p519
    $region46: #{cnn_adformer_forward.8} parent=5 // pred_check_branch
      %522 = sbr.rel (%p520) target = $region48
    $region47: #{cnn_adformer_forward.8} parent=5 // pred_region
      %s523 = ssub.s32 %s11, 2
      // Predicated region
      $region49: #{cnn_adformer_forward.8} parent=47 // pred_check
        %p524 = pneg %p150
      $region50: #{cnn_adformer_forward.8} parent=47 // pred_check_branch
        %526 = sbr.rel (%p524) target = $region52
      $region51: #{cnn_adformer_forward.8} parent=47 // pred_region
        %p527 = scmp.lt.s32.totalorder %s17, 1
        %s528 = scalar_select %p527, %s17, 1
        %s529 = smul.addr %s528, 2
        %s530 = smul.addr %s529, 8
        %s531 = scalar_lea.vmem %s5, %s530
      $region52: #{cnn_adformer_forward.8} parent=47 // pred_fallthru
        _
    $region48: #{cnn_adformer_forward.8} parent=5 // pred_fallthru
      _
  $region6: #{cnn_adformer_forward.8} parent=0 // loop_footer
    %s15 = sadd.s32 1, %s11
  $region7: #{cnn_adformer_forward.8} parent=0 // loop_footer_branch
    %10 = sbr.rel target = $region3
  $region8: #{cnn_adformer_forward.8} parent=0 // loop_exit
    _

// kernel: cnn_adformer_forward.9
$region0: #{cnn_adformer_forward.9}
  #allocation0 [shape = 'u32[]', space=smem, size = 0x4, offset = 0x4, fixed_abs, tag = 'smem constant byte address 0x4 - core index']
  #allocation1 [shape = 'u32[144,128]{1,0:T(1,128)}', space=vmem, size = 0x12000, scoped, tag = 'internal scratch']
  %s0 = inlined_call_operand.vmem [shape: f32[2,128], index: 0, kind: input, shape index: {}]
  %s1 = inlined_call_operand.vmem [shape: bf16[128,256], index: 1, kind: input, shape index: {}]
  %s2 = inlined_call_operand.vmem [shape: f32[1,256], index: 2, kind: input, shape index: {}]
  %s3 = inlined_call_operand.vmem [shape: bf16[256,2], index: 3, kind: input, shape index: {}]
  %s4 = inlined_call_operand.vmem [shape: f32[1,2], index: 4, kind: input, shape index: {}]
  %s5 = inlined_call_operand.hbm [shape: f32[2,2], index: 5, kind: output, shape index: {}]
  %s6 = sld [smem:[#allocation0]]
  $region30: #{cnn_adformer_forward.9} parent=0
    _
  %s8 = ssub.s32 1, %s6
  %s9 = scalar_select 0, %s8, %s6
  $region1: #{cnn_adformer_forward.9} parent=0
    #allocation2 [shape = 'u8[1024]{0}', space=vmem, size = 0x400, scoped, tag = 'output window, operand 0, single buffered']
    #allocation3 [shape = 's32[1]{0}', space=sflag, size = 0x4, scoped, tag = 'scoped memory for cnn_adformer_forward.9']
    %10 = vsyncpa [#allocation3], 0
    // Predicated region
    $region2: #{cnn_adformer_forward.9} parent=1 // pred_check
      _
    $region3: #{cnn_adformer_forward.9} parent=1 // pred_check_branch
      %12 = sbr.rel (0) target = $region5
    $region4: #{cnn_adformer_forward.9} parent=1 // pred_region
      _
    $region5: #{cnn_adformer_forward.9} parent=1 // pred_fallthru
      _
    // Predicated region
    $region6: #{cnn_adformer_forward.9} parent=1 // pred_check
      _
    $region7: #{cnn_adformer_forward.9} parent=1 // pred_check_branch
      %14 = sbr.rel (0) target = $region9
    $region8: #{cnn_adformer_forward.9} parent=1 // pred_region
      _
    $region9: #{cnn_adformer_forward.9} parent=1 // pred_fallthru
      _
    // Predicated region
    $region10: #{cnn_adformer_forward.9} parent=1 // pred_check
      _
    $region11: #{cnn_adformer_forward.9} parent=1 // pred_check_branch
      %16 = sbr.rel (0) target = $region13
    $region12: #{cnn_adformer_forward.9} parent=1 // pred_region
      _
    $region13: #{cnn_adformer_forward.9} parent=1 // pred_fallthru
      _
    // Predicated region
    $region14: #{cnn_adformer_forward.9} parent=1 // pred_check
      _
    $region15: #{cnn_adformer_forward.9} parent=1 // pred_check_branch
      %18 = sbr.rel (0) target = $region17
    $region16: #{cnn_adformer_forward.9} parent=1 // pred_region
      _
    $region17: #{cnn_adformer_forward.9} parent=1 // pred_fallthru
      _
    // Predicated region
    $region18: #{cnn_adformer_forward.9} parent=1 // pred_check
      _
    $region19: #{cnn_adformer_forward.9} parent=1 // pred_check_branch
      %20 = sbr.rel (0) target = $region21
    $region20: #{cnn_adformer_forward.9} parent=1 // pred_region
      _
    $region21: #{cnn_adformer_forward.9} parent=1 // pred_fallthru
      _
    %v22 = vld [vmem:[%s0] sm:$0x3]
    %v23 = vpack.c.bf16 %v22, %v22
    %v24 = vld [vmem:[%s1] sm:$0xff]
    %v25 = vld [vmem:[%s1 + $0x8] sm:$0xff]
    %v26 = vld [vmem:[%s1 + $0x10] sm:$0xff]
    %v27 = vld [vmem:[%s1 + $0x18] sm:$0xff]
    %v28 = vld [vmem:[%s1 + $0x20] sm:$0xff]
    %v29 = vld [vmem:[%s1 + $0x28] sm:$0xff]
    %v30 = vld [vmem:[%s1 + $0x30] sm:$0xff]
    %v31 = vld [vmem:[%s1 + $0x38] sm:$0xff]
    %v32 = vld [vmem:[%s1 + $0x40] sm:$0xff]
    %v33 = vld [vmem:[%s1 + $0x48] sm:$0xff]
    %v34 = vld [vmem:[%s1 + $0x50] sm:$0xff]
    %v35 = vld [vmem:[%s1 + $0x58] sm:$0xff]
    %v36 = vld [vmem:[%s1 + $0x60] sm:$0xff]
    %v37 = vld [vmem:[%s1 + $0x68] sm:$0xff]
    %v38 = vld [vmem:[%s1 + $0x70] sm:$0xff]
    %v39 = vld [vmem:[%s1 + $0x78] sm:$0xff]
    %v40 = vld [vmem:[%s2] sm:$0x3]
    %v42 = vlaneseq
    %v43 = vshrl.u32 %v42, 7
    %v44 = vsub.s32 0, %v43
    %v45 = vrot.slane %v40, %v44
    %v46 = vlaneseq
    %v47 = vshrl.u32 %v46, 7
    %v48 = vsub.s32 1, %v47
    %v49 = vrot.slane %v40, %v48
    %v68 = vunpack.c.l.b16 %v24
    %v69 = vunpack.c.h.b16 %v24
    %v70 = vunpack.c.l.b16 %v25
    %v71 = vunpack.c.h.b16 %v25
    %v72 = vunpack.c.l.b16 %v26
    %v73 = vunpack.c.h.b16 %v26
    %v74 = vunpack.c.l.b16 %v27
    %v75 = vunpack.c.h.b16 %v27
    %v76 = vunpack.c.l.b16 %v28
    %v77 = vunpack.c.h.b16 %v28
    %v78 = vunpack.c.l.b16 %v29
    %v79 = vunpack.c.h.b16 %v29
    %v80 = vunpack.c.l.b16 %v30
    %v81 = vunpack.c.h.b16 %v30
    %v82 = vunpack.c.l.b16 %v31
    %v83 = vunpack.c.h.b16 %v31
    %v84 = vunpack.c.l.b16 %v32
    %v85 = vunpack.c.h.b16 %v32
    %v86 = vunpack.c.l.b16 %v33
    %v87 = vunpack.c.h.b16 %v33
    %v88 = vunpack.c.l.b16 %v34
    %v89 = vunpack.c.h.b16 %v34
    %v90 = vunpack.c.l.b16 %v35
    %v91 = vunpack.c.h.b16 %v35
    %v92 = vunpack.c.l.b16 %v36
    %v93 = vunpack.c.h.b16 %v36
    %v94 = vunpack.c.l.b16 %v37
    %v95 = vunpack.c.h.b16 %v37
    %v96 = vunpack.c.l.b16 %v38
    %v97 = vunpack.c.h.b16 %v38
    %v98 = vunpack.c.l.b16 %v39
    %v99 = vunpack.c.h.b16 %v39
    %v100 = vpack.c.b16 %v70, %v68
    %v101 = vpack.c.b16 %v71, %v69
    %v102 = vpack.c.b16 %v74, %v72
    %v103 = vpack.c.b16 %v75, %v73
    %v104 = vpack.c.b16 %v78, %v76
    %v105 = vpack.c.b16 %v79, %v77
    %v106 = vpack.c.b16 %v82, %v80
    %v107 = vpack.c.b16 %v83, %v81
    %v108 = vpack.c.b16 %v86, %v84
    %v109 = vpack.c.b16 %v87, %v85
    %v110 = vpack.c.b16 %v90, %v88
    %v111 = vpack.c.b16 %v91, %v89
    %v112 = vpack.c.b16 %v94, %v92
    %v113 = vpack.c.b16 %v95, %v93
    %v114 = vpack.c.b16 %v98, %v96
    %v115 = vpack.c.b16 %v99, %v97
    %132 = vmatprep.subr.bf16.mxu0 %v101
    %133 = vmatpush1.bf16.msra.mxu0 %v100
    %134 = vmatprep.subr.bf16.mxu0 %v103
    %135 = vmatpush1.bf16.msra.mxu0 %v102
    %136 = vmatprep.subr.bf16.mxu0 %v105
    %137 = vmatpush1.bf16.msra.mxu0 %v104
    %138 = vmatprep.subr.bf16.mxu0 %v107
    %139 = vmatpush1.bf16.msra.mxu0 %v106
    %140 = vmatprep.subr.bf16.mxu0 %v109
    %141 = vmatpush1.bf16.msra.mxu0 %v108
    %142 = vmatprep.subr.bf16.mxu0 %v111
    %143 = vmatpush1.bf16.msra.mxu0 %v110
    %144 = vmatprep.subr.bf16.mxu0 %v113
    %145 = vmatpush1.bf16.msra.mxu0 %v112
    %146 = vmatprep.subr.bf16.mxu0 %v115
    %147 = vmatpush1.bf16.msra.mxu0 %v114
    %148 = vmatprep.subr.bf16.mxu0 0
    %149 = vmatpush1.bf16.msra.mxu0 0
    %150 = vmatprep.subr.bf16.mxu0 0
    %151 = vmatpush1.bf16.msra.mxu0 0
    %152 = vmatprep.subr.bf16.mxu0 0
    %153 = vmatpush1.bf16.msra.mxu0 0
    %154 = vmatprep.subr.bf16.mxu0 0
    %155 = vmatpush1.bf16.msra.mxu0 0
    %156 = vmatprep.subr.bf16.mxu0 0
    %157 = vmatpush1.bf16.msra.mxu0 0
    %158 = vmatprep.subr.bf16.mxu0 0
    %159 = vmatpush1.bf16.msra.mxu0 0
    %160 = vmatprep.subr.bf16.mxu0 0
    %161 = vmatpush1.bf16.msra.mxu0 0
    %162 = vmatprep.subr.bf16.mxu0 0
    %163 = vmatpush1.bf16.msra.mxu0 0
    %164 = vmatprep.mubr.bf16.mxu0 0
    %165 = vmatmul.mubr.bf16.gmra.mrb[0].mxu0 %v23
    %v166 = vpop.f32.mrb[0].mxu0
    %v167 = vadd.f32 %v45, %v166
    %v168 = vpop.f32.mrb[0].mxu0
    %v169 = vadd.f32 %v49, %v168
    %v170 = vpop.f32.mrb[0].mxu0
    %v171 = vpop.f32.mrb[0].mxu0
    %172 = vdwg.mxu0
    %v173 = vpack.c.bf16 %v167, %v167
    %v174 = vpack.c.bf16 %v169, %v169
    %v175 = vld [vmem:[%s3] sm:$0xf]
    %v176 = vld [vmem:[%s3 + $0x4] sm:$0xf]
    %v177 = vld [vmem:[%s3 + $0x8] sm:$0xf]
    %v178 = vld [vmem:[%s3 + $0xc] sm:$0xf]
    %v179 = vld [vmem:[%s3 + $0x10] sm:$0xf]
    %v180 = vld [vmem:[%s3 + $0x14] sm:$0xf]
    %v181 = vld [vmem:[%s3 + $0x18] sm:$0xf]
    %v182 = vld [vmem:[%s3 + $0x1c] sm:$0xf]
    %v183 = vld [vmem:[%s3 + $0x20] sm:$0xf]
    %v184 = vld [vmem:[%s3 + $0x24] sm:$0xf]
    %v185 = vld [vmem:[%s3 + $0x28] sm:$0xf]
    %v186 = vld [vmem:[%s3 + $0x2c] sm:$0xf]
    %v187 = vld [vmem:[%s3 + $0x30] sm:$0xf]
    %v188 = vld [vmem:[%s3 + $0x34] sm:$0xf]
    %v189 = vld [vmem:[%s3 + $0x38] sm:$0xf]
    %v190 = vld [vmem:[%s3 + $0x3c] sm:$0xf]
    %v191 = vld [vmem:[%s3 + $0x40] sm:$0xf]
    %v192 = vld [vmem:[%s3 + $0x44] sm:$0xf]
    %v193 = vld [vmem:[%s3 + $0x48] sm:$0xf]
    %v194 = vld [vmem:[%s3 + $0x4c] sm:$0xf]
    %v195 = vld [vmem:[%s3 + $0x50] sm:$0xf]
    %v196 = vld [vmem:[%s3 + $0x54] sm:$0xf]
    %v197 = vld [vmem:[%s3 + $0x58] sm:$0xf]
    %v198 = vld [vmem:[%s3 + $0x5c] sm:$0xf]
    %v199 = vld [vmem:[%s3 + $0x60] sm:$0xf]
    %v200 = vld [vmem:[%s3 + $0x64] sm:$0xf]
    %v201 = vld [vmem:[%s3 + $0x68] sm:$0xf]
    %v202 = vld [vmem:[%s3 + $0x6c] sm:$0xf]
    %v203 = vld [vmem:[%s3 + $0x70] sm:$0xf]
    %v204 = vld [vmem:[%s3 + $0x74] sm:$0xf]
    %v205 = vld [vmem:[%s3 + $0x78] sm:$0xf]
    %v206 = vld [vmem:[%s3 + $0x7c] sm:$0xf]
    %v207 = vld [vmem:[%s4] sm:$0x1]
    %v209 = vlaneseq
    %v210 = vshrl.u32 %v209, 7
    %v211 = vsub.s32 0, %v210
    %v212 = vrot.slane %v207, %v211
    %v246 = vunpack.c.l.b16 %v175
    %v247 = vunpack.c.l.b16 %v176
    %v248 = vunpack.c.l.b16 %v177
    %v249 = vunpack.c.l.b16 %v178
    %v250 = vunpack.c.l.b16 %v179
    %v251 = vunpack.c.l.b16 %v180
    %v252 = vunpack.c.l.b16 %v181
    %v253 = vunpack.c.l.b16 %v182
    %v254 = vunpack.c.l.b16 %v183
    %v255 = vunpack.c.l.b16 %v184
    %v256 = vunpack.c.l.b16 %v185
    %v257 = vunpack.c.l.b16 %v186
    %v258 = vunpack.c.l.b16 %v187
    %v259 = vunpack.c.l.b16 %v188
    %v260 = vunpack.c.l.b16 %v189
    %v261 = vunpack.c.l.b16 %v190
    %v262 = vunpack.c.l.b16 %v191
    %v263 = vunpack.c.l.b16 %v192
    %v264 = vunpack.c.l.b16 %v193
    %v265 = vunpack.c.l.b16 %v194
    %v266 = vunpack.c.l.b16 %v195
    %v267 = vunpack.c.l.b16 %v196
    %v268 = vunpack.c.l.b16 %v197
    %v269 = vunpack.c.l.b16 %v198
    %v270 = vunpack.c.l.b16 %v199
    %v271 = vunpack.c.l.b16 %v200
    %v272 = vunpack.c.l.b16 %v201
    %v273 = vunpack.c.l.b16 %v202
    %v274 = vunpack.c.l.b16 %v203
    %v275 = vunpack.c.l.b16 %v204
    %v276 = vunpack.c.l.b16 %v205
    %v277 = vunpack.c.l.b16 %v206
    %v278 = vpack.c.b16 %v247, %v246
    %v279 = vpack.c.b16 %v249, %v248
    %v280 = vpack.c.b16 %v251, %v250
    %v281 = vpack.c.b16 %v253, %v252
    %v282 = vpack.c.b16 %v255, %v254
    %v283 = vpack.c.b16 %v257, %v256
    %v284 = vpack.c.b16 %v259, %v258
    %v285 = vpack.c.b16 %v261, %v260
    %v286 = vpack.c.b16 %v263, %v262
    %v287 = vpack.c.b16 %v265, %v264
    %v288 = vpack.c.b16 %v267, %v266
    %v289 = vpack.c.b16 %v269, %v268
    %v290 = vpack.c.b16 %v271, %v270
    %v291 = vpack.c.b16 %v273, %v272
    %v292 = vpack.c.b16 %v275, %v274
    %v293 = vpack.c.b16 %v277, %v276
    %310 = vmatprep.subr.bf16.mxu0 0
    %311 = vmatpush1.bf16.msra.mxu0 %v278
    %312 = vmatprep.subr.bf16.mxu0 0
    %313 = vmatpush1.bf16.msra.mxu0 %v279
    %314 = vmatprep.subr.bf16.mxu0 0
    %315 = vmatpush1.bf16.msra.mxu0 %v280
    %316 = vmatprep.subr.bf16.mxu0 0
    %317 = vmatpush1.bf16.msra.mxu0 %v281
    %318 = vmatprep.subr.bf16.mxu0 0
    %319 = vmatpush1.bf16.msra.mxu0 %v282
    %320 = vmatprep.subr.bf16.mxu0 0
    %321 = vmatpush1.bf16.msra.mxu0 %v283
    %322 = vmatprep.subr.bf16.mxu0 0
    %323 = vmatpush1.bf16.msra.mxu0 %v284
    %324 = vmatprep.subr.bf16.mxu0 0
    %325 = vmatpush1.bf16.msra.mxu0 %v285
    %326 = vmatprep.subr.bf16.mxu0 0
    %327 = vmatpush1.bf16.msra.mxu0 %v286
    %328 = vmatprep.subr.bf16.mxu0 0
    %329 = vmatpush1.bf16.msra.mxu0 %v287
    %330 = vmatprep.subr.bf16.mxu0 0
    %331 = vmatpush1.bf16.msra.mxu0 %v288
    %332 = vmatprep.subr.bf16.mxu0 0
    %333 = vmatpush1.bf16.msra.mxu0 %v289
    %334 = vmatprep.subr.bf16.mxu0 0
    %335 = vmatpush1.bf16.msra.mxu0 %v290
    %336 = vmatprep.subr.bf16.mxu0 0
    %337 = vmatpush1.bf16.msra.mxu0 %v291
    %338 = vmatprep.subr.bf16.mxu0 0
    %339 = vmatpush1.bf16.msra.mxu0 %v292
    %340 = vmatprep.subr.bf16.mxu0 0
    %341 = vmatpush1.bf16.msra.mxu0 %v293
    %342 = vmatprep.mubr.bf16.mxu0 %v174
    %343 = vmatmul.mubr.bf16.gmra.mrb[0].mxu0 %v173
    %v344 = vpop.f32.mrb[0].mxu0
    %v345 = vadd.f32 %v212, %v344
    %v346 = vpop.f32.mrb[0].mxu0
    %v347 = vpop.f32.mrb[0].mxu0
    %v348 = vpop.f32.mrb[0].mxu0
    %349 = vdwg.mxu0
    %vm350 = vcmask 9216
    %351 = vst.msk [vmem:[#allocation2] sm:$0x3] %vm350, %v345
    // Predicated region
    $region22: #{cnn_adformer_forward.9} parent=1 // pred_check
      _
    $region23: #{cnn_adformer_forward.9} parent=1 // pred_check_branch
      %353 = sbr.rel (0) target = $region25
    $region24: #{cnn_adformer_forward.9} parent=1 // pred_region
      %s355 = ssub.s32 32, 32
      %356 = vsyncadd [#allocation3], %s355
      %s358 = sshll.u32 [#allocation2], 4
      %s359 = int_to_ptr.vmem [resolvable:$true] %s358
      %361 = dma.vmem_to_hbm [thread:$0]  %s359, 32, %s5, [#allocation3]
    $region25: #{cnn_adformer_forward.9} parent=1 // pred_fallthru
      _
    // Predicated region
    $region26: #{cnn_adformer_forward.9} parent=1 // pred_check
      _
    $region27: #{cnn_adformer_forward.9} parent=1 // pred_check_branch
      %363 = sbr.rel (0) target = $region29
    $region28: #{cnn_adformer_forward.9} parent=1 // pred_region
      %364 = dma.done [#allocation3], 32
    $region29: #{cnn_adformer_forward.9} parent=1 // pred_fallthru
      _
    %365 = vsyncpa [#allocation3], 1

</llo_original>
